<compile_context>
chip_gen: v7x
topology: tpu7x:2x2x1
jax: 0.10.0
libtpu: 0.0.40
codegen_flags: <defaults>
</compile_context>

<pallas_src>
import jax
import jax.numpy as jnp
from jax.experimental import pallas as pl
from jax.experimental.pallas import tpu as pltpu

# Small, forward-consistent shapes (module defaults are 768/4/4/3072).
D_MODEL = 32
NHEAD = 4
DIM_FF = 64
NUM_LAYERS = 2
SEQ = 8
BATCH = 2
VOCAB = 100
LN_EPS = 1e-5
HEAD_DIM = D_MODEL // NHEAD


def _layer_norm(x, g, b):
    # One-pass statistics: mean and E[x^2] are independent lane reductions
    # (var = E[x^2] - mu^2), instead of two sequential dependent reductions.
    mu = jnp.mean(x, axis=-1, keepdims=True)
    ms = jnp.mean(x * x, axis=-1, keepdims=True)
    var = ms - mu * mu
    return (x - mu) * jax.lax.rsqrt(var + LN_EPS) * g + b


def encoder_kernel(x_ref, mask_ref,
                   wq_ref, bq_ref, wk_ref, bk_ref, wv_ref, bv_ref,
                   wo_ref, bo_ref,
                   ln1_g_ref, ln1_b_ref, ln2_g_ref, ln2_b_ref,
                   w1_ref, b1_ref, w2_ref, b2_ref,
                   out_ref):
    """All NUM_LAYERS TransformerEncoderLayers (post-norm, relu), whole batch."""
    R = BATCH * SEQ
    x = x_ref[...]          # [R, D]   activation slab, batch folded into rows
    mask = mask_ref[...]    # [B, 1, S] additive key-padding mask

    for l in range(NUM_LAYERS):                       # static unroll over layers
        wo_l = wo_ref[l]                              # [D, D]

        # --- Multi-head self-attention ------------------------------------
        # QKV projections on the full [R, D] slab (batch folded into M).
        # wq/bq already carry the 1/sqrt(head_dim) scale (folded on the host).
        q = jnp.dot(x, wq_ref[l], preferred_element_type=jnp.float32) + bq_ref[l]
        k = jnp.dot(x, wk_ref[l], preferred_element_type=jnp.float32) + bk_ref[l]
        v = jnp.dot(x, wv_ref[l], preferred_element_type=jnp.float32) + bv_ref[l]

        q3 = q.reshape(BATCH, SEQ, D_MODEL)
        k3 = k.reshape(BATCH, SEQ, D_MODEL)
        v3 = v.reshape(BATCH, SEQ, D_MODEL)

        # Each head's context is projected and accumulated directly into the
        # attention output: no jnp.concatenate over heads and no explicit
        # kh.T (the batched einsum contracts on the last dims directly).
        acc = jnp.zeros((R, D_MODEL), jnp.float32)
        for h in range(NHEAD):                        # static unroll over heads
            sl = slice(h * HEAD_DIM, (h + 1) * HEAD_DIM)
            qh = q3[:, :, sl]                         # [B, S, dh]
            kh = k3[:, :, sl]
            vh = v3[:, :, sl]
            s = jnp.einsum('bqd,bkd->bqk', qh, kh,
                           preferred_element_type=jnp.float32)    # [B, S, S]
            s = s + mask                              # mask keys (bcast queries)
            s = s - jnp.max(s, axis=-1, keepdims=True)
            p = jnp.exp(s)
            p = p * pl.reciprocal(jnp.sum(p, axis=-1, keepdims=True), approx=True)
            ctx = jnp.einsum('bqk,bkd->bqd', p, vh,
                             preferred_element_type=jnp.float32)  # [B, S, dh]
            acc = acc + jnp.dot(ctx.reshape(R, HEAD_DIM), wo_l[sl, :],
                                preferred_element_type=jnp.float32)
        attn = acc + bo_ref[l]

        # Residual + LayerNorm 1 (post-norm)
        x = _layer_norm(x + attn, ln1_g_ref[l], ln1_b_ref[l])

        # --- Feed-forward: linear -> relu -> linear ------------------------
        h1 = jnp.dot(x, w1_ref[l], preferred_element_type=jnp.float32) + b1_ref[l]
        h1 = jnp.maximum(h1, 0.0)
        ff = jnp.dot(h1, w2_ref[l], preferred_element_type=jnp.float32) + b2_ref[l]

        # Residual + LayerNorm 2
        x = _layer_norm(x + ff, ln2_g_ref[l], ln2_b_ref[l])

    # Emit only the CLS row of each example: [B, D].
    out_ref[...] = x.reshape(BATCH, SEQ, D_MODEL)[:, 0, :]


def run_encoder(x_slab, add_mask, stacked_params):
    """x_slab: [B*S, D] f32, add_mask: [B, 1, S] f32,
    stacked_params: 16 arrays, each with a leading [L, ...] layer axis."""
    n_in = 2 + len(stacked_params)
    vmem = lambda: pl.BlockSpec(memory_space=pltpu.MemorySpace.VMEM)
    # Single invocation, no grid: everything (activations + all per-layer
    # weights, ~70 KiB at these sizes) stays resident in VMEM for the whole
    # forward pass.  At the module's real 768/3072 sizes this would need
    # bf16 weights / a K-tiled reduction grid on v7x (64 MiB VMEM).
    return pl.pallas_call(
        encoder_kernel,
        out_shape=jax.ShapeDtypeStruct((BATCH, D_MODEL), jnp.float32),
        in_specs=[vmem() for _ in range(n_in)],
        out_specs=vmem(),
    )(x_slab, add_mask, *stacked_params)


def init_layer_params(key):
    """Deterministic per-layer params. Linear weights stored as [in, out]."""
    ks = jax.random.split(key, 6)
    std = 0.02

    def w(k, shape):
        return (std * jax.random.normal(k, shape)).astype(jnp.float32)

    wq = w(ks[0], (D_MODEL, D_MODEL)); bq = jnp.zeros((1, D_MODEL), jnp.float32)
    wk = w(ks[1], (D_MODEL, D_MODEL)); bk = jnp.zeros((1, D_MODEL), jnp.float32)
    wv = w(ks[2], (D_MODEL, D_MODEL)); bv = jnp.zeros((1, D_MODEL), jnp.float32)
    wo = w(ks[3], (D_MODEL, D_MODEL)); bo = jnp.zeros((1, D_MODEL), jnp.float32)
    ln1_g = jnp.ones((1, D_MODEL), jnp.float32)
    ln1_b = jnp.zeros((1, D_MODEL), jnp.float32)
    ln2_g = jnp.ones((1, D_MODEL), jnp.float32)
    ln2_b = jnp.zeros((1, D_MODEL), jnp.float32)
    w1 = w(ks[4], (D_MODEL, DIM_FF)); b1 = jnp.zeros((1, DIM_FF), jnp.float32)
    w2 = w(ks[5], (DIM_FF, D_MODEL)); b2 = jnp.zeros((1, D_MODEL), jnp.float32)

    return [wq, bq, wk, bk, wv, bv, wo, bo,
            ln1_g, ln1_b, ln2_g, ln2_b,
            w1, b1, w2, b2]


def stack_and_prepare_params(layer_params):
    """Stack per-layer params along a leading [L, ...] axis and fold the
    1/sqrt(head_dim) attention scale into the Q projection (weight and bias),
    so the kernel never multiplies scores by the scale."""
    n = len(layer_params[0])
    stacked = [jnp.stack([lp[i] for lp in layer_params], axis=0) for i in range(n)]
    scale = jnp.float32(1.0 / (HEAD_DIM ** 0.5))
    stacked[0] = stacked[0] * scale   # wq
    stacked[1] = stacked[1] * scale   # bq
    return stacked


def sentence_encoder_forward(input_ids, attention_mask, embedding, stacked_params):
    """input_ids: [B,S] int32, attention_mask: [B,S] bool -> [B, D] (CLS vector)."""
    B, S = input_ids.shape
    # Embedding lookup (glue, plain JAX).
    x = jnp.take(embedding, input_ids, axis=0).astype(jnp.float32)      # [B, S, D]
    x_slab = x.reshape(B * S, D_MODEL)                                  # [B*S, D]
    # key_padding_mask = ~attention_mask -> additive -1e9 on padded keys.
    add_mask = jnp.where(attention_mask, 0.0, -1e9).astype(jnp.float32)
    add_mask = add_mask.reshape(B, 1, S)                                # [B, 1, S]
    return run_encoder(x_slab, add_mask, stacked_params)                # [B, D]


if __name__ == "__main__":
    key = jax.random.PRNGKey(0)
    k_emb, k_ids, *k_layers = jax.random.split(key, 2 + NUM_LAYERS)

    # Deterministic "parameters".
    embedding = (0.02 * jax.random.normal(k_emb, (VOCAB, D_MODEL))).astype(jnp.float32)
    layer_params = [init_layer_params(k) for k in k_layers]
    stacked_params = stack_and_prepare_params(layer_params)

    # Synthetic tokenizer output: padded batch of token ids + attention mask.
    input_ids = jax.random.randint(k_ids, (BATCH, SEQ), 1, VOCAB, dtype=jnp.int32)
    attention_mask = jnp.ones((BATCH, SEQ), dtype=bool)
    # Simulate padding on the second sentence (last 3 tokens are pad).
    attention_mask = attention_mask.at[1, SEQ - 3:].set(False)
    input_ids = jnp.where(attention_mask, input_ids, 0)

    out = sentence_encoder_forward(input_ids, attention_mask, embedding, stacked_params)
    out = jax.block_until_ready(out)
    assert out.shape == (BATCH, D_MODEL)
    print("KERNEL_OK")
</pallas_src>

<mosaic_0001>
module attributes {stable_mosaic.version = 11 : i64} {
  func.func @encoder_kernel(%arg0: memref<16x32xf32, #tpu.memory_space<vmem>>, %arg1: memref<2x1x8xf32, #tpu.memory_space<vmem>>, %arg2: memref<2x32x32xf32, #tpu.memory_space<vmem>>, %arg3: memref<2x1x32xf32, #tpu.memory_space<vmem>>, %arg4: memref<2x32x32xf32, #tpu.memory_space<vmem>>, %arg5: memref<2x1x32xf32, #tpu.memory_space<vmem>>, %arg6: memref<2x32x32xf32, #tpu.memory_space<vmem>>, %arg7: memref<2x1x32xf32, #tpu.memory_space<vmem>>, %arg8: memref<2x32x32xf32, #tpu.memory_space<vmem>>, %arg9: memref<2x1x32xf32, #tpu.memory_space<vmem>>, %arg10: memref<2x1x32xf32, #tpu.memory_space<vmem>>, %arg11: memref<2x1x32xf32, #tpu.memory_space<vmem>>, %arg12: memref<2x1x32xf32, #tpu.memory_space<vmem>>, %arg13: memref<2x1x32xf32, #tpu.memory_space<vmem>>, %arg14: memref<2x32x64xf32, #tpu.memory_space<vmem>>, %arg15: memref<2x1x64xf32, #tpu.memory_space<vmem>>, %arg16: memref<2x64x32xf32, #tpu.memory_space<vmem>>, %arg17: memref<2x1x32xf32, #tpu.memory_space<vmem>>, %arg18: memref<2x32xf32, #tpu.memory_space<vmem>>) attributes {dimension_semantics = [], scalar_prefetch = 0 : i64, scratch_operands = 0 : i64, tpu.core_type = #tpu.core_type<tc>} {
    %c0 = arith.constant 0 : index
    %c0_0 = arith.constant 0 : index
    %0 = vector.load %arg0[%c0, %c0_0] : memref<16x32xf32, #tpu.memory_space<vmem>>, vector<16x32xf32>
    %c0_1 = arith.constant 0 : index
    %c0_2 = arith.constant 0 : index
    %c0_3 = arith.constant 0 : index
    %1 = vector.load %arg1[%c0_1, %c0_2, %c0_3] : memref<2x1x8xf32, #tpu.memory_space<vmem>>, vector<2x1x8xf32>
    %c0_4 = arith.constant 0 : index
    %c0_5 = arith.constant 0 : index
    %c0_6 = arith.constant 0 : index
    %2 = vector.load %arg8[%c0_4, %c0_5, %c0_6] : memref<2x32x32xf32, #tpu.memory_space<vmem>>, vector<1x32x32xf32>
    %3 = vector.shape_cast %2 : vector<1x32x32xf32> to vector<32x32xf32>
    %c0_7 = arith.constant 0 : index
    %c0_8 = arith.constant 0 : index
    %c0_9 = arith.constant 0 : index
    %4 = vector.load %arg2[%c0_7, %c0_8, %c0_9] : memref<2x32x32xf32, #tpu.memory_space<vmem>>, vector<1x32x32xf32>
    %5 = vector.shape_cast %4 : vector<1x32x32xf32> to vector<32x32xf32>
    %cst = arith.constant dense<0.000000e+00> : vector<16x32xf32>
    %6 = tpu.matmul %0, %5, %cst {dimension_numbers = #tpu.dot_dimension_numbers<[1], [0], [0], [1], [0, 0, 1, 1], [], []>} : vector<16x32xf32>, vector<32x32xf32>, vector<16x32xf32> -> vector<16x32xf32>
    %c0_10 = arith.constant 0 : index
    %c0_11 = arith.constant 0 : index
    %c0_12 = arith.constant 0 : index
    %7 = vector.load %arg3[%c0_10, %c0_11, %c0_12] : memref<2x1x32xf32, #tpu.memory_space<vmem>>, vector<1x1x32xf32>
    %8 = vector.shape_cast %7 : vector<1x1x32xf32> to vector<1x32xf32>
    %9 = vector.broadcast %8 : vector<1x32xf32> to vector<16x32xf32>
    %10 = arith.addf %6, %9 : vector<16x32xf32>
    %c0_13 = arith.constant 0 : index
    %c0_14 = arith.constant 0 : index
    %c0_15 = arith.constant 0 : index
    %11 = vector.load %arg4[%c0_13, %c0_14, %c0_15] : memref<2x32x32xf32, #tpu.memory_space<vmem>>, vector<1x32x32xf32>
    %12 = vector.shape_cast %11 : vector<1x32x32xf32> to vector<32x32xf32>
    %cst_16 = arith.constant dense<0.000000e+00> : vector<16x32xf32>
    %13 = tpu.matmul %0, %12, %cst_16 {dimension_numbers = #tpu.dot_dimension_numbers<[1], [0], [0], [1], [0, 0, 1, 1], [], []>} : vector<16x32xf32>, vector<32x32xf32>, vector<16x32xf32> -> vector<16x32xf32>
    %c0_17 = arith.constant 0 : index
    %c0_18 = arith.constant 0 : index
    %c0_19 = arith.constant 0 : index
    %14 = vector.load %arg5[%c0_17, %c0_18, %c0_19] : memref<2x1x32xf32, #tpu.memory_space<vmem>>, vector<1x1x32xf32>
    %15 = vector.shape_cast %14 : vector<1x1x32xf32> to vector<1x32xf32>
    %16 = vector.broadcast %15 : vector<1x32xf32> to vector<16x32xf32>
    %17 = arith.addf %13, %16 : vector<16x32xf32>
    %c0_20 = arith.constant 0 : index
    %c0_21 = arith.constant 0 : index
    %c0_22 = arith.constant 0 : index
    %18 = vector.load %arg6[%c0_20, %c0_21, %c0_22] : memref<2x32x32xf32, #tpu.memory_space<vmem>>, vector<1x32x32xf32>
    %19 = vector.shape_cast %18 : vector<1x32x32xf32> to vector<32x32xf32>
    %cst_23 = arith.constant dense<0.000000e+00> : vector<16x32xf32>
    %20 = tpu.matmul %0, %19, %cst_23 {dimension_numbers = #tpu.dot_dimension_numbers<[1], [0], [0], [1], [0, 0, 1, 1], [], []>} : vector<16x32xf32>, vector<32x32xf32>, vector<16x32xf32> -> vector<16x32xf32>
    %c0_24 = arith.constant 0 : index
    %c0_25 = arith.constant 0 : index
    %c0_26 = arith.constant 0 : index
    %21 = vector.load %arg7[%c0_24, %c0_25, %c0_26] : memref<2x1x32xf32, #tpu.memory_space<vmem>>, vector<1x1x32xf32>
    %22 = vector.shape_cast %21 : vector<1x1x32xf32> to vector<1x32xf32>
    %23 = vector.broadcast %22 : vector<1x32xf32> to vector<16x32xf32>
    %24 = arith.addf %20, %23 : vector<16x32xf32>
    %25 = vector.shape_cast %10 : vector<16x32xf32> to vector<2x8x32xf32>
    %26 = vector.shape_cast %17 : vector<16x32xf32> to vector<2x8x32xf32>
    %27 = vector.shape_cast %24 : vector<16x32xf32> to vector<2x8x32xf32>
    %cst_27 = arith.constant 0.000000e+00 : f32
    %28 = vector.broadcast %cst_27 : f32 to vector<16x32xf32>
    %29 = vector.extract_strided_slice %25 {offsets = [0, 0, 0], sizes = [2, 8, 8], strides = [1, 1, 1]} : vector<2x8x32xf32> to vector<2x8x8xf32>
    %30 = vector.extract_strided_slice %26 {offsets = [0, 0, 0], sizes = [2, 8, 8], strides = [1, 1, 1]} : vector<2x8x32xf32> to vector<2x8x8xf32>
    %31 = vector.extract_strided_slice %27 {offsets = [0, 0, 0], sizes = [2, 8, 8], strides = [1, 1, 1]} : vector<2x8x32xf32> to vector<2x8x8xf32>
    "tpu.trace_start"() <{level = 10 : i32, message = "bqd,bkd->bqk"}> : () -> ()
    %cst_28 = arith.constant dense<0.000000e+00> : vector<2x8x8xf32>
    %32 = tpu.matmul %29, %30, %cst_28 {dimension_numbers = #tpu.dot_dimension_numbers<[2], [2], [1], [1], [0, 0, 0, 1, 1, 1], [0], [0]>} : vector<2x8x8xf32>, vector<2x8x8xf32>, vector<2x8x8xf32> -> vector<2x8x8xf32>
    "tpu.trace_stop"() : () -> ()
    %33 = vector.broadcast %1 : vector<2x1x8xf32> to vector<2x8x8xf32>
    %34 = arith.addf %32, %33 : vector<2x8x8xf32>
    %cst_29 = arith.constant dense<0xFF800000> : vector<2x8xf32>
    %35 = vector.multi_reduction <maximumf>, %34, %cst_29 [2] : vector<2x8x8xf32> to vector<2x8xf32>
    %36 = vector.shape_cast %35 : vector<2x8xf32> to vector<2x8x1xf32>
    %37 = vector.broadcast %36 : vector<2x8x1xf32> to vector<2x8x8xf32>
    %38 = arith.subf %34, %37 : vector<2x8x8xf32>
    %39 = math.exp %38 : vector<2x8x8xf32>
    %cst_30 = arith.constant dense<0.000000e+00> : vector<2x8xf32>
    %40 = vector.multi_reduction <add>, %39, %cst_30 [2] : vector<2x8x8xf32> to vector<2x8xf32>
    %41 = vector.shape_cast %40 : vector<2x8xf32> to vector<2x8x1xf32>
    %42 = tpu.reciprocal %41 {approx = true} : vector<2x8x1xf32> -> vector<2x8x1xf32>
    %43 = vector.broadcast %42 : vector<2x8x1xf32> to vector<2x8x8xf32>
    %44 = arith.mulf %39, %43 : vector<2x8x8xf32>
    "tpu.trace_start"() <{level = 10 : i32, message = "bqk,bkd->bqd"}> : () -> ()
    %cst_31 = arith.constant dense<0.000000e+00> : vector<2x8x8xf32>
    %45 = tpu.matmul %44, %31, %cst_31 {dimension_numbers = #tpu.dot_dimension_numbers<[2], [1], [1], [2], [0, 0, 0, 1, 1, 2], [0], [0]>} : vector<2x8x8xf32>, vector<2x8x8xf32>, vector<2x8x8xf32> -> vector<2x8x8xf32>
    "tpu.trace_stop"() : () -> ()
    %46 = vector.shape_cast %45 : vector<2x8x8xf32> to vector<16x8xf32>
    %47 = vector.extract_strided_slice %3 {offsets = [0, 0], sizes = [8, 32], strides = [1, 1]} : vector<32x32xf32> to vector<8x32xf32>
    %cst_32 = arith.constant dense<0.000000e+00> : vector<16x32xf32>
    %48 = tpu.matmul %46, %47, %cst_32 {dimension_numbers = #tpu.dot_dimension_numbers<[1], [0], [0], [1], [0, 0, 1, 1], [], []>} : vector<16x8xf32>, vector<8x32xf32>, vector<16x32xf32> -> vector<16x32xf32>
    %49 = arith.addf %28, %48 : vector<16x32xf32>
    %50 = vector.extract_strided_slice %25 {offsets = [0, 0, 8], sizes = [2, 8, 8], strides = [1, 1, 1]} : vector<2x8x32xf32> to vector<2x8x8xf32>
    %51 = vector.extract_strided_slice %26 {offsets = [0, 0, 8], sizes = [2, 8, 8], strides = [1, 1, 1]} : vector<2x8x32xf32> to vector<2x8x8xf32>
    %52 = vector.extract_strided_slice %27 {offsets = [0, 0, 8], sizes = [2, 8, 8], strides = [1, 1, 1]} : vector<2x8x32xf32> to vector<2x8x8xf32>
    "tpu.trace_start"() <{level = 10 : i32, message = "bqd,bkd->bqk"}> : () -> ()
    %cst_33 = arith.constant dense<0.000000e+00> : vector<2x8x8xf32>
    %53 = tpu.matmul %50, %51, %cst_33 {dimension_numbers = #tpu.dot_dimension_numbers<[2], [2], [1], [1], [0, 0, 0, 1, 1, 1], [0], [0]>} : vector<2x8x8xf32>, vector<2x8x8xf32>, vector<2x8x8xf32> -> vector<2x8x8xf32>
    "tpu.trace_stop"() : () -> ()
    %54 = vector.broadcast %1 : vector<2x1x8xf32> to vector<2x8x8xf32>
    %55 = arith.addf %53, %54 : vector<2x8x8xf32>
    %cst_34 = arith.constant dense<0xFF800000> : vector<2x8xf32>
    %56 = vector.multi_reduction <maximumf>, %55, %cst_34 [2] : vector<2x8x8xf32> to vector<2x8xf32>
    %57 = vector.shape_cast %56 : vector<2x8xf32> to vector<2x8x1xf32>
    %58 = vector.broadcast %57 : vector<2x8x1xf32> to vector<2x8x8xf32>
    %59 = arith.subf %55, %58 : vector<2x8x8xf32>
    %60 = math.exp %59 : vector<2x8x8xf32>
    %cst_35 = arith.constant dense<0.000000e+00> : vector<2x8xf32>
    %61 = vector.multi_reduction <add>, %60, %cst_35 [2] : vector<2x8x8xf32> to vector<2x8xf32>
    %62 = vector.shape_cast %61 : vector<2x8xf32> to vector<2x8x1xf32>
    %63 = tpu.reciprocal %62 {approx = true} : vector<2x8x1xf32> -> vector<2x8x1xf32>
    %64 = vector.broadcast %63 : vector<2x8x1xf32> to vector<2x8x8xf32>
    %65 = arith.mulf %60, %64 : vector<2x8x8xf32>
    "tpu.trace_start"() <{level = 10 : i32, message = "bqk,bkd->bqd"}> : () -> ()
    %cst_36 = arith.constant dense<0.000000e+00> : vector<2x8x8xf32>
    %66 = tpu.matmul %65, %52, %cst_36 {dimension_numbers = #tpu.dot_dimension_numbers<[2], [1], [1], [2], [0, 0, 0, 1, 1, 2], [0], [0]>} : vector<2x8x8xf32>, vector<2x8x8xf32>, vector<2x8x8xf32> -> vector<2x8x8xf32>
    "tpu.trace_stop"() : () -> ()
    %67 = vector.shape_cast %66 : vector<2x8x8xf32> to vector<16x8xf32>
    %68 = vector.extract_strided_slice %3 {offsets = [8, 0], sizes = [8, 32], strides = [1, 1]} : vector<32x32xf32> to vector<8x32xf32>
    %cst_37 = arith.constant dense<0.000000e+00> : vector<16x32xf32>
    %69 = tpu.matmul %67, %68, %cst_37 {dimension_numbers = #tpu.dot_dimension_numbers<[1], [0], [0], [1], [0, 0, 1, 1], [], []>} : vector<16x8xf32>, vector<8x32xf32>, vector<16x32xf32> -> vector<16x32xf32>
    %70 = arith.addf %49, %69 : vector<16x32xf32>
    %71 = vector.extract_strided_slice %25 {offsets = [0, 0, 16], sizes = [2, 8, 8], strides = [1, 1, 1]} : vector<2x8x32xf32> to vector<2x8x8xf32>
    %72 = vector.extract_strided_slice %26 {offsets = [0, 0, 16], sizes = [2, 8, 8], strides = [1, 1, 1]} : vector<2x8x32xf32> to vector<2x8x8xf32>
    %73 = vector.extract_strided_slice %27 {offsets = [0, 0, 16], sizes = [2, 8, 8], strides = [1, 1, 1]} : vector<2x8x32xf32> to vector<2x8x8xf32>
    "tpu.trace_start"() <{level = 10 : i32, message = "bqd,bkd->bqk"}> : () -> ()
    %cst_38 = arith.constant dense<0.000000e+00> : vector<2x8x8xf32>
    %74 = tpu.matmul %71, %72, %cst_38 {dimension_numbers = #tpu.dot_dimension_numbers<[2], [2], [1], [1], [0, 0, 0, 1, 1, 1], [0], [0]>} : vector<2x8x8xf32>, vector<2x8x8xf32>, vector<2x8x8xf32> -> vector<2x8x8xf32>
    "tpu.trace_stop"() : () -> ()
    %75 = vector.broadcast %1 : vector<2x1x8xf32> to vector<2x8x8xf32>
    %76 = arith.addf %74, %75 : vector<2x8x8xf32>
    %cst_39 = arith.constant dense<0xFF800000> : vector<2x8xf32>
    %77 = vector.multi_reduction <maximumf>, %76, %cst_39 [2] : vector<2x8x8xf32> to vector<2x8xf32>
    %78 = vector.shape_cast %77 : vector<2x8xf32> to vector<2x8x1xf32>
    %79 = vector.broadcast %78 : vector<2x8x1xf32> to vector<2x8x8xf32>
    %80 = arith.subf %76, %79 : vector<2x8x8xf32>
    %81 = math.exp %80 : vector<2x8x8xf32>
    %cst_40 = arith.constant dense<0.000000e+00> : vector<2x8xf32>
    %82 = vector.multi_reduction <add>, %81, %cst_40 [2] : vector<2x8x8xf32> to vector<2x8xf32>
    %83 = vector.shape_cast %82 : vector<2x8xf32> to vector<2x8x1xf32>
    %84 = tpu.reciprocal %83 {approx = true} : vector<2x8x1xf32> -> vector<2x8x1xf32>
    %85 = vector.broadcast %84 : vector<2x8x1xf32> to vector<2x8x8xf32>
    %86 = arith.mulf %81, %85 : vector<2x8x8xf32>
    "tpu.trace_start"() <{level = 10 : i32, message = "bqk,bkd->bqd"}> : () -> ()
    %cst_41 = arith.constant dense<0.000000e+00> : vector<2x8x8xf32>
    %87 = tpu.matmul %86, %73, %cst_41 {dimension_numbers = #tpu.dot_dimension_numbers<[2], [1], [1], [2], [0, 0, 0, 1, 1, 2], [0], [0]>} : vector<2x8x8xf32>, vector<2x8x8xf32>, vector<2x8x8xf32> -> vector<2x8x8xf32>
    "tpu.trace_stop"() : () -> ()
    %88 = vector.shape_cast %87 : vector<2x8x8xf32> to vector<16x8xf32>
    %89 = vector.extract_strided_slice %3 {offsets = [16, 0], sizes = [8, 32], strides = [1, 1]} : vector<32x32xf32> to vector<8x32xf32>
    %cst_42 = arith.constant dense<0.000000e+00> : vector<16x32xf32>
    %90 = tpu.matmul %88, %89, %cst_42 {dimension_numbers = #tpu.dot_dimension_numbers<[1], [0], [0], [1], [0, 0, 1, 1], [], []>} : vector<16x8xf32>, vector<8x32xf32>, vector<16x32xf32> -> vector<16x32xf32>
    %91 = arith.addf %70, %90 : vector<16x32xf32>
    %92 = vector.extract_strided_slice %25 {offsets = [0, 0, 24], sizes = [2, 8, 8], strides = [1, 1, 1]} : vector<2x8x32xf32> to vector<2x8x8xf32>
    %93 = vector.extract_strided_slice %26 {offsets = [0, 0, 24], sizes = [2, 8, 8], strides = [1, 1, 1]} : vector<2x8x32xf32> to vector<2x8x8xf32>
    %94 = vector.extract_strided_slice %27 {offsets = [0, 0, 24], sizes = [2, 8, 8], strides = [1, 1, 1]} : vector<2x8x32xf32> to vector<2x8x8xf32>
    "tpu.trace_start"() <{level = 10 : i32, message = "bqd,bkd->bqk"}> : () -> ()
    %cst_43 = arith.constant dense<0.000000e+00> : vector<2x8x8xf32>
    %95 = tpu.matmul %92, %93, %cst_43 {dimension_numbers = #tpu.dot_dimension_numbers<[2], [2], [1], [1], [0, 0, 0, 1, 1, 1], [0], [0]>} : vector<2x8x8xf32>, vector<2x8x8xf32>, vector<2x8x8xf32> -> vector<2x8x8xf32>
    "tpu.trace_stop"() : () -> ()
    %96 = vector.broadcast %1 : vector<2x1x8xf32> to vector<2x8x8xf32>
    %97 = arith.addf %95, %96 : vector<2x8x8xf32>
    %cst_44 = arith.constant dense<0xFF800000> : vector<2x8xf32>
    %98 = vector.multi_reduction <maximumf>, %97, %cst_44 [2] : vector<2x8x8xf32> to vector<2x8xf32>
    %99 = vector.shape_cast %98 : vector<2x8xf32> to vector<2x8x1xf32>
    %100 = vector.broadcast %99 : vector<2x8x1xf32> to vector<2x8x8xf32>
    %101 = arith.subf %97, %100 : vector<2x8x8xf32>
    %102 = math.exp %101 : vector<2x8x8xf32>
    %cst_45 = arith.constant dense<0.000000e+00> : vector<2x8xf32>
    %103 = vector.multi_reduction <add>, %102, %cst_45 [2] : vector<2x8x8xf32> to vector<2x8xf32>
    %104 = vector.shape_cast %103 : vector<2x8xf32> to vector<2x8x1xf32>
    %105 = tpu.reciprocal %104 {approx = true} : vector<2x8x1xf32> -> vector<2x8x1xf32>
    %106 = vector.broadcast %105 : vector<2x8x1xf32> to vector<2x8x8xf32>
    %107 = arith.mulf %102, %106 : vector<2x8x8xf32>
    "tpu.trace_start"() <{level = 10 : i32, message = "bqk,bkd->bqd"}> : () -> ()
    %cst_46 = arith.constant dense<0.000000e+00> : vector<2x8x8xf32>
    %108 = tpu.matmul %107, %94, %cst_46 {dimension_numbers = #tpu.dot_dimension_numbers<[2], [1], [1], [2], [0, 0, 0, 1, 1, 2], [0], [0]>} : vector<2x8x8xf32>, vector<2x8x8xf32>, vector<2x8x8xf32> -> vector<2x8x8xf32>
    "tpu.trace_stop"() : () -> ()
    %109 = vector.shape_cast %108 : vector<2x8x8xf32> to vector<16x8xf32>
    %110 = vector.extract_strided_slice %3 {offsets = [24, 0], sizes = [8, 32], strides = [1, 1]} : vector<32x32xf32> to vector<8x32xf32>
    %cst_47 = arith.constant dense<0.000000e+00> : vector<16x32xf32>
    %111 = tpu.matmul %109, %110, %cst_47 {dimension_numbers = #tpu.dot_dimension_numbers<[1], [0], [0], [1], [0, 0, 1, 1], [], []>} : vector<16x8xf32>, vector<8x32xf32>, vector<16x32xf32> -> vector<16x32xf32>
    %112 = arith.addf %91, %111 : vector<16x32xf32>
    %c0_48 = arith.constant 0 : index
    %c0_49 = arith.constant 0 : index
    %c0_50 = arith.constant 0 : index
    %113 = vector.load %arg9[%c0_48, %c0_49, %c0_50] : memref<2x1x32xf32, #tpu.memory_space<vmem>>, vector<1x1x32xf32>
    %114 = vector.shape_cast %113 : vector<1x1x32xf32> to vector<1x32xf32>
    %115 = vector.broadcast %114 : vector<1x32xf32> to vector<16x32xf32>
    %116 = arith.addf %112, %115 : vector<16x32xf32>
    %117 = arith.addf %0, %116 : vector<16x32xf32>
    %c0_51 = arith.constant 0 : index
    %c0_52 = arith.constant 0 : index
    %c0_53 = arith.constant 0 : index
    %118 = vector.load %arg10[%c0_51, %c0_52, %c0_53] : memref<2x1x32xf32, #tpu.memory_space<vmem>>, vector<1x1x32xf32>
    %119 = vector.shape_cast %118 : vector<1x1x32xf32> to vector<1x32xf32>
    %c0_54 = arith.constant 0 : index
    %c0_55 = arith.constant 0 : index
    %c0_56 = arith.constant 0 : index
    %120 = vector.load %arg11[%c0_54, %c0_55, %c0_56] : memref<2x1x32xf32, #tpu.memory_space<vmem>>, vector<1x1x32xf32>
    %121 = vector.shape_cast %120 : vector<1x1x32xf32> to vector<1x32xf32>
    %cst_57 = arith.constant dense<0.000000e+00> : vector<16xf32>
    %122 = vector.multi_reduction <add>, %117, %cst_57 [1] : vector<16x32xf32> to vector<16xf32>
    %123 = vector.shape_cast %122 : vector<16xf32> to vector<16x1xf32>
    %cst_58 = arith.constant 3.200000e+01 : f32
    %124 = vector.broadcast %cst_58 : f32 to vector<16x1xf32>
    %125 = arith.divf %123, %124 : vector<16x1xf32>
    %126 = arith.mulf %117, %117 : vector<16x32xf32>
    %cst_59 = arith.constant dense<0.000000e+00> : vector<16xf32>
    %127 = vector.multi_reduction <add>, %126, %cst_59 [1] : vector<16x32xf32> to vector<16xf32>
    %128 = vector.shape_cast %127 : vector<16xf32> to vector<16x1xf32>
    %cst_60 = arith.constant 3.200000e+01 : f32
    %129 = vector.broadcast %cst_60 : f32 to vector<16x1xf32>
    %130 = arith.divf %128, %129 : vector<16x1xf32>
    %131 = arith.mulf %125, %125 : vector<16x1xf32>
    %132 = arith.subf %130, %131 : vector<16x1xf32>
    %133 = vector.broadcast %125 : vector<16x1xf32> to vector<16x32xf32>
    %134 = arith.subf %117, %133 : vector<16x32xf32>
    %cst_61 = arith.constant 9.99999974E-6 : f32
    %135 = vector.broadcast %cst_61 : f32 to vector<16x1xf32>
    %136 = arith.addf %132, %135 : vector<16x1xf32>
    %137 = math.rsqrt %136 : vector<16x1xf32>
    %138 = vector.broadcast %137 : vector<16x1xf32> to vector<16x32xf32>
    %139 = arith.mulf %134, %138 : vector<16x32xf32>
    %140 = vector.broadcast %119 : vector<1x32xf32> to vector<16x32xf32>
    %141 = arith.mulf %139, %140 : vector<16x32xf32>
    %142 = vector.broadcast %121 : vector<1x32xf32> to vector<16x32xf32>
    %143 = arith.addf %141, %142 : vector<16x32xf32>
    %c0_62 = arith.constant 0 : index
    %c0_63 = arith.constant 0 : index
    %c0_64 = arith.constant 0 : index
    %144 = vector.load %arg14[%c0_62, %c0_63, %c0_64] : memref<2x32x64xf32, #tpu.memory_space<vmem>>, vector<1x32x64xf32>
    %145 = vector.shape_cast %144 : vector<1x32x64xf32> to vector<32x64xf32>
    %cst_65 = arith.constant dense<0.000000e+00> : vector<16x64xf32>
    %146 = tpu.matmul %143, %145, %cst_65 {dimension_numbers = #tpu.dot_dimension_numbers<[1], [0], [0], [1], [0, 0, 1, 1], [], []>} : vector<16x32xf32>, vector<32x64xf32>, vector<16x64xf32> -> vector<16x64xf32>
    %c0_66 = arith.constant 0 : index
    %c0_67 = arith.constant 0 : index
    %c0_68 = arith.constant 0 : index
    %147 = vector.load %arg15[%c0_66, %c0_67, %c0_68] : memref<2x1x64xf32, #tpu.memory_space<vmem>>, vector<1x1x64xf32>
    %148 = vector.shape_cast %147 : vector<1x1x64xf32> to vector<1x64xf32>
    %149 = vector.broadcast %148 : vector<1x64xf32> to vector<16x64xf32>
    %150 = arith.addf %146, %149 : vector<16x64xf32>
    %cst_69 = arith.constant 0.000000e+00 : f32
    %151 = vector.broadcast %cst_69 : f32 to vector<16x64xf32>
    %152 = arith.maximumf %150, %151 : vector<16x64xf32>
    %c0_70 = arith.constant 0 : index
    %c0_71 = arith.constant 0 : index
    %c0_72 = arith.constant 0 : index
    %153 = vector.load %arg16[%c0_70, %c0_71, %c0_72] : memref<2x64x32xf32, #tpu.memory_space<vmem>>, vector<1x64x32xf32>
    %154 = vector.shape_cast %153 : vector<1x64x32xf32> to vector<64x32xf32>
    %cst_73 = arith.constant dense<0.000000e+00> : vector<16x32xf32>
    %155 = tpu.matmul %152, %154, %cst_73 {dimension_numbers = #tpu.dot_dimension_numbers<[1], [0], [0], [1], [0, 0, 1, 1], [], []>} : vector<16x64xf32>, vector<64x32xf32>, vector<16x32xf32> -> vector<16x32xf32>
    %c0_74 = arith.constant 0 : index
    %c0_75 = arith.constant 0 : index
    %c0_76 = arith.constant 0 : index
    %156 = vector.load %arg17[%c0_74, %c0_75, %c0_76] : memref<2x1x32xf32, #tpu.memory_space<vmem>>, vector<1x1x32xf32>
    %157 = vector.shape_cast %156 : vector<1x1x32xf32> to vector<1x32xf32>
    %158 = vector.broadcast %157 : vector<1x32xf32> to vector<16x32xf32>
    %159 = arith.addf %155, %158 : vector<16x32xf32>
    %160 = arith.addf %143, %159 : vector<16x32xf32>
    %c0_77 = arith.constant 0 : index
    %c0_78 = arith.constant 0 : index
    %c0_79 = arith.constant 0 : index
    %161 = vector.load %arg12[%c0_77, %c0_78, %c0_79] : memref<2x1x32xf32, #tpu.memory_space<vmem>>, vector<1x1x32xf32>
    %162 = vector.shape_cast %161 : vector<1x1x32xf32> to vector<1x32xf32>
    %c0_80 = arith.constant 0 : index
    %c0_81 = arith.constant 0 : index
    %c0_82 = arith.constant 0 : index
    %163 = vector.load %arg13[%c0_80, %c0_81, %c0_82] : memref<2x1x32xf32, #tpu.memory_space<vmem>>, vector<1x1x32xf32>
    %164 = vector.shape_cast %163 : vector<1x1x32xf32> to vector<1x32xf32>
    %cst_83 = arith.constant dense<0.000000e+00> : vector<16xf32>
    %165 = vector.multi_reduction <add>, %160, %cst_83 [1] : vector<16x32xf32> to vector<16xf32>
    %166 = vector.shape_cast %165 : vector<16xf32> to vector<16x1xf32>
    %cst_84 = arith.constant 3.200000e+01 : f32
    %167 = vector.broadcast %cst_84 : f32 to vector<16x1xf32>
    %168 = arith.divf %166, %167 : vector<16x1xf32>
    %169 = arith.mulf %160, %160 : vector<16x32xf32>
    %cst_85 = arith.constant dense<0.000000e+00> : vector<16xf32>
    %170 = vector.multi_reduction <add>, %169, %cst_85 [1] : vector<16x32xf32> to vector<16xf32>
    %171 = vector.shape_cast %170 : vector<16xf32> to vector<16x1xf32>
    %cst_86 = arith.constant 3.200000e+01 : f32
    %172 = vector.broadcast %cst_86 : f32 to vector<16x1xf32>
    %173 = arith.divf %171, %172 : vector<16x1xf32>
    %174 = arith.mulf %168, %168 : vector<16x1xf32>
    %175 = arith.subf %173, %174 : vector<16x1xf32>
    %176 = vector.broadcast %168 : vector<16x1xf32> to vector<16x32xf32>
    %177 = arith.subf %160, %176 : vector<16x32xf32>
    %cst_87 = arith.constant 9.99999974E-6 : f32
    %178 = vector.broadcast %cst_87 : f32 to vector<16x1xf32>
    %179 = arith.addf %175, %178 : vector<16x1xf32>
    %180 = math.rsqrt %179 : vector<16x1xf32>
    %181 = vector.broadcast %180 : vector<16x1xf32> to vector<16x32xf32>
    %182 = arith.mulf %177, %181 : vector<16x32xf32>
    %183 = vector.broadcast %162 : vector<1x32xf32> to vector<16x32xf32>
    %184 = arith.mulf %182, %183 : vector<16x32xf32>
    %185 = vector.broadcast %164 : vector<1x32xf32> to vector<16x32xf32>
    %186 = arith.addf %184, %185 : vector<16x32xf32>
    %c1 = arith.constant 1 : index
    %c0_88 = arith.constant 0 : index
    %c0_89 = arith.constant 0 : index
    %187 = vector.load %arg8[%c1, %c0_88, %c0_89] : memref<2x32x32xf32, #tpu.memory_space<vmem>>, vector<1x32x32xf32>
    %188 = vector.shape_cast %187 : vector<1x32x32xf32> to vector<32x32xf32>
    %c1_90 = arith.constant 1 : index
    %c0_91 = arith.constant 0 : index
    %c0_92 = arith.constant 0 : index
    %189 = vector.load %arg2[%c1_90, %c0_91, %c0_92] : memref<2x32x32xf32, #tpu.memory_space<vmem>>, vector<1x32x32xf32>
    %190 = vector.shape_cast %189 : vector<1x32x32xf32> to vector<32x32xf32>
    %cst_93 = arith.constant dense<0.000000e+00> : vector<16x32xf32>
    %191 = tpu.matmul %186, %190, %cst_93 {dimension_numbers = #tpu.dot_dimension_numbers<[1], [0], [0], [1], [0, 0, 1, 1], [], []>} : vector<16x32xf32>, vector<32x32xf32>, vector<16x32xf32> -> vector<16x32xf32>
    %c1_94 = arith.constant 1 : index
    %c0_95 = arith.constant 0 : index
    %c0_96 = arith.constant 0 : index
    %192 = vector.load %arg3[%c1_94, %c0_95, %c0_96] : memref<2x1x32xf32, #tpu.memory_space<vmem>>, vector<1x1x32xf32>
    %193 = vector.shape_cast %192 : vector<1x1x32xf32> to vector<1x32xf32>
    %194 = vector.broadcast %193 : vector<1x32xf32> to vector<16x32xf32>
    %195 = arith.addf %191, %194 : vector<16x32xf32>
    %c1_97 = arith.constant 1 : index
    %c0_98 = arith.constant 0 : index
    %c0_99 = arith.constant 0 : index
    %196 = vector.load %arg4[%c1_97, %c0_98, %c0_99] : memref<2x32x32xf32, #tpu.memory_space<vmem>>, vector<1x32x32xf32>
    %197 = vector.shape_cast %196 : vector<1x32x32xf32> to vector<32x32xf32>
    %cst_100 = arith.constant dense<0.000000e+00> : vector<16x32xf32>
    %198 = tpu.matmul %186, %197, %cst_100 {dimension_numbers = #tpu.dot_dimension_numbers<[1], [0], [0], [1], [0, 0, 1, 1], [], []>} : vector<16x32xf32>, vector<32x32xf32>, vector<16x32xf32> -> vector<16x32xf32>
    %c1_101 = arith.constant 1 : index
    %c0_102 = arith.constant 0 : index
    %c0_103 = arith.constant 0 : index
    %199 = vector.load %arg5[%c1_101, %c0_102, %c0_103] : memref<2x1x32xf32, #tpu.memory_space<vmem>>, vector<1x1x32xf32>
    %200 = vector.shape_cast %199 : vector<1x1x32xf32> to vector<1x32xf32>
    %201 = vector.broadcast %200 : vector<1x32xf32> to vector<16x32xf32>
    %202 = arith.addf %198, %201 : vector<16x32xf32>
    %c1_104 = arith.constant 1 : index
    %c0_105 = arith.constant 0 : index
    %c0_106 = arith.constant 0 : index
    %203 = vector.load %arg6[%c1_104, %c0_105, %c0_106] : memref<2x32x32xf32, #tpu.memory_space<vmem>>, vector<1x32x32xf32>
    %204 = vector.shape_cast %203 : vector<1x32x32xf32> to vector<32x32xf32>
    %cst_107 = arith.constant dense<0.000000e+00> : vector<16x32xf32>
    %205 = tpu.matmul %186, %204, %cst_107 {dimension_numbers = #tpu.dot_dimension_numbers<[1], [0], [0], [1], [0, 0, 1, 1], [], []>} : vector<16x32xf32>, vector<32x32xf32>, vector<16x32xf32> -> vector<16x32xf32>
    %c1_108 = arith.constant 1 : index
    %c0_109 = arith.constant 0 : index
    %c0_110 = arith.constant 0 : index
    %206 = vector.load %arg7[%c1_108, %c0_109, %c0_110] : memref<2x1x32xf32, #tpu.memory_space<vmem>>, vector<1x1x32xf32>
    %207 = vector.shape_cast %206 : vector<1x1x32xf32> to vector<1x32xf32>
    %208 = vector.broadcast %207 : vector<1x32xf32> to vector<16x32xf32>
    %209 = arith.addf %205, %208 : vector<16x32xf32>
    %210 = vector.shape_cast %195 : vector<16x32xf32> to vector<2x8x32xf32>
    %211 = vector.shape_cast %202 : vector<16x32xf32> to vector<2x8x32xf32>
    %212 = vector.shape_cast %209 : vector<16x32xf32> to vector<2x8x32xf32>
    %cst_111 = arith.constant 0.000000e+00 : f32
    %213 = vector.broadcast %cst_111 : f32 to vector<16x32xf32>
    %214 = vector.extract_strided_slice %210 {offsets = [0, 0, 0], sizes = [2, 8, 8], strides = [1, 1, 1]} : vector<2x8x32xf32> to vector<2x8x8xf32>
    %215 = vector.extract_strided_slice %211 {offsets = [0, 0, 0], sizes = [2, 8, 8], strides = [1, 1, 1]} : vector<2x8x32xf32> to vector<2x8x8xf32>
    %216 = vector.extract_strided_slice %212 {offsets = [0, 0, 0], sizes = [2, 8, 8], strides = [1, 1, 1]} : vector<2x8x32xf32> to vector<2x8x8xf32>
    "tpu.trace_start"() <{level = 10 : i32, message = "bqd,bkd->bqk"}> : () -> ()
    %cst_112 = arith.constant dense<0.000000e+00> : vector<2x8x8xf32>
    %217 = tpu.matmul %214, %215, %cst_112 {dimension_numbers = #tpu.dot_dimension_numbers<[2], [2], [1], [1], [0, 0, 0, 1, 1, 1], [0], [0]>} : vector<2x8x8xf32>, vector<2x8x8xf32>, vector<2x8x8xf32> -> vector<2x8x8xf32>
    "tpu.trace_stop"() : () -> ()
    %218 = vector.broadcast %1 : vector<2x1x8xf32> to vector<2x8x8xf32>
    %219 = arith.addf %217, %218 : vector<2x8x8xf32>
    %cst_113 = arith.constant dense<0xFF800000> : vector<2x8xf32>
    %220 = vector.multi_reduction <maximumf>, %219, %cst_113 [2] : vector<2x8x8xf32> to vector<2x8xf32>
    %221 = vector.shape_cast %220 : vector<2x8xf32> to vector<2x8x1xf32>
    %222 = vector.broadcast %221 : vector<2x8x1xf32> to vector<2x8x8xf32>
    %223 = arith.subf %219, %222 : vector<2x8x8xf32>
    %224 = math.exp %223 : vector<2x8x8xf32>
    %cst_114 = arith.constant dense<0.000000e+00> : vector<2x8xf32>
    %225 = vector.multi_reduction <add>, %224, %cst_114 [2] : vector<2x8x8xf32> to vector<2x8xf32>
    %226 = vector.shape_cast %225 : vector<2x8xf32> to vector<2x8x1xf32>
    %227 = tpu.reciprocal %226 {approx = true} : vector<2x8x1xf32> -> vector<2x8x1xf32>
    %228 = vector.broadcast %227 : vector<2x8x1xf32> to vector<2x8x8xf32>
    %229 = arith.mulf %224, %228 : vector<2x8x8xf32>
    "tpu.trace_start"() <{level = 10 : i32, message = "bqk,bkd->bqd"}> : () -> ()
    %cst_115 = arith.constant dense<0.000000e+00> : vector<2x8x8xf32>
    %230 = tpu.matmul %229, %216, %cst_115 {dimension_numbers = #tpu.dot_dimension_numbers<[2], [1], [1], [2], [0, 0, 0, 1, 1, 2], [0], [0]>} : vector<2x8x8xf32>, vector<2x8x8xf32>, vector<2x8x8xf32> -> vector<2x8x8xf32>
    "tpu.trace_stop"() : () -> ()
    %231 = vector.shape_cast %230 : vector<2x8x8xf32> to vector<16x8xf32>
    %232 = vector.extract_strided_slice %188 {offsets = [0, 0], sizes = [8, 32], strides = [1, 1]} : vector<32x32xf32> to vector<8x32xf32>
    %cst_116 = arith.constant dense<0.000000e+00> : vector<16x32xf32>
    %233 = tpu.matmul %231, %232, %cst_116 {dimension_numbers = #tpu.dot_dimension_numbers<[1], [0], [0], [1], [0, 0, 1, 1], [], []>} : vector<16x8xf32>, vector<8x32xf32>, vector<16x32xf32> -> vector<16x32xf32>
    %234 = arith.addf %213, %233 : vector<16x32xf32>
    %235 = vector.extract_strided_slice %210 {offsets = [0, 0, 8], sizes = [2, 8, 8], strides = [1, 1, 1]} : vector<2x8x32xf32> to vector<2x8x8xf32>
    %236 = vector.extract_strided_slice %211 {offsets = [0, 0, 8], sizes = [2, 8, 8], strides = [1, 1, 1]} : vector<2x8x32xf32> to vector<2x8x8xf32>
    %237 = vector.extract_strided_slice %212 {offsets = [0, 0, 8], sizes = [2, 8, 8], strides = [1, 1, 1]} : vector<2x8x32xf32> to vector<2x8x8xf32>
    "tpu.trace_start"() <{level = 10 : i32, message = "bqd,bkd->bqk"}> : () -> ()
    %cst_117 = arith.constant dense<0.000000e+00> : vector<2x8x8xf32>
    %238 = tpu.matmul %235, %236, %cst_117 {dimension_numbers = #tpu.dot_dimension_numbers<[2], [2], [1], [1], [0, 0, 0, 1, 1, 1], [0], [0]>} : vector<2x8x8xf32>, vector<2x8x8xf32>, vector<2x8x8xf32> -> vector<2x8x8xf32>
    "tpu.trace_stop"() : () -> ()
    %239 = vector.broadcast %1 : vector<2x1x8xf32> to vector<2x8x8xf32>
    %240 = arith.addf %238, %239 : vector<2x8x8xf32>
    %cst_118 = arith.constant dense<0xFF800000> : vector<2x8xf32>
    %241 = vector.multi_reduction <maximumf>, %240, %cst_118 [2] : vector<2x8x8xf32> to vector<2x8xf32>
    %242 = vector.shape_cast %241 : vector<2x8xf32> to vector<2x8x1xf32>
    %243 = vector.broadcast %242 : vector<2x8x1xf32> to vector<2x8x8xf32>
    %244 = arith.subf %240, %243 : vector<2x8x8xf32>
    %245 = math.exp %244 : vector<2x8x8xf32>
    %cst_119 = arith.constant dense<0.000000e+00> : vector<2x8xf32>
    %246 = vector.multi_reduction <add>, %245, %cst_119 [2] : vector<2x8x8xf32> to vector<2x8xf32>
    %247 = vector.shape_cast %246 : vector<2x8xf32> to vector<2x8x1xf32>
    %248 = tpu.reciprocal %247 {approx = true} : vector<2x8x1xf32> -> vector<2x8x1xf32>
    %249 = vector.broadcast %248 : vector<2x8x1xf32> to vector<2x8x8xf32>
    %250 = arith.mulf %245, %249 : vector<2x8x8xf32>
    "tpu.trace_start"() <{level = 10 : i32, message = "bqk,bkd->bqd"}> : () -> ()
    %cst_120 = arith.constant dense<0.000000e+00> : vector<2x8x8xf32>
    %251 = tpu.matmul %250, %237, %cst_120 {dimension_numbers = #tpu.dot_dimension_numbers<[2], [1], [1], [2], [0, 0, 0, 1, 1, 2], [0], [0]>} : vector<2x8x8xf32>, vector<2x8x8xf32>, vector<2x8x8xf32> -> vector<2x8x8xf32>
    "tpu.trace_stop"() : () -> ()
    %252 = vector.shape_cast %251 : vector<2x8x8xf32> to vector<16x8xf32>
    %253 = vector.extract_strided_slice %188 {offsets = [8, 0], sizes = [8, 32], strides = [1, 1]} : vector<32x32xf32> to vector<8x32xf32>
    %cst_121 = arith.constant dense<0.000000e+00> : vector<16x32xf32>
    %254 = tpu.matmul %252, %253, %cst_121 {dimension_numbers = #tpu.dot_dimension_numbers<[1], [0], [0], [1], [0, 0, 1, 1], [], []>} : vector<16x8xf32>, vector<8x32xf32>, vector<16x32xf32> -> vector<16x32xf32>
    %255 = arith.addf %234, %254 : vector<16x32xf32>
    %256 = vector.extract_strided_slice %210 {offsets = [0, 0, 16], sizes = [2, 8, 8], strides = [1, 1, 1]} : vector<2x8x32xf32> to vector<2x8x8xf32>
    %257 = vector.extract_strided_slice %211 {offsets = [0, 0, 16], sizes = [2, 8, 8], strides = [1, 1, 1]} : vector<2x8x32xf32> to vector<2x8x8xf32>
    %258 = vector.extract_strided_slice %212 {offsets = [0, 0, 16], sizes = [2, 8, 8], strides = [1, 1, 1]} : vector<2x8x32xf32> to vector<2x8x8xf32>
    "tpu.trace_start"() <{level = 10 : i32, message = "bqd,bkd->bqk"}> : () -> ()
    %cst_122 = arith.constant dense<0.000000e+00> : vector<2x8x8xf32>
    %259 = tpu.matmul %256, %257, %cst_122 {dimension_numbers = #tpu.dot_dimension_numbers<[2], [2], [1], [1], [0, 0, 0, 1, 1, 1], [0], [0]>} : vector<2x8x8xf32>, vector<2x8x8xf32>, vector<2x8x8xf32> -> vector<2x8x8xf32>
    "tpu.trace_stop"() : () -> ()
    %260 = vector.broadcast %1 : vector<2x1x8xf32> to vector<2x8x8xf32>
    %261 = arith.addf %259, %260 : vector<2x8x8xf32>
    %cst_123 = arith.constant dense<0xFF800000> : vector<2x8xf32>
    %262 = vector.multi_reduction <maximumf>, %261, %cst_123 [2] : vector<2x8x8xf32> to vector<2x8xf32>
    %263 = vector.shape_cast %262 : vector<2x8xf32> to vector<2x8x1xf32>
    %264 = vector.broadcast %263 : vector<2x8x1xf32> to vector<2x8x8xf32>
    %265 = arith.subf %261, %264 : vector<2x8x8xf32>
    %266 = math.exp %265 : vector<2x8x8xf32>
    %cst_124 = arith.constant dense<0.000000e+00> : vector<2x8xf32>
    %267 = vector.multi_reduction <add>, %266, %cst_124 [2] : vector<2x8x8xf32> to vector<2x8xf32>
    %268 = vector.shape_cast %267 : vector<2x8xf32> to vector<2x8x1xf32>
    %269 = tpu.reciprocal %268 {approx = true} : vector<2x8x1xf32> -> vector<2x8x1xf32>
    %270 = vector.broadcast %269 : vector<2x8x1xf32> to vector<2x8x8xf32>
    %271 = arith.mulf %266, %270 : vector<2x8x8xf32>
    "tpu.trace_start"() <{level = 10 : i32, message = "bqk,bkd->bqd"}> : () -> ()
    %cst_125 = arith.constant dense<0.000000e+00> : vector<2x8x8xf32>
    %272 = tpu.matmul %271, %258, %cst_125 {dimension_numbers = #tpu.dot_dimension_numbers<[2], [1], [1], [2], [0, 0, 0, 1, 1, 2], [0], [0]>} : vector<2x8x8xf32>, vector<2x8x8xf32>, vector<2x8x8xf32> -> vector<2x8x8xf32>
    "tpu.trace_stop"() : () -> ()
    %273 = vector.shape_cast %272 : vector<2x8x8xf32> to vector<16x8xf32>
    %274 = vector.extract_strided_slice %188 {offsets = [16, 0], sizes = [8, 32], strides = [1, 1]} : vector<32x32xf32> to vector<8x32xf32>
    %cst_126 = arith.constant dense<0.000000e+00> : vector<16x32xf32>
    %275 = tpu.matmul %273, %274, %cst_126 {dimension_numbers = #tpu.dot_dimension_numbers<[1], [0], [0], [1], [0, 0, 1, 1], [], []>} : vector<16x8xf32>, vector<8x32xf32>, vector<16x32xf32> -> vector<16x32xf32>
    %276 = arith.addf %255, %275 : vector<16x32xf32>
    %277 = vector.extract_strided_slice %210 {offsets = [0, 0, 24], sizes = [2, 8, 8], strides = [1, 1, 1]} : vector<2x8x32xf32> to vector<2x8x8xf32>
    %278 = vector.extract_strided_slice %211 {offsets = [0, 0, 24], sizes = [2, 8, 8], strides = [1, 1, 1]} : vector<2x8x32xf32> to vector<2x8x8xf32>
    %279 = vector.extract_strided_slice %212 {offsets = [0, 0, 24], sizes = [2, 8, 8], strides = [1, 1, 1]} : vector<2x8x32xf32> to vector<2x8x8xf32>
    "tpu.trace_start"() <{level = 10 : i32, message = "bqd,bkd->bqk"}> : () -> ()
    %cst_127 = arith.constant dense<0.000000e+00> : vector<2x8x8xf32>
    %280 = tpu.matmul %277, %278, %cst_127 {dimension_numbers = #tpu.dot_dimension_numbers<[2], [2], [1], [1], [0, 0, 0, 1, 1, 1], [0], [0]>} : vector<2x8x8xf32>, vector<2x8x8xf32>, vector<2x8x8xf32> -> vector<2x8x8xf32>
    "tpu.trace_stop"() : () -> ()
    %281 = vector.broadcast %1 : vector<2x1x8xf32> to vector<2x8x8xf32>
    %282 = arith.addf %280, %281 : vector<2x8x8xf32>
    %cst_128 = arith.constant dense<0xFF800000> : vector<2x8xf32>
    %283 = vector.multi_reduction <maximumf>, %282, %cst_128 [2] : vector<2x8x8xf32> to vector<2x8xf32>
    %284 = vector.shape_cast %283 : vector<2x8xf32> to vector<2x8x1xf32>
    %285 = vector.broadcast %284 : vector<2x8x1xf32> to vector<2x8x8xf32>
    %286 = arith.subf %282, %285 : vector<2x8x8xf32>
    %287 = math.exp %286 : vector<2x8x8xf32>
    %cst_129 = arith.constant dense<0.000000e+00> : vector<2x8xf32>
    %288 = vector.multi_reduction <add>, %287, %cst_129 [2] : vector<2x8x8xf32> to vector<2x8xf32>
    %289 = vector.shape_cast %288 : vector<2x8xf32> to vector<2x8x1xf32>
    %290 = tpu.reciprocal %289 {approx = true} : vector<2x8x1xf32> -> vector<2x8x1xf32>
    %291 = vector.broadcast %290 : vector<2x8x1xf32> to vector<2x8x8xf32>
    %292 = arith.mulf %287, %291 : vector<2x8x8xf32>
    "tpu.trace_start"() <{level = 10 : i32, message = "bqk,bkd->bqd"}> : () -> ()
    %cst_130 = arith.constant dense<0.000000e+00> : vector<2x8x8xf32>
    %293 = tpu.matmul %292, %279, %cst_130 {dimension_numbers = #tpu.dot_dimension_numbers<[2], [1], [1], [2], [0, 0, 0, 1, 1, 2], [0], [0]>} : vector<2x8x8xf32>, vector<2x8x8xf32>, vector<2x8x8xf32> -> vector<2x8x8xf32>
    "tpu.trace_stop"() : () -> ()
    %294 = vector.shape_cast %293 : vector<2x8x8xf32> to vector<16x8xf32>
    %295 = vector.extract_strided_slice %188 {offsets = [24, 0], sizes = [8, 32], strides = [1, 1]} : vector<32x32xf32> to vector<8x32xf32>
    %cst_131 = arith.constant dense<0.000000e+00> : vector<16x32xf32>
    %296 = tpu.matmul %294, %295, %cst_131 {dimension_numbers = #tpu.dot_dimension_numbers<[1], [0], [0], [1], [0, 0, 1, 1], [], []>} : vector<16x8xf32>, vector<8x32xf32>, vector<16x32xf32> -> vector<16x32xf32>
    %297 = arith.addf %276, %296 : vector<16x32xf32>
    %c1_132 = arith.constant 1 : index
    %c0_133 = arith.constant 0 : index
    %c0_134 = arith.constant 0 : index
    %298 = vector.load %arg9[%c1_132, %c0_133, %c0_134] : memref<2x1x32xf32, #tpu.memory_space<vmem>>, vector<1x1x32xf32>
    %299 = vector.shape_cast %298 : vector<1x1x32xf32> to vector<1x32xf32>
    %300 = vector.broadcast %299 : vector<1x32xf32> to vector<16x32xf32>
    %301 = arith.addf %297, %300 : vector<16x32xf32>
    %302 = arith.addf %186, %301 : vector<16x32xf32>
    %c1_135 = arith.constant 1 : index
    %c0_136 = arith.constant 0 : index
    %c0_137 = arith.constant 0 : index
    %303 = vector.load %arg10[%c1_135, %c0_136, %c0_137] : memref<2x1x32xf32, #tpu.memory_space<vmem>>, vector<1x1x32xf32>
    %304 = vector.shape_cast %303 : vector<1x1x32xf32> to vector<1x32xf32>
    %c1_138 = arith.constant 1 : index
    %c0_139 = arith.constant 0 : index
    %c0_140 = arith.constant 0 : index
    %305 = vector.load %arg11[%c1_138, %c0_139, %c0_140] : memref<2x1x32xf32, #tpu.memory_space<vmem>>, vector<1x1x32xf32>
    %306 = vector.shape_cast %305 : vector<1x1x32xf32> to vector<1x32xf32>
    %cst_141 = arith.constant dense<0.000000e+00> : vector<16xf32>
    %307 = vector.multi_reduction <add>, %302, %cst_141 [1] : vector<16x32xf32> to vector<16xf32>
    %308 = vector.shape_cast %307 : vector<16xf32> to vector<16x1xf32>
    %cst_142 = arith.constant 3.200000e+01 : f32
    %309 = vector.broadcast %cst_142 : f32 to vector<16x1xf32>
    %310 = arith.divf %308, %309 : vector<16x1xf32>
    %311 = arith.mulf %302, %302 : vector<16x32xf32>
    %cst_143 = arith.constant dense<0.000000e+00> : vector<16xf32>
    %312 = vector.multi_reduction <add>, %311, %cst_143 [1] : vector<16x32xf32> to vector<16xf32>
    %313 = vector.shape_cast %312 : vector<16xf32> to vector<16x1xf32>
    %cst_144 = arith.constant 3.200000e+01 : f32
    %314 = vector.broadcast %cst_144 : f32 to vector<16x1xf32>
    %315 = arith.divf %313, %314 : vector<16x1xf32>
    %316 = arith.mulf %310, %310 : vector<16x1xf32>
    %317 = arith.subf %315, %316 : vector<16x1xf32>
    %318 = vector.broadcast %310 : vector<16x1xf32> to vector<16x32xf32>
    %319 = arith.subf %302, %318 : vector<16x32xf32>
    %cst_145 = arith.constant 9.99999974E-6 : f32
    %320 = vector.broadcast %cst_145 : f32 to vector<16x1xf32>
    %321 = arith.addf %317, %320 : vector<16x1xf32>
    %322 = math.rsqrt %321 : vector<16x1xf32>
    %323 = vector.broadcast %322 : vector<16x1xf32> to vector<16x32xf32>
    %324 = arith.mulf %319, %323 : vector<16x32xf32>
    %325 = vector.broadcast %304 : vector<1x32xf32> to vector<16x32xf32>
    %326 = arith.mulf %324, %325 : vector<16x32xf32>
    %327 = vector.broadcast %306 : vector<1x32xf32> to vector<16x32xf32>
    %328 = arith.addf %326, %327 : vector<16x32xf32>
    %c1_146 = arith.constant 1 : index
    %c0_147 = arith.constant 0 : index
    %c0_148 = arith.constant 0 : index
    %329 = vector.load %arg14[%c1_146, %c0_147, %c0_148] : memref<2x32x64xf32, #tpu.memory_space<vmem>>, vector<1x32x64xf32>
    %330 = vector.shape_cast %329 : vector<1x32x64xf32> to vector<32x64xf32>
    %cst_149 = arith.constant dense<0.000000e+00> : vector<16x64xf32>
    %331 = tpu.matmul %328, %330, %cst_149 {dimension_numbers = #tpu.dot_dimension_numbers<[1], [0], [0], [1], [0, 0, 1, 1], [], []>} : vector<16x32xf32>, vector<32x64xf32>, vector<16x64xf32> -> vector<16x64xf32>
    %c1_150 = arith.constant 1 : index
    %c0_151 = arith.constant 0 : index
    %c0_152 = arith.constant 0 : index
    %332 = vector.load %arg15[%c1_150, %c0_151, %c0_152] : memref<2x1x64xf32, #tpu.memory_space<vmem>>, vector<1x1x64xf32>
    %333 = vector.shape_cast %332 : vector<1x1x64xf32> to vector<1x64xf32>
    %334 = vector.broadcast %333 : vector<1x64xf32> to vector<16x64xf32>
    %335 = arith.addf %331, %334 : vector<16x64xf32>
    %cst_153 = arith.constant 0.000000e+00 : f32
    %336 = vector.broadcast %cst_153 : f32 to vector<16x64xf32>
    %337 = arith.maximumf %335, %336 : vector<16x64xf32>
    %c1_154 = arith.constant 1 : index
    %c0_155 = arith.constant 0 : index
    %c0_156 = arith.constant 0 : index
    %338 = vector.load %arg16[%c1_154, %c0_155, %c0_156] : memref<2x64x32xf32, #tpu.memory_space<vmem>>, vector<1x64x32xf32>
    %339 = vector.shape_cast %338 : vector<1x64x32xf32> to vector<64x32xf32>
    %cst_157 = arith.constant dense<0.000000e+00> : vector<16x32xf32>
    %340 = tpu.matmul %337, %339, %cst_157 {dimension_numbers = #tpu.dot_dimension_numbers<[1], [0], [0], [1], [0, 0, 1, 1], [], []>} : vector<16x64xf32>, vector<64x32xf32>, vector<16x32xf32> -> vector<16x32xf32>
    %c1_158 = arith.constant 1 : index
    %c0_159 = arith.constant 0 : index
    %c0_160 = arith.constant 0 : index
    %341 = vector.load %arg17[%c1_158, %c0_159, %c0_160] : memref<2x1x32xf32, #tpu.memory_space<vmem>>, vector<1x1x32xf32>
    %342 = vector.shape_cast %341 : vector<1x1x32xf32> to vector<1x32xf32>
    %343 = vector.broadcast %342 : vector<1x32xf32> to vector<16x32xf32>
    %344 = arith.addf %340, %343 : vector<16x32xf32>
    %345 = arith.addf %328, %344 : vector<16x32xf32>
    %c1_161 = arith.constant 1 : index
    %c0_162 = arith.constant 0 : index
    %c0_163 = arith.constant 0 : index
    %346 = vector.load %arg12[%c1_161, %c0_162, %c0_163] : memref<2x1x32xf32, #tpu.memory_space<vmem>>, vector<1x1x32xf32>
    %347 = vector.shape_cast %346 : vector<1x1x32xf32> to vector<1x32xf32>
    %c1_164 = arith.constant 1 : index
    %c0_165 = arith.constant 0 : index
    %c0_166 = arith.constant 0 : index
    %348 = vector.load %arg13[%c1_164, %c0_165, %c0_166] : memref<2x1x32xf32, #tpu.memory_space<vmem>>, vector<1x1x32xf32>
    %349 = vector.shape_cast %348 : vector<1x1x32xf32> to vector<1x32xf32>
    %cst_167 = arith.constant dense<0.000000e+00> : vector<16xf32>
    %350 = vector.multi_reduction <add>, %345, %cst_167 [1] : vector<16x32xf32> to vector<16xf32>
    %351 = vector.shape_cast %350 : vector<16xf32> to vector<16x1xf32>
    %cst_168 = arith.constant 3.200000e+01 : f32
    %352 = vector.broadcast %cst_168 : f32 to vector<16x1xf32>
    %353 = arith.divf %351, %352 : vector<16x1xf32>
    %354 = arith.mulf %345, %345 : vector<16x32xf32>
    %cst_169 = arith.constant dense<0.000000e+00> : vector<16xf32>
    %355 = vector.multi_reduction <add>, %354, %cst_169 [1] : vector<16x32xf32> to vector<16xf32>
    %356 = vector.shape_cast %355 : vector<16xf32> to vector<16x1xf32>
    %cst_170 = arith.constant 3.200000e+01 : f32
    %357 = vector.broadcast %cst_170 : f32 to vector<16x1xf32>
    %358 = arith.divf %356, %357 : vector<16x1xf32>
    %359 = arith.mulf %353, %353 : vector<16x1xf32>
    %360 = arith.subf %358, %359 : vector<16x1xf32>
    %361 = vector.broadcast %353 : vector<16x1xf32> to vector<16x32xf32>
    %362 = arith.subf %345, %361 : vector<16x32xf32>
    %cst_171 = arith.constant 9.99999974E-6 : f32
    %363 = vector.broadcast %cst_171 : f32 to vector<16x1xf32>
    %364 = arith.addf %360, %363 : vector<16x1xf32>
    %365 = math.rsqrt %364 : vector<16x1xf32>
    %366 = vector.broadcast %365 : vector<16x1xf32> to vector<16x32xf32>
    %367 = arith.mulf %362, %366 : vector<16x32xf32>
    %368 = vector.broadcast %347 : vector<1x32xf32> to vector<16x32xf32>
    %369 = arith.mulf %367, %368 : vector<16x32xf32>
    %370 = vector.broadcast %349 : vector<1x32xf32> to vector<16x32xf32>
    %371 = arith.addf %369, %370 : vector<16x32xf32>
    %372 = vector.shape_cast %371 : vector<16x32xf32> to vector<2x8x32xf32>
    %373 = vector.extract_strided_slice %372 {offsets = [0, 0, 0], sizes = [2, 1, 32], strides = [1, 1, 1]} : vector<2x8x32xf32> to vector<2x1x32xf32>
    %374 = vector.shape_cast %373 : vector<2x1x32xf32> to vector<2x32xf32>
    %c0_172 = arith.constant 0 : index
    %c0_173 = arith.constant 0 : index
    %375 = vector.load %arg18[%c0_172, %c0_173] : memref<2x32xf32, #tpu.memory_space<vmem>>, vector<2x32xf32>
    tpu.vector_store %arg18[%c0_172, %c0_173], %374 {strides = array<i32>} : memref<2x32xf32, #tpu.memory_space<vmem>>, vector<2x32xf32>,
    return
  }
}

</mosaic_0001>

<llo_original>
// kernel: tpu_custom_call.1
$region0: #{tpu_custom_call.1}
  #allocation0 [shape = 'u32[]', space=smem, size = 0x4, offset = 0x4, fixed_abs, tag = 'smem constant byte address 0x4 - core index']
  #allocation1 [shape = 'u32[144,128]{1,0:T(1,128)}', space=vmem, size = 0x12000, scoped, tag = 'internal scratch']
  %s0 = inlined_call_operand.hbm [shape: f32[16,32], index: 0, kind: input, shape index: {}]
  %s1 = inlined_call_operand.vmem [shape: f32[2,1,8], index: 1, kind: input, shape index: {}]
  %s2 = inlined_call_operand.vmem [shape: f32[2,32,32], index: 2, kind: input, shape index: {}]
  %s3 = inlined_call_operand.vmem [shape: f32[2,1,32], index: 3, kind: input, shape index: {}]
  %s4 = inlined_call_operand.vmem [shape: f32[2,32,32], index: 4, kind: input, shape index: {}]
  %s5 = inlined_call_operand.vmem [shape: f32[2,1,32], index: 5, kind: input, shape index: {}]
  %s6 = inlined_call_operand.vmem [shape: f32[2,32,32], index: 6, kind: input, shape index: {}]
  %s7 = inlined_call_operand.vmem [shape: f32[2,1,32], index: 7, kind: input, shape index: {}]
  %s8 = inlined_call_operand.hbm [shape: f32[2,32,32], index: 8, kind: input, shape index: {}]
  %s9 = inlined_call_operand.vmem [shape: f32[2,1,32], index: 9, kind: input, shape index: {}]
  %s10 = inlined_call_operand.vmem [shape: f32[2,1,32], index: 10, kind: input, shape index: {}]
  %s11 = inlined_call_operand.vmem [shape: f32[2,1,32], index: 11, kind: input, shape index: {}]
  %s12 = inlined_call_operand.vmem [shape: f32[2,1,32], index: 12, kind: input, shape index: {}]
  %s13 = inlined_call_operand.vmem [shape: f32[2,1,32], index: 13, kind: input, shape index: {}]
  %s14 = inlined_call_operand.hbm [shape: f32[2,32,64], index: 14, kind: input, shape index: {}]
  %s15 = inlined_call_operand.vmem [shape: f32[2,1,64], index: 15, kind: input, shape index: {}]
  %s16 = inlined_call_operand.vmem [shape: f32[2,64,32], index: 16, kind: input, shape index: {}]
  %s17 = inlined_call_operand.vmem [shape: f32[2,1,32], index: 17, kind: input, shape index: {}]
  %s18 = inlined_call_operand.hbm [shape: f32[2,32], index: 18, kind: output, shape index: {}]
  %s19 = sld [smem:[#allocation0]]
  $region94: #{tpu_custom_call.1} parent=0
    _
  %s21 = ssub.s32 1, %s19
  %s22 = scalar_select 0, %s21, %s19
  $region1: #{tpu_custom_call.1} parent=0
    #allocation2 [shape = 'u8[8192]{0}', space=vmem, size = 0x2000, scoped, tag = 'input window, operand 0, single buffered']
    #allocation3 [shape = 's32[1]{0}', space=sflag, size = 0x4, scoped, tag = 'scoped memory for tpu_custom_call.1']
    #allocation4 [shape = 's32[1]{0}', space=sflag, size = 0x4, scoped, tag = 'scoped memory for tpu_custom_call.1']
    #allocation5 [shape = 'u8[32768]{0}', space=vmem, size = 0x8000, scoped, tag = 'input window, operand 8, single buffered']
    #allocation6 [shape = 's32[1]{0}', space=sflag, size = 0x4, scoped, tag = 'scoped memory for tpu_custom_call.1']
    #allocation7 [shape = 'u8[32768]{0}', space=vmem, size = 0x8000, scoped, tag = 'input window, operand 14, single buffered']
    #allocation8 [shape = 'u8[1024]{0}', space=vmem, size = 0x400, scoped, tag = 'output window, operand 0, single buffered']
    %23 = vsyncpa [#allocation3], 0
    %24 = vsyncpa [#allocation6], 0
    %25 = vsyncpa [#allocation4], 0
    // Predicated region
    $region2: #{tpu_custom_call.1} parent=1 // pred_check
      _
    $region3: #{tpu_custom_call.1} parent=1 // pred_check_branch
      %27 = sbr.rel (0) target = $region5
    $region4: #{tpu_custom_call.1} parent=1 // pred_region
      %s29 = ssub.s32 256, 256
      %30 = vsyncadd [#allocation3], %s29
      %s31 = sshll.u32 [#allocation2], 4
      %s32 = int_to_ptr.vmem [resolvable:$true] %s31
      %37 = dma.hbm_to_vmem [thread:$0]  %s0, 256, %s32, [#allocation3], 128, 128, 8
    $region5: #{tpu_custom_call.1} parent=1 // pred_fallthru
      _
    // Predicated region
    $region6: #{tpu_custom_call.1} parent=1 // pred_check
      _
    $region7: #{tpu_custom_call.1} parent=1 // pred_check_branch
      %39 = sbr.rel (0) target = $region9
    $region8: #{tpu_custom_call.1} parent=1 // pred_region
      _
    $region9: #{tpu_custom_call.1} parent=1 // pred_fallthru
      _
    // Predicated region
    $region10: #{tpu_custom_call.1} parent=1 // pred_check
      _
    $region11: #{tpu_custom_call.1} parent=1 // pred_check_branch
      %41 = sbr.rel (0) target = $region13
    $region12: #{tpu_custom_call.1} parent=1 // pred_region
      _
    $region13: #{tpu_custom_call.1} parent=1 // pred_fallthru
      _
    // Predicated region
    $region14: #{tpu_custom_call.1} parent=1 // pred_check
      _
    $region15: #{tpu_custom_call.1} parent=1 // pred_check_branch
      %43 = sbr.rel (0) target = $region17
    $region16: #{tpu_custom_call.1} parent=1 // pred_region
      _
    $region17: #{tpu_custom_call.1} parent=1 // pred_fallthru
      _
    // Predicated region
    $region18: #{tpu_custom_call.1} parent=1 // pred_check
      _
    $region19: #{tpu_custom_call.1} parent=1 // pred_check_branch
      %45 = sbr.rel (0) target = $region21
    $region20: #{tpu_custom_call.1} parent=1 // pred_region
      _
    $region21: #{tpu_custom_call.1} parent=1 // pred_fallthru
      _
    // Predicated region
    $region22: #{tpu_custom_call.1} parent=1 // pred_check
      _
    $region23: #{tpu_custom_call.1} parent=1 // pred_check_branch
      %47 = sbr.rel (0) target = $region25
    $region24: #{tpu_custom_call.1} parent=1 // pred_region
      _
    $region25: #{tpu_custom_call.1} parent=1 // pred_fallthru
      _
    // Predicated region
    $region26: #{tpu_custom_call.1} parent=1 // pred_check
      _
    $region27: #{tpu_custom_call.1} parent=1 // pred_check_branch
      %49 = sbr.rel (0) target = $region29
    $region28: #{tpu_custom_call.1} parent=1 // pred_region
      _
    $region29: #{tpu_custom_call.1} parent=1 // pred_fallthru
      _
    // Predicated region
    $region30: #{tpu_custom_call.1} parent=1 // pred_check
      _
    $region31: #{tpu_custom_call.1} parent=1 // pred_check_branch
      %51 = sbr.rel (0) target = $region33
    $region32: #{tpu_custom_call.1} parent=1 // pred_region
      _
    $region33: #{tpu_custom_call.1} parent=1 // pred_fallthru
      _
    // Predicated region
    $region34: #{tpu_custom_call.1} parent=1 // pred_check
      _
    $region35: #{tpu_custom_call.1} parent=1 // pred_check_branch
      %53 = sbr.rel (0) target = $region37
    $region36: #{tpu_custom_call.1} parent=1 // pred_region
      %s55 = ssub.s32 1024, 1024
      %56 = vsyncadd [#allocation6], %s55
      %s57 = sshll.u32 [#allocation5], 4
      %s58 = int_to_ptr.vmem [resolvable:$true] %s57
      %63 = dma.hbm_to_vmem [thread:$0]  %s8, 1024, %s58, [#allocation6], 128, 128, 8
    $region37: #{tpu_custom_call.1} parent=1 // pred_fallthru
      _
    // Predicated region
    $region38: #{tpu_custom_call.1} parent=1 // pred_check
      _
    $region39: #{tpu_custom_call.1} parent=1 // pred_check_branch
      %65 = sbr.rel (0) target = $region41
    $region40: #{tpu_custom_call.1} parent=1 // pred_region
      _
    $region41: #{tpu_custom_call.1} parent=1 // pred_fallthru
      _
    // Predicated region
    $region42: #{tpu_custom_call.1} parent=1 // pred_check
      _
    $region43: #{tpu_custom_call.1} parent=1 // pred_check_branch
      %67 = sbr.rel (0) target = $region45
    $region44: #{tpu_custom_call.1} parent=1 // pred_region
      _
    $region45: #{tpu_custom_call.1} parent=1 // pred_fallthru
      _
    // Predicated region
    $region46: #{tpu_custom_call.1} parent=1 // pred_check
      _
    $region47: #{tpu_custom_call.1} parent=1 // pred_check_branch
      %69 = sbr.rel (0) target = $region49
    $region48: #{tpu_custom_call.1} parent=1 // pred_region
      _
    $region49: #{tpu_custom_call.1} parent=1 // pred_fallthru
      _
    // Predicated region
    $region50: #{tpu_custom_call.1} parent=1 // pred_check
      _
    $region51: #{tpu_custom_call.1} parent=1 // pred_check_branch
      %71 = sbr.rel (0) target = $region53
    $region52: #{tpu_custom_call.1} parent=1 // pred_region
      _
    $region53: #{tpu_custom_call.1} parent=1 // pred_fallthru
      _
    // Predicated region
    $region54: #{tpu_custom_call.1} parent=1 // pred_check
      _
    $region55: #{tpu_custom_call.1} parent=1 // pred_check_branch
      %73 = sbr.rel (0) target = $region57
    $region56: #{tpu_custom_call.1} parent=1 // pred_region
      _
    $region57: #{tpu_custom_call.1} parent=1 // pred_fallthru
      _
    // Predicated region
    $region58: #{tpu_custom_call.1} parent=1 // pred_check
      _
    $region59: #{tpu_custom_call.1} parent=1 // pred_check_branch
      %75 = sbr.rel (0) target = $region61
    $region60: #{tpu_custom_call.1} parent=1 // pred_region
      %s77 = ssub.s32 1024, 1024
      %78 = vsyncadd [#allocation6], %s77
      %s79 = sshll.u32 [#allocation7], 4
      %s80 = int_to_ptr.vmem [resolvable:$true] %s79
      %85 = dma.hbm_to_vmem [thread:$0]  %s14, 1024, %s80, [#allocation6], 128, 128, 8
    $region61: #{tpu_custom_call.1} parent=1 // pred_fallthru
      _
    // Predicated region
    $region62: #{tpu_custom_call.1} parent=1 // pred_check
      _
    $region63: #{tpu_custom_call.1} parent=1 // pred_check_branch
      %87 = sbr.rel (0) target = $region65
    $region64: #{tpu_custom_call.1} parent=1 // pred_region
      _
    $region65: #{tpu_custom_call.1} parent=1 // pred_fallthru
      _
    // Predicated region
    $region66: #{tpu_custom_call.1} parent=1 // pred_check
      _
    $region67: #{tpu_custom_call.1} parent=1 // pred_check_branch
      %89 = sbr.rel (0) target = $region69
    $region68: #{tpu_custom_call.1} parent=1 // pred_region
      _
    $region69: #{tpu_custom_call.1} parent=1 // pred_fallthru
      _
    // Predicated region
    $region70: #{tpu_custom_call.1} parent=1 // pred_check
      _
    $region71: #{tpu_custom_call.1} parent=1 // pred_check_branch
      %91 = sbr.rel (0) target = $region73
    $region72: #{tpu_custom_call.1} parent=1 // pred_region
      _
    $region73: #{tpu_custom_call.1} parent=1 // pred_fallthru
      _
    // Predicated region
    $region74: #{tpu_custom_call.1} parent=1 // pred_check
      _
    $region75: #{tpu_custom_call.1} parent=1 // pred_check_branch
      %93 = sbr.rel (0) target = $region77
    $region76: #{tpu_custom_call.1} parent=1 // pred_region
      %94 = dma.done [#allocation3], 256
    $region77: #{tpu_custom_call.1} parent=1 // pred_fallthru
      _
    // Predicated region
    $region78: #{tpu_custom_call.1} parent=1 // pred_check
      _
    $region79: #{tpu_custom_call.1} parent=1 // pred_check_branch
      %96 = sbr.rel (0) target = $region81
    $region80: #{tpu_custom_call.1} parent=1 // pred_region
      %97 = dma.done [#allocation6], 1024
    $region81: #{tpu_custom_call.1} parent=1 // pred_fallthru
      _
    // Predicated region
    $region82: #{tpu_custom_call.1} parent=1 // pred_check
      _
    $region83: #{tpu_custom_call.1} parent=1 // pred_check_branch
      %99 = sbr.rel (0) target = $region85
    $region84: #{tpu_custom_call.1} parent=1 // pred_region
      %100 = dma.done [#allocation6], 1024
    $region85: #{tpu_custom_call.1} parent=1 // pred_fallthru
      _
    %v101 = vld [vmem:[#allocation2] sm:$0xff]
    %v102 = vld [vmem:[#allocation2 + $0x8] sm:$0xff]
    %v103 = vld [vmem:[%s1] sm:$0x1]
    %v104 = vld [vmem:[%s1 + $0x1] sm:$0x1]
    %v105 = vld [vmem:[#allocation5] sm:$0xff]
    %v106 = vld [vmem:[#allocation5 + $0x8] sm:$0xff]
    %v107 = vld [vmem:[#allocation5 + $0x10] sm:$0xff]
    %v108 = vld [vmem:[#allocation5 + $0x18] sm:$0xff]
    %v109 = vld [vmem:[%s2] sm:$0xff]
    %v110 = vld [vmem:[%s2 + $0x8] sm:$0xff]
    %v111 = vld [vmem:[%s2 + $0x10] sm:$0xff]
    %v112 = vld [vmem:[%s2 + $0x18] sm:$0xff]
    %v113 = vld [vmem:[%s3] sm:$0x1]
    %v115 = vlaneseq
    %v116 = vshrl.u32 %v115, 7
    %v117 = vsub.s32 0, %v116
    %v118 = vrot.slane %v113, %v117
    %vm120 = vcmask 261120
    %v122 = vsel %vm120, %v101, 0
    %v125 = vsel %vm120, %v102, 0
    %127 = vmatprep.subr.mxu0 0.0
    %128 = vmatpush1.msra.mxu0 %v109
    %129 = vmatprep.subr.mxu0 0.0
    %130 = vmatpush1.msra.mxu0 %v110
    %131 = vmatprep.subr.mxu0 0.0
    %132 = vmatpush1.msra.mxu0 %v111
    %133 = vmatprep.subr.mxu0 0.0
    %134 = vmatpush1.msra.mxu0 %v112
    %135 = vmatprep.subr.mxu0 0.0
    %136 = vmatpush1.msra.mxu0 0.0
    %137 = vmatprep.subr.mxu0 0.0
    %138 = vmatpush1.msra.mxu0 0.0
    %139 = vmatprep.subr.mxu0 0.0
    %140 = vmatpush1.msra.mxu0 0.0
    %141 = vmatprep.subr.mxu0 0.0
    %142 = vmatpush1.msra.mxu0 0.0
    %143 = vmatprep.subr.mxu0 0.0
    %144 = vmatpush1.msra.mxu0 0.0
    %145 = vmatprep.subr.mxu0 0.0
    %146 = vmatpush1.msra.mxu0 0.0
    %147 = vmatprep.subr.mxu0 0.0
    %148 = vmatpush1.msra.mxu0 0.0
    %149 = vmatprep.subr.mxu0 0.0
    %150 = vmatpush1.msra.mxu0 0.0
    %151 = vmatprep.subr.mxu0 0.0
    %152 = vmatpush1.msra.mxu0 0.0
    %153 = vmatprep.subr.mxu0 0.0
    %154 = vmatpush1.msra.mxu0 0.0
    %155 = vmatprep.subr.mxu0 0.0
    %156 = vmatpush1.msra.mxu0 0.0
    %157 = vmatprep.subr.mxu0 0.0
    %158 = vmatpush1.msra.mxu0 0.0
    %159 = vmatprep.subr.mxu0 0.0
    %160 = vmatpush1.msra.mxu0 0.0
    %161 = vmatprep.subr.mxu0 0.0
    %162 = vmatpush1.msra.mxu0 0.0
    %163 = vmatprep.subr.mxu0 0.0
    %164 = vmatpush1.msra.mxu0 0.0
    %165 = vmatprep.subr.mxu0 0.0
    %166 = vmatpush1.msra.mxu0 0.0
    %167 = vmatprep.subr.mxu0 0.0
    %168 = vmatpush1.msra.mxu0 0.0
    %169 = vmatprep.subr.mxu0 0.0
    %170 = vmatpush1.msra.mxu0 0.0
    %171 = vmatprep.subr.mxu0 0.0
    %172 = vmatpush1.msra.mxu0 0.0
    %173 = vmatprep.subr.mxu0 0.0
    %174 = vmatpush1.msra.mxu0 0.0
    %175 = vmatprep.subr.mxu0 0.0
    %176 = vmatpush1.msra.mxu0 0.0
    %177 = vmatprep.subr.mxu0 0.0
    %178 = vmatpush1.msra.mxu0 0.0
    %179 = vmatprep.subr.mxu0 0.0
    %180 = vmatpush1.msra.mxu0 0.0
    %181 = vmatprep.subr.mxu0 0.0
    %182 = vmatpush1.msra.mxu0 0.0
    %183 = vmatprep.subr.mxu0 0.0
    %184 = vmatpush1.msra.mxu0 0.0
    %185 = vmatprep.subr.mxu0 0.0
    %186 = vmatpush1.msra.mxu0 0.0
    %187 = vmatprep.subr.mxu0 0.0
    %188 = vmatpush1.msra.mxu0 0.0
    %189 = vmatprep.subr.mxu0 0.0
    %190 = vmatpush1.msra.mxu0 0.0
    %191 = vmatprep.mubr.f32.mxu0 0.0
    %192 = vmatmul.mubr.f32.gmra.mrb[0].mxu0 %v122
    %v193 = vpop.f32.mrb[0].mxu0
    %v194 = vadd.f32 %v118, %v193
    %v195 = vpop.f32.mrb[0].mxu0
    %196 = vmatprep.mubr.f32.mxu0 0.0
    %197 = vmatmul.mubr.f32.gmra.mrb[0].mxu0 %v125
    %v198 = vpop.f32.mrb[0].mxu0
    %v199 = vadd.f32 %v118, %v198
    %v200 = vpop.f32.mrb[0].mxu0
    %201 = vdwg.mxu0
    %v202 = vld [vmem:[%s4] sm:$0xff]
    %v203 = vld [vmem:[%s4 + $0x8] sm:$0xff]
    %v204 = vld [vmem:[%s4 + $0x10] sm:$0xff]
    %v205 = vld [vmem:[%s4 + $0x18] sm:$0xff]
    %v206 = vld [vmem:[%s5] sm:$0x1]
    %v208 = vlaneseq
    %v209 = vshrl.u32 %v208, 7
    %v210 = vsub.s32 0, %v209
    %v211 = vrot.slane %v206, %v210
    %213 = vmatprep.subr.mxu0 0.0
    %214 = vmatpush1.msra.mxu0 %v202
    %215 = vmatprep.subr.mxu0 0.0
    %216 = vmatpush1.msra.mxu0 %v203
    %217 = vmatprep.subr.mxu0 0.0
    %218 = vmatpush1.msra.mxu0 %v204
    %219 = vmatprep.subr.mxu0 0.0
    %220 = vmatpush1.msra.mxu0 %v205
    %221 = vmatprep.subr.mxu0 0.0
    %222 = vmatpush1.msra.mxu0 0.0
    %223 = vmatprep.subr.mxu0 0.0
    %224 = vmatpush1.msra.mxu0 0.0
    %225 = vmatprep.subr.mxu0 0.0
    %226 = vmatpush1.msra.mxu0 0.0
    %227 = vmatprep.subr.mxu0 0.0
    %228 = vmatpush1.msra.mxu0 0.0
    %229 = vmatprep.subr.mxu0 0.0
    %230 = vmatpush1.msra.mxu0 0.0
    %231 = vmatprep.subr.mxu0 0.0
    %232 = vmatpush1.msra.mxu0 0.0
    %233 = vmatprep.subr.mxu0 0.0
    %234 = vmatpush1.msra.mxu0 0.0
    %235 = vmatprep.subr.mxu0 0.0
    %236 = vmatpush1.msra.mxu0 0.0
    %237 = vmatprep.subr.mxu0 0.0
    %238 = vmatpush1.msra.mxu0 0.0
    %239 = vmatprep.subr.mxu0 0.0
    %240 = vmatpush1.msra.mxu0 0.0
    %241 = vmatprep.subr.mxu0 0.0
    %242 = vmatpush1.msra.mxu0 0.0
    %243 = vmatprep.subr.mxu0 0.0
    %244 = vmatpush1.msra.mxu0 0.0
    %245 = vmatprep.subr.mxu0 0.0
    %246 = vmatpush1.msra.mxu0 0.0
    %247 = vmatprep.subr.mxu0 0.0
    %248 = vmatpush1.msra.mxu0 0.0
    %249 = vmatprep.subr.mxu0 0.0
    %250 = vmatpush1.msra.mxu0 0.0
    %251 = vmatprep.subr.mxu0 0.0
    %252 = vmatpush1.msra.mxu0 0.0
    %253 = vmatprep.subr.mxu0 0.0
    %254 = vmatpush1.msra.mxu0 0.0
    %255 = vmatprep.subr.mxu0 0.0
    %256 = vmatpush1.msra.mxu0 0.0
    %257 = vmatprep.subr.mxu0 0.0
    %258 = vmatpush1.msra.mxu0 0.0
    %259 = vmatprep.subr.mxu0 0.0
    %260 = vmatpush1.msra.mxu0 0.0
    %261 = vmatprep.subr.mxu0 0.0
    %262 = vmatpush1.msra.mxu0 0.0
    %263 = vmatprep.subr.mxu0 0.0
    %264 = vmatpush1.msra.mxu0 0.0
    %265 = vmatprep.subr.mxu0 0.0
    %266 = vmatpush1.msra.mxu0 0.0
    %267 = vmatprep.subr.mxu0 0.0
    %268 = vmatpush1.msra.mxu0 0.0
    %269 = vmatprep.subr.mxu0 0.0
    %270 = vmatpush1.msra.mxu0 0.0
    %271 = vmatprep.subr.mxu0 0.0
    %272 = vmatpush1.msra.mxu0 0.0
    %273 = vmatprep.subr.mxu0 0.0
    %274 = vmatpush1.msra.mxu0 0.0
    %275 = vmatprep.subr.mxu0 0.0
    %276 = vmatpush1.msra.mxu0 0.0
    %277 = vmatprep.mubr.f32.mxu0 0.0
    %278 = vmatmul.mubr.f32.gmra.mrb[0].mxu0 %v122
    %v279 = vpop.f32.mrb[0].mxu0
    %v280 = vadd.f32 %v211, %v279
    %v281 = vpop.f32.mrb[0].mxu0
    %282 = vmatprep.mubr.f32.mxu0 0.0
    %283 = vmatmul.mubr.f32.gmra.mrb[0].mxu0 %v125
    %v284 = vpop.f32.mrb[0].mxu0
    %v285 = vadd.f32 %v211, %v284
    %v286 = vpop.f32.mrb[0].mxu0
    %287 = vdwg.mxu0
    %v288 = vld [vmem:[%s6] sm:$0xff]
    %v289 = vld [vmem:[%s6 + $0x8] sm:$0xff]
    %v290 = vld [vmem:[%s6 + $0x10] sm:$0xff]
    %v291 = vld [vmem:[%s6 + $0x18] sm:$0xff]
    %v292 = vld [vmem:[%s7] sm:$0x1]
    %v294 = vlaneseq
    %v295 = vshrl.u32 %v294, 7
    %v296 = vsub.s32 0, %v295
    %v297 = vrot.slane %v292, %v296
    %299 = vmatprep.subr.mxu0 0.0
    %300 = vmatpush1.msra.mxu0 %v288
    %301 = vmatprep.subr.mxu0 0.0
    %302 = vmatpush1.msra.mxu0 %v289
    %303 = vmatprep.subr.mxu0 0.0
    %304 = vmatpush1.msra.mxu0 %v290
    %305 = vmatprep.subr.mxu0 0.0
    %306 = vmatpush1.msra.mxu0 %v291
    %307 = vmatprep.subr.mxu0 0.0
    %308 = vmatpush1.msra.mxu0 0.0
    %309 = vmatprep.subr.mxu0 0.0
    %310 = vmatpush1.msra.mxu0 0.0
    %311 = vmatprep.subr.mxu0 0.0
    %312 = vmatpush1.msra.mxu0 0.0
    %313 = vmatprep.subr.mxu0 0.0
    %314 = vmatpush1.msra.mxu0 0.0
    %315 = vmatprep.subr.mxu0 0.0
    %316 = vmatpush1.msra.mxu0 0.0
    %317 = vmatprep.subr.mxu0 0.0
    %318 = vmatpush1.msra.mxu0 0.0
    %319 = vmatprep.subr.mxu0 0.0
    %320 = vmatpush1.msra.mxu0 0.0
    %321 = vmatprep.subr.mxu0 0.0
    %322 = vmatpush1.msra.mxu0 0.0
    %323 = vmatprep.subr.mxu0 0.0
    %324 = vmatpush1.msra.mxu0 0.0
    %325 = vmatprep.subr.mxu0 0.0
    %326 = vmatpush1.msra.mxu0 0.0
    %327 = vmatprep.subr.mxu0 0.0
    %328 = vmatpush1.msra.mxu0 0.0
    %329 = vmatprep.subr.mxu0 0.0
    %330 = vmatpush1.msra.mxu0 0.0
    %331 = vmatprep.subr.mxu0 0.0
    %332 = vmatpush1.msra.mxu0 0.0
    %333 = vmatprep.subr.mxu0 0.0
    %334 = vmatpush1.msra.mxu0 0.0
    %335 = vmatprep.subr.mxu0 0.0
    %336 = vmatpush1.msra.mxu0 0.0
    %337 = vmatprep.subr.mxu0 0.0
    %338 = vmatpush1.msra.mxu0 0.0
    %339 = vmatprep.subr.mxu0 0.0
    %340 = vmatpush1.msra.mxu0 0.0
    %341 = vmatprep.subr.mxu0 0.0
    %342 = vmatpush1.msra.mxu0 0.0
    %343 = vmatprep.subr.mxu0 0.0
    %344 = vmatpush1.msra.mxu0 0.0
    %345 = vmatprep.subr.mxu0 0.0
    %346 = vmatpush1.msra.mxu0 0.0
    %347 = vmatprep.subr.mxu0 0.0
    %348 = vmatpush1.msra.mxu0 0.0
    %349 = vmatprep.subr.mxu0 0.0
    %350 = vmatpush1.msra.mxu0 0.0
    %351 = vmatprep.subr.mxu0 0.0
    %352 = vmatpush1.msra.mxu0 0.0
    %353 = vmatprep.subr.mxu0 0.0
    %354 = vmatpush1.msra.mxu0 0.0
    %355 = vmatprep.subr.mxu0 0.0
    %356 = vmatpush1.msra.mxu0 0.0
    %357 = vmatprep.subr.mxu0 0.0
    %358 = vmatpush1.msra.mxu0 0.0
    %359 = vmatprep.subr.mxu0 0.0
    %360 = vmatpush1.msra.mxu0 0.0
    %361 = vmatprep.subr.mxu0 0.0
    %362 = vmatpush1.msra.mxu0 0.0
    %363 = vmatprep.mubr.f32.mxu0 0.0
    %364 = vmatmul.mubr.f32.gmra.mrb[0].mxu0 %v122
    %v365 = vpop.f32.mrb[0].mxu0
    %v366 = vadd.f32 %v297, %v365
    %v367 = vpop.f32.mrb[0].mxu0
    %368 = vmatprep.mubr.f32.mxu0 0.0
    %369 = vmatmul.mubr.f32.gmra.mrb[0].mxu0 %v125
    %v370 = vpop.f32.mrb[0].mxu0
    %v371 = vadd.f32 %v297, %v370
    %v372 = vpop.f32.mrb[0].mxu0
    %373 = vdwg.mxu0
    %v376 = vlaneseq
    %v377 = vshrl.u32 %v376, 7
    %v378 = vsub.s32 0, %v377
    %v379 = vrot.slane %v103, %v378
    %v380 = vlaneseq
    %v381 = vshrl.u32 %v380, 7
    %v382 = vsub.s32 0, %v381
    %v383 = vrot.slane %v104, %v382
    %vm386 = vcmask 64512
    %v388 = vsel %vm386, %v194, 0
    %v391 = vsel %vm386, %v280, 0
    %393 = vmatprep.subr.mxu0 0.0
    %394 = vmatpush1.xpose.msra.mxu0 %v391
    %395 = vmatprep.subr.mxu0 0.0
    %396 = vmatpush1.xpose.msra.mxu0 0.0
    %397 = vmatprep.subr.mxu0 0.0
    %398 = vmatpush1.xpose.msra.mxu0 0.0
    %399 = vmatprep.subr.mxu0 0.0
    %400 = vmatpush1.xpose.msra.mxu0 0.0
    %401 = vmatprep.subr.mxu0 0.0
    %402 = vmatpush1.xpose.msra.mxu0 0.0
    %403 = vmatprep.subr.mxu0 0.0
    %404 = vmatpush1.xpose.msra.mxu0 0.0
    %405 = vmatprep.subr.mxu0 0.0
    %406 = vmatpush1.xpose.msra.mxu0 0.0
    %407 = vmatprep.subr.mxu0 0.0
    %408 = vmatpush1.xpose.msra.mxu0 0.0
    %409 = vmatprep.subr.mxu0 0.0
    %410 = vmatpush1.xpose.msra.mxu0 0.0
    %411 = vmatprep.subr.mxu0 0.0
    %412 = vmatpush1.xpose.msra.mxu0 0.0
    %413 = vmatprep.subr.mxu0 0.0
    %414 = vmatpush1.xpose.msra.mxu0 0.0
    %415 = vmatprep.subr.mxu0 0.0
    %416 = vmatpush1.xpose.msra.mxu0 0.0
    %417 = vmatprep.subr.mxu0 0.0
    %418 = vmatpush1.xpose.msra.mxu0 0.0
    %419 = vmatprep.subr.mxu0 0.0
    %420 = vmatpush1.xpose.msra.mxu0 0.0
    %421 = vmatprep.subr.mxu0 0.0
    %422 = vmatpush1.xpose.msra.mxu0 0.0
    %423 = vmatprep.subr.mxu0 0.0
    %424 = vmatpush1.xpose.msra.mxu0 0.0
    %425 = vmatprep.subr.mxu0 0.0
    %426 = vmatpush1.xpose.msra.mxu0 0.0
    %427 = vmatprep.subr.mxu0 0.0
    %428 = vmatpush1.xpose.msra.mxu0 0.0
    %429 = vmatprep.subr.mxu0 0.0
    %430 = vmatpush1.xpose.msra.mxu0 0.0
    %431 = vmatprep.subr.mxu0 0.0
    %432 = vmatpush1.xpose.msra.mxu0 0.0
    %433 = vmatprep.subr.mxu0 0.0
    %434 = vmatpush1.xpose.msra.mxu0 0.0
    %435 = vmatprep.subr.mxu0 0.0
    %436 = vmatpush1.xpose.msra.mxu0 0.0
    %437 = vmatprep.subr.mxu0 0.0
    %438 = vmatpush1.xpose.msra.mxu0 0.0
    %439 = vmatprep.subr.mxu0 0.0
    %440 = vmatpush1.xpose.msra.mxu0 0.0
    %441 = vmatprep.subr.mxu0 0.0
    %442 = vmatpush1.xpose.msra.mxu0 0.0
    %443 = vmatprep.subr.mxu0 0.0
    %444 = vmatpush1.xpose.msra.mxu0 0.0
    %445 = vmatprep.subr.mxu0 0.0
    %446 = vmatpush1.xpose.msra.mxu0 0.0
    %447 = vmatprep.subr.mxu0 0.0
    %448 = vmatpush1.xpose.msra.mxu0 0.0
    %449 = vmatprep.subr.mxu0 0.0
    %450 = vmatpush1.xpose.msra.mxu0 0.0
    %451 = vmatprep.subr.mxu0 0.0
    %452 = vmatpush1.xpose.msra.mxu0 0.0
    %453 = vmatprep.subr.mxu0 0.0
    %454 = vmatpush1.xpose.msra.mxu0 0.0
    %455 = vmatprep.subr.mxu0 0.0
    %456 = vmatpush1.xpose.msra.mxu0 0.0
    %457 = vmatprep.mubr.f32.mxu0 0.0
    %458 = vmatmul.mubr.f32.gmra.mrb[0].mxu0 %v388
    %v459 = vpop.f32.mrb[0].mxu0
    %v460 = vadd.f32 %v379, %v459
    %v461 = vpop.f32.mrb[0].mxu0
    %462 = vdwg.mxu0
    %v464 = vsel %vm386, %v199, 0
    %v467 = vsel %vm386, %v285, 0
    %469 = vmatprep.subr.mxu0 0.0
    %470 = vmatpush1.xpose.msra.mxu0 %v467
    %471 = vmatprep.subr.mxu0 0.0
    %472 = vmatpush1.xpose.msra.mxu0 0.0
    %473 = vmatprep.subr.mxu0 0.0
    %474 = vmatpush1.xpose.msra.mxu0 0.0
    %475 = vmatprep.subr.mxu0 0.0
    %476 = vmatpush1.xpose.msra.mxu0 0.0
    %477 = vmatprep.subr.mxu0 0.0
    %478 = vmatpush1.xpose.msra.mxu0 0.0
    %479 = vmatprep.subr.mxu0 0.0
    %480 = vmatpush1.xpose.msra.mxu0 0.0
    %481 = vmatprep.subr.mxu0 0.0
    %482 = vmatpush1.xpose.msra.mxu0 0.0
    %483 = vmatprep.subr.mxu0 0.0
    %484 = vmatpush1.xpose.msra.mxu0 0.0
    %485 = vmatprep.subr.mxu0 0.0
    %486 = vmatpush1.xpose.msra.mxu0 0.0
    %487 = vmatprep.subr.mxu0 0.0
    %488 = vmatpush1.xpose.msra.mxu0 0.0
    %489 = vmatprep.subr.mxu0 0.0
    %490 = vmatpush1.xpose.msra.mxu0 0.0
    %491 = vmatprep.subr.mxu0 0.0
    %492 = vmatpush1.xpose.msra.mxu0 0.0
    %493 = vmatprep.subr.mxu0 0.0
    %494 = vmatpush1.xpose.msra.mxu0 0.0
    %495 = vmatprep.subr.mxu0 0.0
    %496 = vmatpush1.xpose.msra.mxu0 0.0
    %497 = vmatprep.subr.mxu0 0.0
    %498 = vmatpush1.xpose.msra.mxu0 0.0
    %499 = vmatprep.subr.mxu0 0.0
    %500 = vmatpush1.xpose.msra.mxu0 0.0
    %501 = vmatprep.subr.mxu0 0.0
    %502 = vmatpush1.xpose.msra.mxu0 0.0
    %503 = vmatprep.subr.mxu0 0.0
    %504 = vmatpush1.xpose.msra.mxu0 0.0
    %505 = vmatprep.subr.mxu0 0.0
    %506 = vmatpush1.xpose.msra.mxu0 0.0
    %507 = vmatprep.subr.mxu0 0.0
    %508 = vmatpush1.xpose.msra.mxu0 0.0
    %509 = vmatprep.subr.mxu0 0.0
    %510 = vmatpush1.xpose.msra.mxu0 0.0
    %511 = vmatprep.subr.mxu0 0.0
    %512 = vmatpush1.xpose.msra.mxu0 0.0
    %513 = vmatprep.subr.mxu0 0.0
    %514 = vmatpush1.xpose.msra.mxu0 0.0
    %515 = vmatprep.subr.mxu0 0.0
    %516 = vmatpush1.xpose.msra.mxu0 0.0
    %517 = vmatprep.subr.mxu0 0.0
    %518 = vmatpush1.xpose.msra.mxu0 0.0
    %519 = vmatprep.subr.mxu0 0.0
    %520 = vmatpush1.xpose.msra.mxu0 0.0
    %521 = vmatprep.subr.mxu0 0.0
    %522 = vmatpush1.xpose.msra.mxu0 0.0
    %523 = vmatprep.subr.mxu0 0.0
    %524 = vmatpush1.xpose.msra.mxu0 0.0
    %525 = vmatprep.subr.mxu0 0.0
    %526 = vmatpush1.xpose.msra.mxu0 0.0
    %527 = vmatprep.subr.mxu0 0.0
    %528 = vmatpush1.xpose.msra.mxu0 0.0
    %529 = vmatprep.subr.mxu0 0.0
    %530 = vmatpush1.xpose.msra.mxu0 0.0
    %531 = vmatprep.subr.mxu0 0.0
    %532 = vmatpush1.xpose.msra.mxu0 0.0
    %533 = vmatprep.mubr.f32.mxu0 0.0
    %534 = vmatmul.mubr.f32.gmra.mrb[0].mxu0 %v464
    %v535 = vpop.f32.mrb[0].mxu0
    %v536 = vadd.f32 %v383, %v535
    %v537 = vpop.f32.mrb[0].mxu0
    %538 = vdwg.mxu0
    %v539 = vsel %vm386, %v460, -inf
    %540 = vmax.xlane.f32.xlu0 %v539
    %v541 = vpop.xlane.xlu0 %540
    %v542 = vsel %vm386, %v536, -inf
    %543 = vmax.xlane.f32.xlu0 %v542
    %v544 = vpop.xlane.xlu0 %543
    %v545 = vsub.f32 %v460, %v541
    %v546 = vsub.f32 %v536, %v544
    %v547 = vmul.f32 %v545, 1.442695
    %v548 = vpow.pop %v547
    %v549 = vmul.f32 %v546, 1.442695
    %v550 = vpow.pop %v549
    %v551 = vsel %vm386, %v548, 0.0
    %552 = vadd.xlane.f32.xlu0 %v551
    %v553 = vpop.xlane.xlu0 %552
    %v554 = vsel %vm386, %v550, 0.0
    %555 = vadd.xlane.f32.xlu0 %v554
    %v556 = vpop.xlane.xlu0 %555
    %v557 = vrcp.pop %v553
    %v558 = vrcp.pop %v556
    %v559 = vmul.f32 %v548, %v557
    %v560 = vmul.f32 %v550, %v558
    %v562 = vsel %vm386, %v559, 0
    %564 = vmatprep.subr.mxu0 0.0
    %565 = vmatpush1.msra.mxu0 %v366
    %566 = vmatprep.subr.mxu0 0.0
    %567 = vmatpush1.msra.mxu0 0.0
    %568 = vmatprep.subr.mxu0 0.0
    %569 = vmatpush1.msra.mxu0 0.0
    %570 = vmatprep.subr.mxu0 0.0
    %571 = vmatpush1.msra.mxu0 0.0
    %572 = vmatprep.subr.mxu0 0.0
    %573 = vmatpush1.msra.mxu0 0.0
    %574 = vmatprep.subr.mxu0 0.0
    %575 = vmatpush1.msra.mxu0 0.0
    %576 = vmatprep.subr.mxu0 0.0
    %577 = vmatpush1.msra.mxu0 0.0
    %578 = vmatprep.subr.mxu0 0.0
    %579 = vmatpush1.msra.mxu0 0.0
    %580 = vmatprep.subr.mxu0 0.0
    %581 = vmatpush1.msra.mxu0 0.0
    %582 = vmatprep.subr.mxu0 0.0
    %583 = vmatpush1.msra.mxu0 0.0
    %584 = vmatprep.subr.mxu0 0.0
    %585 = vmatpush1.msra.mxu0 0.0
    %586 = vmatprep.subr.mxu0 0.0
    %587 = vmatpush1.msra.mxu0 0.0
    %588 = vmatprep.subr.mxu0 0.0
    %589 = vmatpush1.msra.mxu0 0.0
    %590 = vmatprep.subr.mxu0 0.0
    %591 = vmatpush1.msra.mxu0 0.0
    %592 = vmatprep.subr.mxu0 0.0
    %593 = vmatpush1.msra.mxu0 0.0
    %594 = vmatprep.subr.mxu0 0.0
    %595 = vmatpush1.msra.mxu0 0.0
    %596 = vmatprep.subr.mxu0 0.0
    %597 = vmatpush1.msra.mxu0 0.0
    %598 = vmatprep.subr.mxu0 0.0
    %599 = vmatpush1.msra.mxu0 0.0
    %600 = vmatprep.subr.mxu0 0.0
    %601 = vmatpush1.msra.mxu0 0.0
    %602 = vmatprep.subr.mxu0 0.0
    %603 = vmatpush1.msra.mxu0 0.0
    %604 = vmatprep.subr.mxu0 0.0
    %605 = vmatpush1.msra.mxu0 0.0
    %606 = vmatprep.subr.mxu0 0.0
    %607 = vmatpush1.msra.mxu0 0.0
    %608 = vmatprep.subr.mxu0 0.0
    %609 = vmatpush1.msra.mxu0 0.0
    %610 = vmatprep.subr.mxu0 0.0
    %611 = vmatpush1.msra.mxu0 0.0
    %612 = vmatprep.subr.mxu0 0.0
    %613 = vmatpush1.msra.mxu0 0.0
    %614 = vmatprep.subr.mxu0 0.0
    %615 = vmatpush1.msra.mxu0 0.0
    %616 = vmatprep.subr.mxu0 0.0
    %617 = vmatpush1.msra.mxu0 0.0
    %618 = vmatprep.subr.mxu0 0.0
    %619 = vmatpush1.msra.mxu0 0.0
    %620 = vmatprep.subr.mxu0 0.0
    %621 = vmatpush1.msra.mxu0 0.0
    %622 = vmatprep.subr.mxu0 0.0
    %623 = vmatpush1.msra.mxu0 0.0
    %624 = vmatprep.subr.mxu0 0.0
    %625 = vmatpush1.msra.mxu0 0.0
    %626 = vmatprep.subr.mxu0 0.0
    %627 = vmatpush1.msra.mxu0 0.0
    %628 = vmatprep.mubr.f32.mxu0 0.0
    %629 = vmatmul.mubr.f32.gmra.mrb[0].mxu0 %v562
    %v630 = vpop.f32.mrb[0].mxu0
    %v631 = vadd.f32 0.0, %v630
    %v632 = vpop.f32.mrb[0].mxu0
    %633 = vdwg.mxu0
    %v635 = vsel %vm386, %v560, 0
    %637 = vmatprep.subr.mxu0 0.0
    %638 = vmatpush1.msra.mxu0 %v371
    %639 = vmatprep.subr.mxu0 0.0
    %640 = vmatpush1.msra.mxu0 0.0
    %641 = vmatprep.subr.mxu0 0.0
    %642 = vmatpush1.msra.mxu0 0.0
    %643 = vmatprep.subr.mxu0 0.0
    %644 = vmatpush1.msra.mxu0 0.0
    %645 = vmatprep.subr.mxu0 0.0
    %646 = vmatpush1.msra.mxu0 0.0
    %647 = vmatprep.subr.mxu0 0.0
    %648 = vmatpush1.msra.mxu0 0.0
    %649 = vmatprep.subr.mxu0 0.0
    %650 = vmatpush1.msra.mxu0 0.0
    %651 = vmatprep.subr.mxu0 0.0
    %652 = vmatpush1.msra.mxu0 0.0
    %653 = vmatprep.subr.mxu0 0.0
    %654 = vmatpush1.msra.mxu0 0.0
    %655 = vmatprep.subr.mxu0 0.0
    %656 = vmatpush1.msra.mxu0 0.0
    %657 = vmatprep.subr.mxu0 0.0
    %658 = vmatpush1.msra.mxu0 0.0
    %659 = vmatprep.subr.mxu0 0.0
    %660 = vmatpush1.msra.mxu0 0.0
    %661 = vmatprep.subr.mxu0 0.0
    %662 = vmatpush1.msra.mxu0 0.0
    %663 = vmatprep.subr.mxu0 0.0
    %664 = vmatpush1.msra.mxu0 0.0
    %665 = vmatprep.subr.mxu0 0.0
    %666 = vmatpush1.msra.mxu0 0.0
    %667 = vmatprep.subr.mxu0 0.0
    %668 = vmatpush1.msra.mxu0 0.0
    %669 = vmatprep.subr.mxu0 0.0
    %670 = vmatpush1.msra.mxu0 0.0
    %671 = vmatprep.subr.mxu0 0.0
    %672 = vmatpush1.msra.mxu0 0.0
    %673 = vmatprep.subr.mxu0 0.0
    %674 = vmatpush1.msra.mxu0 0.0
    %675 = vmatprep.subr.mxu0 0.0
    %676 = vmatpush1.msra.mxu0 0.0
    %677 = vmatprep.subr.mxu0 0.0
    %678 = vmatpush1.msra.mxu0 0.0
    %679 = vmatprep.subr.mxu0 0.0
    %680 = vmatpush1.msra.mxu0 0.0
    %681 = vmatprep.subr.mxu0 0.0
    %682 = vmatpush1.msra.mxu0 0.0
    %683 = vmatprep.subr.mxu0 0.0
    %684 = vmatpush1.msra.mxu0 0.0
    %685 = vmatprep.subr.mxu0 0.0
    %686 = vmatpush1.msra.mxu0 0.0
    %687 = vmatprep.subr.mxu0 0.0
    %688 = vmatpush1.msra.mxu0 0.0
    %689 = vmatprep.subr.mxu0 0.0
    %690 = vmatpush1.msra.mxu0 0.0
    %691 = vmatprep.subr.mxu0 0.0
    %692 = vmatpush1.msra.mxu0 0.0
    %693 = vmatprep.subr.mxu0 0.0
    %694 = vmatpush1.msra.mxu0 0.0
    %695 = vmatprep.subr.mxu0 0.0
    %696 = vmatpush1.msra.mxu0 0.0
    %697 = vmatprep.subr.mxu0 0.0
    %698 = vmatpush1.msra.mxu0 0.0
    %699 = vmatprep.subr.mxu0 0.0
    %700 = vmatpush1.msra.mxu0 0.0
    %701 = vmatprep.mubr.f32.mxu0 0.0
    %702 = vmatmul.mubr.f32.gmra.mrb[0].mxu0 %v635
    %v703 = vpop.f32.mrb[0].mxu0
    %v704 = vadd.f32 0.0, %v703
    %v705 = vpop.f32.mrb[0].mxu0
    %706 = vdwg.mxu0
    %707 = vrot.lane.b32.xlu0 %v194, 120
    %v708 = vpop.permute.xlu0 %707
    %709 = vrot.lane.b32.xlu0 %v280, 120
    %v710 = vpop.permute.xlu0 %709
    %v711 = vsel %vm386, %v708, 0
    %v713 = vsel %vm386, %v710, 0
    %715 = vmatprep.subr.mxu0 0.0
    %716 = vmatpush1.xpose.msra.mxu0 %v713
    %717 = vmatprep.subr.mxu0 0.0
    %718 = vmatpush1.xpose.msra.mxu0 0.0
    %719 = vmatprep.subr.mxu0 0.0
    %720 = vmatpush1.xpose.msra.mxu0 0.0
    %721 = vmatprep.subr.mxu0 0.0
    %722 = vmatpush1.xpose.msra.mxu0 0.0
    %723 = vmatprep.subr.mxu0 0.0
    %724 = vmatpush1.xpose.msra.mxu0 0.0
    %725 = vmatprep.subr.mxu0 0.0
    %726 = vmatpush1.xpose.msra.mxu0 0.0
    %727 = vmatprep.subr.mxu0 0.0
    %728 = vmatpush1.xpose.msra.mxu0 0.0
    %729 = vmatprep.subr.mxu0 0.0
    %730 = vmatpush1.xpose.msra.mxu0 0.0
    %731 = vmatprep.subr.mxu0 0.0
    %732 = vmatpush1.xpose.msra.mxu0 0.0
    %733 = vmatprep.subr.mxu0 0.0
    %734 = vmatpush1.xpose.msra.mxu0 0.0
    %735 = vmatprep.subr.mxu0 0.0
    %736 = vmatpush1.xpose.msra.mxu0 0.0
    %737 = vmatprep.subr.mxu0 0.0
    %738 = vmatpush1.xpose.msra.mxu0 0.0
    %739 = vmatprep.subr.mxu0 0.0
    %740 = vmatpush1.xpose.msra.mxu0 0.0
    %741 = vmatprep.subr.mxu0 0.0
    %742 = vmatpush1.xpose.msra.mxu0 0.0
    %743 = vmatprep.subr.mxu0 0.0
    %744 = vmatpush1.xpose.msra.mxu0 0.0
    %745 = vmatprep.subr.mxu0 0.0
    %746 = vmatpush1.xpose.msra.mxu0 0.0
    %747 = vmatprep.subr.mxu0 0.0
    %748 = vmatpush1.xpose.msra.mxu0 0.0
    %749 = vmatprep.subr.mxu0 0.0
    %750 = vmatpush1.xpose.msra.mxu0 0.0
    %751 = vmatprep.subr.mxu0 0.0
    %752 = vmatpush1.xpose.msra.mxu0 0.0
    %753 = vmatprep.subr.mxu0 0.0
    %754 = vmatpush1.xpose.msra.mxu0 0.0
    %755 = vmatprep.subr.mxu0 0.0
    %756 = vmatpush1.xpose.msra.mxu0 0.0
    %757 = vmatprep.subr.mxu0 0.0
    %758 = vmatpush1.xpose.msra.mxu0 0.0
    %759 = vmatprep.subr.mxu0 0.0
    %760 = vmatpush1.xpose.msra.mxu0 0.0
    %761 = vmatprep.subr.mxu0 0.0
    %762 = vmatpush1.xpose.msra.mxu0 0.0
    %763 = vmatprep.subr.mxu0 0.0
    %764 = vmatpush1.xpose.msra.mxu0 0.0
    %765 = vmatprep.subr.mxu0 0.0
    %766 = vmatpush1.xpose.msra.mxu0 0.0
    %767 = vmatprep.subr.mxu0 0.0
    %768 = vmatpush1.xpose.msra.mxu0 0.0
    %769 = vmatprep.subr.mxu0 0.0
    %770 = vmatpush1.xpose.msra.mxu0 0.0
    %771 = vmatprep.subr.mxu0 0.0
    %772 = vmatpush1.xpose.msra.mxu0 0.0
    %773 = vmatprep.subr.mxu0 0.0
    %774 = vmatpush1.xpose.msra.mxu0 0.0
    %775 = vmatprep.subr.mxu0 0.0
    %776 = vmatpush1.xpose.msra.mxu0 0.0
    %777 = vmatprep.subr.mxu0 0.0
    %778 = vmatpush1.xpose.msra.mxu0 0.0
    %779 = vmatprep.mubr.f32.mxu0 0.0
    %780 = vmatmul.mubr.f32.gmra.mrb[0].mxu0 %v711
    %v781 = vpop.f32.mrb[0].mxu0
    %v782 = vadd.f32 %v379, %v781
    %v783 = vpop.f32.mrb[0].mxu0
    %784 = vdwg.mxu0
    %785 = vrot.lane.b32.xlu0 %v199, 120
    %v786 = vpop.permute.xlu0 %785
    %787 = vrot.lane.b32.xlu0 %v285, 120
    %v788 = vpop.permute.xlu0 %787
    %v789 = vsel %vm386, %v786, 0
    %v791 = vsel %vm386, %v788, 0
    %793 = vmatprep.subr.mxu0 0.0
    %794 = vmatpush1.xpose.msra.mxu0 %v791
    %795 = vmatprep.subr.mxu0 0.0
    %796 = vmatpush1.xpose.msra.mxu0 0.0
    %797 = vmatprep.subr.mxu0 0.0
    %798 = vmatpush1.xpose.msra.mxu0 0.0
    %799 = vmatprep.subr.mxu0 0.0
    %800 = vmatpush1.xpose.msra.mxu0 0.0
    %801 = vmatprep.subr.mxu0 0.0
    %802 = vmatpush1.xpose.msra.mxu0 0.0
    %803 = vmatprep.subr.mxu0 0.0
    %804 = vmatpush1.xpose.msra.mxu0 0.0
    %805 = vmatprep.subr.mxu0 0.0
    %806 = vmatpush1.xpose.msra.mxu0 0.0
    %807 = vmatprep.subr.mxu0 0.0
    %808 = vmatpush1.xpose.msra.mxu0 0.0
    %809 = vmatprep.subr.mxu0 0.0
    %810 = vmatpush1.xpose.msra.mxu0 0.0
    %811 = vmatprep.subr.mxu0 0.0
    %812 = vmatpush1.xpose.msra.mxu0 0.0
    %813 = vmatprep.subr.mxu0 0.0
    %814 = vmatpush1.xpose.msra.mxu0 0.0
    %815 = vmatprep.subr.mxu0 0.0
    %816 = vmatpush1.xpose.msra.mxu0 0.0
    %817 = vmatprep.subr.mxu0 0.0
    %818 = vmatpush1.xpose.msra.mxu0 0.0
    %819 = vmatprep.subr.mxu0 0.0
    %820 = vmatpush1.xpose.msra.mxu0 0.0
    %821 = vmatprep.subr.mxu0 0.0
    %822 = vmatpush1.xpose.msra.mxu0 0.0
    %823 = vmatprep.subr.mxu0 0.0
    %824 = vmatpush1.xpose.msra.mxu0 0.0
    %825 = vmatprep.subr.mxu0 0.0
    %826 = vmatpush1.xpose.msra.mxu0 0.0
    %827 = vmatprep.subr.mxu0 0.0
    %828 = vmatpush1.xpose.msra.mxu0 0.0
    %829 = vmatprep.subr.mxu0 0.0
    %830 = vmatpush1.xpose.msra.mxu0 0.0
    %831 = vmatprep.subr.mxu0 0.0
    %832 = vmatpush1.xpose.msra.mxu0 0.0
    %833 = vmatprep.subr.mxu0 0.0
    %834 = vmatpush1.xpose.msra.mxu0 0.0
    %835 = vmatprep.subr.mxu0 0.0
    %836 = vmatpush1.xpose.msra.mxu0 0.0
    %837 = vmatprep.subr.mxu0 0.0
    %838 = vmatpush1.xpose.msra.mxu0 0.0
    %839 = vmatprep.subr.mxu0 0.0
    %840 = vmatpush1.xpose.msra.mxu0 0.0
    %841 = vmatprep.subr.mxu0 0.0
    %842 = vmatpush1.xpose.msra.mxu0 0.0
    %843 = vmatprep.subr.mxu0 0.0
    %844 = vmatpush1.xpose.msra.mxu0 0.0
    %845 = vmatprep.subr.mxu0 0.0
    %846 = vmatpush1.xpose.msra.mxu0 0.0
    %847 = vmatprep.subr.mxu0 0.0
    %848 = vmatpush1.xpose.msra.mxu0 0.0
    %849 = vmatprep.subr.mxu0 0.0
    %850 = vmatpush1.xpose.msra.mxu0 0.0
    %851 = vmatprep.subr.mxu0 0.0
    %852 = vmatpush1.xpose.msra.mxu0 0.0
    %853 = vmatprep.subr.mxu0 0.0
    %854 = vmatpush1.xpose.msra.mxu0 0.0
    %855 = vmatprep.subr.mxu0 0.0
    %856 = vmatpush1.xpose.msra.mxu0 0.0
    %857 = vmatprep.mubr.f32.mxu0 0.0
    %858 = vmatmul.mubr.f32.gmra.mrb[0].mxu0 %v789
    %v859 = vpop.f32.mrb[0].mxu0
    %v860 = vadd.f32 %v383, %v859
    %v861 = vpop.f32.mrb[0].mxu0
    %862 = vdwg.mxu0
    %v863 = vsel %vm386, %v782, -inf
    %864 = vmax.xlane.f32.xlu0 %v863
    %v865 = vpop.xlane.xlu0 %864
    %v866 = vsel %vm386, %v860, -inf
    %867 = vmax.xlane.f32.xlu0 %v866
    %v868 = vpop.xlane.xlu0 %867
    %v869 = vsub.f32 %v782, %v865
    %v870 = vsub.f32 %v860, %v868
    %v871 = vmul.f32 %v869, 1.442695
    %v872 = vpow.pop %v871
    %v873 = vmul.f32 %v870, 1.442695
    %v874 = vpow.pop %v873
    %v875 = vsel %vm386, %v872, 0.0
    %876 = vadd.xlane.f32.xlu0 %v875
    %v877 = vpop.xlane.xlu0 %876
    %v878 = vsel %vm386, %v874, 0.0
    %879 = vadd.xlane.f32.xlu0 %v878
    %v880 = vpop.xlane.xlu0 %879
    %v881 = vrcp.pop %v877
    %v882 = vrcp.pop %v880
    %v883 = vmul.f32 %v872, %v881
    %v884 = vmul.f32 %v874, %v882
    %886 = vrot.lane.b32.xlu0 %v366, 120
    %v887 = vpop.permute.xlu0 %886
    %v890 = vsel %vm386, %v883, 0
    %892 = vmatprep.subr.mxu0 0.0
    %893 = vmatpush1.msra.mxu0 %v887
    %894 = vmatprep.subr.mxu0 0.0
    %895 = vmatpush1.msra.mxu0 0.0
    %896 = vmatprep.subr.mxu0 0.0
    %897 = vmatpush1.msra.mxu0 0.0
    %898 = vmatprep.subr.mxu0 0.0
    %899 = vmatpush1.msra.mxu0 0.0
    %900 = vmatprep.subr.mxu0 0.0
    %901 = vmatpush1.msra.mxu0 0.0
    %902 = vmatprep.subr.mxu0 0.0
    %903 = vmatpush1.msra.mxu0 0.0
    %904 = vmatprep.subr.mxu0 0.0
    %905 = vmatpush1.msra.mxu0 0.0
    %906 = vmatprep.subr.mxu0 0.0
    %907 = vmatpush1.msra.mxu0 0.0
    %908 = vmatprep.subr.mxu0 0.0
    %909 = vmatpush1.msra.mxu0 0.0
    %910 = vmatprep.subr.mxu0 0.0
    %911 = vmatpush1.msra.mxu0 0.0
    %912 = vmatprep.subr.mxu0 0.0
    %913 = vmatpush1.msra.mxu0 0.0
    %914 = vmatprep.subr.mxu0 0.0
    %915 = vmatpush1.msra.mxu0 0.0
    %916 = vmatprep.subr.mxu0 0.0
    %917 = vmatpush1.msra.mxu0 0.0
    %918 = vmatprep.subr.mxu0 0.0
    %919 = vmatpush1.msra.mxu0 0.0
    %920 = vmatprep.subr.mxu0 0.0
    %921 = vmatpush1.msra.mxu0 0.0
    %922 = vmatprep.subr.mxu0 0.0
    %923 = vmatpush1.msra.mxu0 0.0
    %924 = vmatprep.subr.mxu0 0.0
    %925 = vmatpush1.msra.mxu0 0.0
    %926 = vmatprep.subr.mxu0 0.0
    %927 = vmatpush1.msra.mxu0 0.0
    %928 = vmatprep.subr.mxu0 0.0
    %929 = vmatpush1.msra.mxu0 0.0
    %930 = vmatprep.subr.mxu0 0.0
    %931 = vmatpush1.msra.mxu0 0.0
    %932 = vmatprep.subr.mxu0 0.0
    %933 = vmatpush1.msra.mxu0 0.0
    %934 = vmatprep.subr.mxu0 0.0
    %935 = vmatpush1.msra.mxu0 0.0
    %936 = vmatprep.subr.mxu0 0.0
    %937 = vmatpush1.msra.mxu0 0.0
    %938 = vmatprep.subr.mxu0 0.0
    %939 = vmatpush1.msra.mxu0 0.0
    %940 = vmatprep.subr.mxu0 0.0
    %941 = vmatpush1.msra.mxu0 0.0
    %942 = vmatprep.subr.mxu0 0.0
    %943 = vmatpush1.msra.mxu0 0.0
    %944 = vmatprep.subr.mxu0 0.0
    %945 = vmatpush1.msra.mxu0 0.0
    %946 = vmatprep.subr.mxu0 0.0
    %947 = vmatpush1.msra.mxu0 0.0
    %948 = vmatprep.subr.mxu0 0.0
    %949 = vmatpush1.msra.mxu0 0.0
    %950 = vmatprep.subr.mxu0 0.0
    %951 = vmatpush1.msra.mxu0 0.0
    %952 = vmatprep.subr.mxu0 0.0
    %953 = vmatpush1.msra.mxu0 0.0
    %954 = vmatprep.subr.mxu0 0.0
    %955 = vmatpush1.msra.mxu0 0.0
    %956 = vmatprep.mubr.f32.mxu0 0.0
    %957 = vmatmul.mubr.f32.gmra.mrb[0].mxu0 %v890
    %v958 = vpop.f32.mrb[0].mxu0
    %v959 = vadd.f32 0.0, %v958
    %v960 = vpop.f32.mrb[0].mxu0
    %961 = vdwg.mxu0
    %963 = vrot.lane.b32.xlu0 %v371, 120
    %v964 = vpop.permute.xlu0 %963
    %v967 = vsel %vm386, %v884, 0
    %969 = vmatprep.subr.mxu0 0.0
    %970 = vmatpush1.msra.mxu0 %v964
    %971 = vmatprep.subr.mxu0 0.0
    %972 = vmatpush1.msra.mxu0 0.0
    %973 = vmatprep.subr.mxu0 0.0
    %974 = vmatpush1.msra.mxu0 0.0
    %975 = vmatprep.subr.mxu0 0.0
    %976 = vmatpush1.msra.mxu0 0.0
    %977 = vmatprep.subr.mxu0 0.0
    %978 = vmatpush1.msra.mxu0 0.0
    %979 = vmatprep.subr.mxu0 0.0
    %980 = vmatpush1.msra.mxu0 0.0
    %981 = vmatprep.subr.mxu0 0.0
    %982 = vmatpush1.msra.mxu0 0.0
    %983 = vmatprep.subr.mxu0 0.0
    %984 = vmatpush1.msra.mxu0 0.0
    %985 = vmatprep.subr.mxu0 0.0
    %986 = vmatpush1.msra.mxu0 0.0
    %987 = vmatprep.subr.mxu0 0.0
    %988 = vmatpush1.msra.mxu0 0.0
    %989 = vmatprep.subr.mxu0 0.0
    %990 = vmatpush1.msra.mxu0 0.0
    %991 = vmatprep.subr.mxu0 0.0
    %992 = vmatpush1.msra.mxu0 0.0
    %993 = vmatprep.subr.mxu0 0.0
    %994 = vmatpush1.msra.mxu0 0.0
    %995 = vmatprep.subr.mxu0 0.0
    %996 = vmatpush1.msra.mxu0 0.0
    %997 = vmatprep.subr.mxu0 0.0
    %998 = vmatpush1.msra.mxu0 0.0
    %999 = vmatprep.subr.mxu0 0.0
    %1000 = vmatpush1.msra.mxu0 0.0
    %1001 = vmatprep.subr.mxu0 0.0
    %1002 = vmatpush1.msra.mxu0 0.0
    %1003 = vmatprep.subr.mxu0 0.0
    %1004 = vmatpush1.msra.mxu0 0.0
    %1005 = vmatprep.subr.mxu0 0.0
    %1006 = vmatpush1.msra.mxu0 0.0
    %1007 = vmatprep.subr.mxu0 0.0
    %1008 = vmatpush1.msra.mxu0 0.0
    %1009 = vmatprep.subr.mxu0 0.0
    %1010 = vmatpush1.msra.mxu0 0.0
    %1011 = vmatprep.subr.mxu0 0.0
    %1012 = vmatpush1.msra.mxu0 0.0
    %1013 = vmatprep.subr.mxu0 0.0
    %1014 = vmatpush1.msra.mxu0 0.0
    %1015 = vmatprep.subr.mxu0 0.0
    %1016 = vmatpush1.msra.mxu0 0.0
    %1017 = vmatprep.subr.mxu0 0.0
    %1018 = vmatpush1.msra.mxu0 0.0
    %1019 = vmatprep.subr.mxu0 0.0
    %1020 = vmatpush1.msra.mxu0 0.0
    %1021 = vmatprep.subr.mxu0 0.0
    %1022 = vmatpush1.msra.mxu0 0.0
    %1023 = vmatprep.subr.mxu0 0.0
    %1024 = vmatpush1.msra.mxu0 0.0
    %1025 = vmatprep.subr.mxu0 0.0
    %1026 = vmatpush1.msra.mxu0 0.0
    %1027 = vmatprep.subr.mxu0 0.0
    %1028 = vmatpush1.msra.mxu0 0.0
    %1029 = vmatprep.subr.mxu0 0.0
    %1030 = vmatpush1.msra.mxu0 0.0
    %1031 = vmatprep.subr.mxu0 0.0
    %1032 = vmatpush1.msra.mxu0 0.0
    %1033 = vmatprep.mubr.f32.mxu0 0.0
    %1034 = vmatmul.mubr.f32.gmra.mrb[0].mxu0 %v967
    %v1035 = vpop.f32.mrb[0].mxu0
    %v1036 = vadd.f32 0.0, %v1035
    %v1037 = vpop.f32.mrb[0].mxu0
    %1038 = vdwg.mxu0
    %v1040 = vsel %vm386, %v959, 0
    %v1043 = vsel %vm386, %v1036, 0
    %1045 = vmatprep.subr.mxu0 0.0
    %1046 = vmatpush1.msra.mxu0 %v106
    %1047 = vmatprep.subr.mxu0 0.0
    %1048 = vmatpush1.msra.mxu0 0.0
    %1049 = vmatprep.subr.mxu0 0.0
    %1050 = vmatpush1.msra.mxu0 0.0
    %1051 = vmatprep.subr.mxu0 0.0
    %1052 = vmatpush1.msra.mxu0 0.0
    %1053 = vmatprep.subr.mxu0 0.0
    %1054 = vmatpush1.msra.mxu0 0.0
    %1055 = vmatprep.subr.mxu0 0.0
    %1056 = vmatpush1.msra.mxu0 0.0
    %1057 = vmatprep.subr.mxu0 0.0
    %1058 = vmatpush1.msra.mxu0 0.0
    %1059 = vmatprep.subr.mxu0 0.0
    %1060 = vmatpush1.msra.mxu0 0.0
    %1061 = vmatprep.subr.mxu0 0.0
    %1062 = vmatpush1.msra.mxu0 0.0
    %1063 = vmatprep.subr.mxu0 0.0
    %1064 = vmatpush1.msra.mxu0 0.0
    %1065 = vmatprep.subr.mxu0 0.0
    %1066 = vmatpush1.msra.mxu0 0.0
    %1067 = vmatprep.subr.mxu0 0.0
    %1068 = vmatpush1.msra.mxu0 0.0
    %1069 = vmatprep.subr.mxu0 0.0
    %1070 = vmatpush1.msra.mxu0 0.0
    %1071 = vmatprep.subr.mxu0 0.0
    %1072 = vmatpush1.msra.mxu0 0.0
    %1073 = vmatprep.subr.mxu0 0.0
    %1074 = vmatpush1.msra.mxu0 0.0
    %1075 = vmatprep.subr.mxu0 0.0
    %1076 = vmatpush1.msra.mxu0 0.0
    %1077 = vmatprep.subr.mxu0 0.0
    %1078 = vmatpush1.msra.mxu0 0.0
    %1079 = vmatprep.subr.mxu0 0.0
    %1080 = vmatpush1.msra.mxu0 0.0
    %1081 = vmatprep.subr.mxu0 0.0
    %1082 = vmatpush1.msra.mxu0 0.0
    %1083 = vmatprep.subr.mxu0 0.0
    %1084 = vmatpush1.msra.mxu0 0.0
    %1085 = vmatprep.subr.mxu0 0.0
    %1086 = vmatpush1.msra.mxu0 0.0
    %1087 = vmatprep.subr.mxu0 0.0
    %1088 = vmatpush1.msra.mxu0 0.0
    %1089 = vmatprep.subr.mxu0 0.0
    %1090 = vmatpush1.msra.mxu0 0.0
    %1091 = vmatprep.subr.mxu0 0.0
    %1092 = vmatpush1.msra.mxu0 0.0
    %1093 = vmatprep.subr.mxu0 0.0
    %1094 = vmatpush1.msra.mxu0 0.0
    %1095 = vmatprep.subr.mxu0 0.0
    %1096 = vmatpush1.msra.mxu0 0.0
    %1097 = vmatprep.subr.mxu0 0.0
    %1098 = vmatpush1.msra.mxu0 0.0
    %1099 = vmatprep.subr.mxu0 0.0
    %1100 = vmatpush1.msra.mxu0 0.0
    %1101 = vmatprep.subr.mxu0 0.0
    %1102 = vmatpush1.msra.mxu0 0.0
    %1103 = vmatprep.subr.mxu0 0.0
    %1104 = vmatpush1.msra.mxu0 0.0
    %1105 = vmatprep.subr.mxu0 0.0
    %1106 = vmatpush1.msra.mxu0 0.0
    %1107 = vmatprep.subr.mxu0 0.0
    %1108 = vmatpush1.msra.mxu0 0.0
    %1109 = vmatprep.mubr.f32.mxu0 0.0
    %1110 = vmatmul.mubr.f32.gmra.mrb[0].mxu0 %v1040
    %v1111 = vpop.f32.mrb[0].mxu0
    %v1112 = vadd.f32 0.0, %v1111
    %v1113 = vpop.f32.mrb[0].mxu0
    %1114 = vmatprep.mubr.f32.mxu0 0.0
    %1115 = vmatmul.mubr.f32.gmra.mrb[0].mxu0 %v1043
    %v1116 = vpop.f32.mrb[0].mxu0
    %v1117 = vadd.f32 0.0, %v1116
    %v1118 = vpop.f32.mrb[0].mxu0
    %1119 = vdwg.mxu0
    %v1121 = vsel %vm386, %v631, 0
    %v1124 = vsel %vm386, %v704, 0
    %1126 = vmatprep.subr.mxu0 0.0
    %1127 = vmatpush1.msra.mxu0 %v105
    %1128 = vmatprep.subr.mxu0 0.0
    %1129 = vmatpush1.msra.mxu0 0.0
    %1130 = vmatprep.subr.mxu0 0.0
    %1131 = vmatpush1.msra.mxu0 0.0
    %1132 = vmatprep.subr.mxu0 0.0
    %1133 = vmatpush1.msra.mxu0 0.0
    %1134 = vmatprep.subr.mxu0 0.0
    %1135 = vmatpush1.msra.mxu0 0.0
    %1136 = vmatprep.subr.mxu0 0.0
    %1137 = vmatpush1.msra.mxu0 0.0
    %1138 = vmatprep.subr.mxu0 0.0
    %1139 = vmatpush1.msra.mxu0 0.0
    %1140 = vmatprep.subr.mxu0 0.0
    %1141 = vmatpush1.msra.mxu0 0.0
    %1142 = vmatprep.subr.mxu0 0.0
    %1143 = vmatpush1.msra.mxu0 0.0
    %1144 = vmatprep.subr.mxu0 0.0
    %1145 = vmatpush1.msra.mxu0 0.0
    %1146 = vmatprep.subr.mxu0 0.0
    %1147 = vmatpush1.msra.mxu0 0.0
    %1148 = vmatprep.subr.mxu0 0.0
    %1149 = vmatpush1.msra.mxu0 0.0
    %1150 = vmatprep.subr.mxu0 0.0
    %1151 = vmatpush1.msra.mxu0 0.0
    %1152 = vmatprep.subr.mxu0 0.0
    %1153 = vmatpush1.msra.mxu0 0.0
    %1154 = vmatprep.subr.mxu0 0.0
    %1155 = vmatpush1.msra.mxu0 0.0
    %1156 = vmatprep.subr.mxu0 0.0
    %1157 = vmatpush1.msra.mxu0 0.0
    %1158 = vmatprep.subr.mxu0 0.0
    %1159 = vmatpush1.msra.mxu0 0.0
    %1160 = vmatprep.subr.mxu0 0.0
    %1161 = vmatpush1.msra.mxu0 0.0
    %1162 = vmatprep.subr.mxu0 0.0
    %1163 = vmatpush1.msra.mxu0 0.0
    %1164 = vmatprep.subr.mxu0 0.0
    %1165 = vmatpush1.msra.mxu0 0.0
    %1166 = vmatprep.subr.mxu0 0.0
    %1167 = vmatpush1.msra.mxu0 0.0
    %1168 = vmatprep.subr.mxu0 0.0
    %1169 = vmatpush1.msra.mxu0 0.0
    %1170 = vmatprep.subr.mxu0 0.0
    %1171 = vmatpush1.msra.mxu0 0.0
    %1172 = vmatprep.subr.mxu0 0.0
    %1173 = vmatpush1.msra.mxu0 0.0
    %1174 = vmatprep.subr.mxu0 0.0
    %1175 = vmatpush1.msra.mxu0 0.0
    %1176 = vmatprep.subr.mxu0 0.0
    %1177 = vmatpush1.msra.mxu0 0.0
    %1178 = vmatprep.subr.mxu0 0.0
    %1179 = vmatpush1.msra.mxu0 0.0
    %1180 = vmatprep.subr.mxu0 0.0
    %1181 = vmatpush1.msra.mxu0 0.0
    %1182 = vmatprep.subr.mxu0 0.0
    %1183 = vmatpush1.msra.mxu0 0.0
    %1184 = vmatprep.subr.mxu0 0.0
    %1185 = vmatpush1.msra.mxu0 0.0
    %1186 = vmatprep.subr.mxu0 0.0
    %1187 = vmatpush1.msra.mxu0 0.0
    %1188 = vmatprep.subr.mxu0 0.0
    %1189 = vmatpush1.msra.mxu0 0.0
    %1190 = vmatprep.mubr.f32.mxu0 0.0
    %1191 = vmatmul.mubr.f32.gmra.mrb[0].mxu0 %v1121
    %v1192 = vpop.f32.mrb[0].mxu0
    %v1193 = vadd.f32 %v1112, %v1192
    %v1194 = vpop.f32.mrb[0].mxu0
    %1195 = vmatprep.mubr.f32.mxu0 0.0
    %1196 = vmatmul.mubr.f32.gmra.mrb[0].mxu0 %v1124
    %v1197 = vpop.f32.mrb[0].mxu0
    %v1198 = vadd.f32 %v1117, %v1197
    %v1199 = vpop.f32.mrb[0].mxu0
    %1200 = vdwg.mxu0
    %1201 = vrot.lane.b32.xlu0 %v194, 112
    %v1202 = vpop.permute.xlu0 %1201
    %1203 = vrot.lane.b32.xlu0 %v280, 112
    %v1204 = vpop.permute.xlu0 %1203
    %v1205 = vsel %vm386, %v1202, 0
    %v1207 = vsel %vm386, %v1204, 0
    %1209 = vmatprep.subr.mxu0 0.0
    %1210 = vmatpush1.xpose.msra.mxu0 %v1207
    %1211 = vmatprep.subr.mxu0 0.0
    %1212 = vmatpush1.xpose.msra.mxu0 0.0
    %1213 = vmatprep.subr.mxu0 0.0
    %1214 = vmatpush1.xpose.msra.mxu0 0.0
    %1215 = vmatprep.subr.mxu0 0.0
    %1216 = vmatpush1.xpose.msra.mxu0 0.0
    %1217 = vmatprep.subr.mxu0 0.0
    %1218 = vmatpush1.xpose.msra.mxu0 0.0
    %1219 = vmatprep.subr.mxu0 0.0
    %1220 = vmatpush1.xpose.msra.mxu0 0.0
    %1221 = vmatprep.subr.mxu0 0.0
    %1222 = vmatpush1.xpose.msra.mxu0 0.0
    %1223 = vmatprep.subr.mxu0 0.0
    %1224 = vmatpush1.xpose.msra.mxu0 0.0
    %1225 = vmatprep.subr.mxu0 0.0
    %1226 = vmatpush1.xpose.msra.mxu0 0.0
    %1227 = vmatprep.subr.mxu0 0.0
    %1228 = vmatpush1.xpose.msra.mxu0 0.0
    %1229 = vmatprep.subr.mxu0 0.0
    %1230 = vmatpush1.xpose.msra.mxu0 0.0
    %1231 = vmatprep.subr.mxu0 0.0
    %1232 = vmatpush1.xpose.msra.mxu0 0.0
    %1233 = vmatprep.subr.mxu0 0.0
    %1234 = vmatpush1.xpose.msra.mxu0 0.0
    %1235 = vmatprep.subr.mxu0 0.0
    %1236 = vmatpush1.xpose.msra.mxu0 0.0
    %1237 = vmatprep.subr.mxu0 0.0
    %1238 = vmatpush1.xpose.msra.mxu0 0.0
    %1239 = vmatprep.subr.mxu0 0.0
    %1240 = vmatpush1.xpose.msra.mxu0 0.0
    %1241 = vmatprep.subr.mxu0 0.0
    %1242 = vmatpush1.xpose.msra.mxu0 0.0
    %1243 = vmatprep.subr.mxu0 0.0
    %1244 = vmatpush1.xpose.msra.mxu0 0.0
    %1245 = vmatprep.subr.mxu0 0.0
    %1246 = vmatpush1.xpose.msra.mxu0 0.0
    %1247 = vmatprep.subr.mxu0 0.0
    %1248 = vmatpush1.xpose.msra.mxu0 0.0
    %1249 = vmatprep.subr.mxu0 0.0
    %1250 = vmatpush1.xpose.msra.mxu0 0.0
    %1251 = vmatprep.subr.mxu0 0.0
    %1252 = vmatpush1.xpose.msra.mxu0 0.0
    %1253 = vmatprep.subr.mxu0 0.0
    %1254 = vmatpush1.xpose.msra.mxu0 0.0
    %1255 = vmatprep.subr.mxu0 0.0
    %1256 = vmatpush1.xpose.msra.mxu0 0.0
    %1257 = vmatprep.subr.mxu0 0.0
    %1258 = vmatpush1.xpose.msra.mxu0 0.0
    %1259 = vmatprep.subr.mxu0 0.0
    %1260 = vmatpush1.xpose.msra.mxu0 0.0
    %1261 = vmatprep.subr.mxu0 0.0
    %1262 = vmatpush1.xpose.msra.mxu0 0.0
    %1263 = vmatprep.subr.mxu0 0.0
    %1264 = vmatpush1.xpose.msra.mxu0 0.0
    %1265 = vmatprep.subr.mxu0 0.0
    %1266 = vmatpush1.xpose.msra.mxu0 0.0
    %1267 = vmatprep.subr.mxu0 0.0
    %1268 = vmatpush1.xpose.msra.mxu0 0.0
    %1269 = vmatprep.subr.mxu0 0.0
    %1270 = vmatpush1.xpose.msra.mxu0 0.0
    %1271 = vmatprep.subr.mxu0 0.0
    %1272 = vmatpush1.xpose.msra.mxu0 0.0
    %1273 = vmatprep.mubr.f32.mxu0 0.0
    %1274 = vmatmul.mubr.f32.gmra.mrb[0].mxu0 %v1205
    %v1275 = vpop.f32.mrb[0].mxu0
    %v1276 = vadd.f32 %v379, %v1275
    %v1277 = vpop.f32.mrb[0].mxu0
    %1278 = vdwg.mxu0
    %1279 = vrot.lane.b32.xlu0 %v199, 112
    %v1280 = vpop.permute.xlu0 %1279
    %1281 = vrot.lane.b32.xlu0 %v285, 112
    %v1282 = vpop.permute.xlu0 %1281
    %v1283 = vsel %vm386, %v1280, 0
    %v1285 = vsel %vm386, %v1282, 0
    %1287 = vmatprep.subr.mxu0 0.0
    %1288 = vmatpush1.xpose.msra.mxu0 %v1285
    %1289 = vmatprep.subr.mxu0 0.0
    %1290 = vmatpush1.xpose.msra.mxu0 0.0
    %1291 = vmatprep.subr.mxu0 0.0
    %1292 = vmatpush1.xpose.msra.mxu0 0.0
    %1293 = vmatprep.subr.mxu0 0.0
    %1294 = vmatpush1.xpose.msra.mxu0 0.0
    %1295 = vmatprep.subr.mxu0 0.0
    %1296 = vmatpush1.xpose.msra.mxu0 0.0
    %1297 = vmatprep.subr.mxu0 0.0
    %1298 = vmatpush1.xpose.msra.mxu0 0.0
    %1299 = vmatprep.subr.mxu0 0.0
    %1300 = vmatpush1.xpose.msra.mxu0 0.0
    %1301 = vmatprep.subr.mxu0 0.0
    %1302 = vmatpush1.xpose.msra.mxu0 0.0
    %1303 = vmatprep.subr.mxu0 0.0
    %1304 = vmatpush1.xpose.msra.mxu0 0.0
    %1305 = vmatprep.subr.mxu0 0.0
    %1306 = vmatpush1.xpose.msra.mxu0 0.0
    %1307 = vmatprep.subr.mxu0 0.0
    %1308 = vmatpush1.xpose.msra.mxu0 0.0
    %1309 = vmatprep.subr.mxu0 0.0
    %1310 = vmatpush1.xpose.msra.mxu0 0.0
    %1311 = vmatprep.subr.mxu0 0.0
    %1312 = vmatpush1.xpose.msra.mxu0 0.0
    %1313 = vmatprep.subr.mxu0 0.0
    %1314 = vmatpush1.xpose.msra.mxu0 0.0
    %1315 = vmatprep.subr.mxu0 0.0
    %1316 = vmatpush1.xpose.msra.mxu0 0.0
    %1317 = vmatprep.subr.mxu0 0.0
    %1318 = vmatpush1.xpose.msra.mxu0 0.0
    %1319 = vmatprep.subr.mxu0 0.0
    %1320 = vmatpush1.xpose.msra.mxu0 0.0
    %1321 = vmatprep.subr.mxu0 0.0
    %1322 = vmatpush1.xpose.msra.mxu0 0.0
    %1323 = vmatprep.subr.mxu0 0.0
    %1324 = vmatpush1.xpose.msra.mxu0 0.0
    %1325 = vmatprep.subr.mxu0 0.0
    %1326 = vmatpush1.xpose.msra.mxu0 0.0
    %1327 = vmatprep.subr.mxu0 0.0
    %1328 = vmatpush1.xpose.msra.mxu0 0.0
    %1329 = vmatprep.subr.mxu0 0.0
    %1330 = vmatpush1.xpose.msra.mxu0 0.0
    %1331 = vmatprep.subr.mxu0 0.0
    %1332 = vmatpush1.xpose.msra.mxu0 0.0
    %1333 = vmatprep.subr.mxu0 0.0
    %1334 = vmatpush1.xpose.msra.mxu0 0.0
    %1335 = vmatprep.subr.mxu0 0.0
    %1336 = vmatpush1.xpose.msra.mxu0 0.0
    %1337 = vmatprep.subr.mxu0 0.0
    %1338 = vmatpush1.xpose.msra.mxu0 0.0
    %1339 = vmatprep.subr.mxu0 0.0
    %1340 = vmatpush1.xpose.msra.mxu0 0.0
    %1341 = vmatprep.subr.mxu0 0.0
    %1342 = vmatpush1.xpose.msra.mxu0 0.0
    %1343 = vmatprep.subr.mxu0 0.0
    %1344 = vmatpush1.xpose.msra.mxu0 0.0
    %1345 = vmatprep.subr.mxu0 0.0
    %1346 = vmatpush1.xpose.msra.mxu0 0.0
    %1347 = vmatprep.subr.mxu0 0.0
    %1348 = vmatpush1.xpose.msra.mxu0 0.0
    %1349 = vmatprep.subr.mxu0 0.0
    %1350 = vmatpush1.xpose.msra.mxu0 0.0
    %1351 = vmatprep.mubr.f32.mxu0 0.0
    %1352 = vmatmul.mubr.f32.gmra.mrb[0].mxu0 %v1283
    %v1353 = vpop.f32.mrb[0].mxu0
    %v1354 = vadd.f32 %v383, %v1353
    %v1355 = vpop.f32.mrb[0].mxu0
    %1356 = vdwg.mxu0
    %v1357 = vsel %vm386, %v1276, -inf
    %1358 = vmax.xlane.f32.xlu0 %v1357
    %v1359 = vpop.xlane.xlu0 %1358
    %v1360 = vsel %vm386, %v1354, -inf
    %1361 = vmax.xlane.f32.xlu0 %v1360
    %v1362 = vpop.xlane.xlu0 %1361
    %v1363 = vsub.f32 %v1276, %v1359
    %v1364 = vsub.f32 %v1354, %v1362
    %v1365 = vmul.f32 %v1363, 1.442695
    %v1366 = vpow.pop %v1365
    %v1367 = vmul.f32 %v1364, 1.442695
    %v1368 = vpow.pop %v1367
    %v1369 = vsel %vm386, %v1366, 0.0
    %1370 = vadd.xlane.f32.xlu0 %v1369
    %v1371 = vpop.xlane.xlu0 %1370
    %v1372 = vsel %vm386, %v1368, 0.0
    %1373 = vadd.xlane.f32.xlu0 %v1372
    %v1374 = vpop.xlane.xlu0 %1373
    %v1375 = vrcp.pop %v1371
    %v1376 = vrcp.pop %v1374
    %v1377 = vmul.f32 %v1366, %v1375
    %v1378 = vmul.f32 %v1368, %v1376
    %1379 = vrot.lane.b32.xlu0 %v366, 112
    %v1380 = vpop.permute.xlu0 %1379
    %v1383 = vsel %vm386, %v1377, 0
    %1385 = vmatprep.subr.mxu0 0.0
    %1386 = vmatpush1.msra.mxu0 %v1380
    %1387 = vmatprep.subr.mxu0 0.0
    %1388 = vmatpush1.msra.mxu0 0.0
    %1389 = vmatprep.subr.mxu0 0.0
    %1390 = vmatpush1.msra.mxu0 0.0
    %1391 = vmatprep.subr.mxu0 0.0
    %1392 = vmatpush1.msra.mxu0 0.0
    %1393 = vmatprep.subr.mxu0 0.0
    %1394 = vmatpush1.msra.mxu0 0.0
    %1395 = vmatprep.subr.mxu0 0.0
    %1396 = vmatpush1.msra.mxu0 0.0
    %1397 = vmatprep.subr.mxu0 0.0
    %1398 = vmatpush1.msra.mxu0 0.0
    %1399 = vmatprep.subr.mxu0 0.0
    %1400 = vmatpush1.msra.mxu0 0.0
    %1401 = vmatprep.subr.mxu0 0.0
    %1402 = vmatpush1.msra.mxu0 0.0
    %1403 = vmatprep.subr.mxu0 0.0
    %1404 = vmatpush1.msra.mxu0 0.0
    %1405 = vmatprep.subr.mxu0 0.0
    %1406 = vmatpush1.msra.mxu0 0.0
    %1407 = vmatprep.subr.mxu0 0.0
    %1408 = vmatpush1.msra.mxu0 0.0
    %1409 = vmatprep.subr.mxu0 0.0
    %1410 = vmatpush1.msra.mxu0 0.0
    %1411 = vmatprep.subr.mxu0 0.0
    %1412 = vmatpush1.msra.mxu0 0.0
    %1413 = vmatprep.subr.mxu0 0.0
    %1414 = vmatpush1.msra.mxu0 0.0
    %1415 = vmatprep.subr.mxu0 0.0
    %1416 = vmatpush1.msra.mxu0 0.0
    %1417 = vmatprep.subr.mxu0 0.0
    %1418 = vmatpush1.msra.mxu0 0.0
    %1419 = vmatprep.subr.mxu0 0.0
    %1420 = vmatpush1.msra.mxu0 0.0
    %1421 = vmatprep.subr.mxu0 0.0
    %1422 = vmatpush1.msra.mxu0 0.0
    %1423 = vmatprep.subr.mxu0 0.0
    %1424 = vmatpush1.msra.mxu0 0.0
    %1425 = vmatprep.subr.mxu0 0.0
    %1426 = vmatpush1.msra.mxu0 0.0
    %1427 = vmatprep.subr.mxu0 0.0
    %1428 = vmatpush1.msra.mxu0 0.0
    %1429 = vmatprep.subr.mxu0 0.0
    %1430 = vmatpush1.msra.mxu0 0.0
    %1431 = vmatprep.subr.mxu0 0.0
    %1432 = vmatpush1.msra.mxu0 0.0
    %1433 = vmatprep.subr.mxu0 0.0
    %1434 = vmatpush1.msra.mxu0 0.0
    %1435 = vmatprep.subr.mxu0 0.0
    %1436 = vmatpush1.msra.mxu0 0.0
    %1437 = vmatprep.subr.mxu0 0.0
    %1438 = vmatpush1.msra.mxu0 0.0
    %1439 = vmatprep.subr.mxu0 0.0
    %1440 = vmatpush1.msra.mxu0 0.0
    %1441 = vmatprep.subr.mxu0 0.0
    %1442 = vmatpush1.msra.mxu0 0.0
    %1443 = vmatprep.subr.mxu0 0.0
    %1444 = vmatpush1.msra.mxu0 0.0
    %1445 = vmatprep.subr.mxu0 0.0
    %1446 = vmatpush1.msra.mxu0 0.0
    %1447 = vmatprep.subr.mxu0 0.0
    %1448 = vmatpush1.msra.mxu0 0.0
    %1449 = vmatprep.mubr.f32.mxu0 0.0
    %1450 = vmatmul.mubr.f32.gmra.mrb[0].mxu0 %v1383
    %v1451 = vpop.f32.mrb[0].mxu0
    %v1452 = vadd.f32 0.0, %v1451
    %v1453 = vpop.f32.mrb[0].mxu0
    %1454 = vdwg.mxu0
    %1455 = vrot.lane.b32.xlu0 %v371, 112
    %v1456 = vpop.permute.xlu0 %1455
    %v1459 = vsel %vm386, %v1378, 0
    %1461 = vmatprep.subr.mxu0 0.0
    %1462 = vmatpush1.msra.mxu0 %v1456
    %1463 = vmatprep.subr.mxu0 0.0
    %1464 = vmatpush1.msra.mxu0 0.0
    %1465 = vmatprep.subr.mxu0 0.0
    %1466 = vmatpush1.msra.mxu0 0.0
    %1467 = vmatprep.subr.mxu0 0.0
    %1468 = vmatpush1.msra.mxu0 0.0
    %1469 = vmatprep.subr.mxu0 0.0
    %1470 = vmatpush1.msra.mxu0 0.0
    %1471 = vmatprep.subr.mxu0 0.0
    %1472 = vmatpush1.msra.mxu0 0.0
    %1473 = vmatprep.subr.mxu0 0.0
    %1474 = vmatpush1.msra.mxu0 0.0
    %1475 = vmatprep.subr.mxu0 0.0
    %1476 = vmatpush1.msra.mxu0 0.0
    %1477 = vmatprep.subr.mxu0 0.0
    %1478 = vmatpush1.msra.mxu0 0.0
    %1479 = vmatprep.subr.mxu0 0.0
    %1480 = vmatpush1.msra.mxu0 0.0
    %1481 = vmatprep.subr.mxu0 0.0
    %1482 = vmatpush1.msra.mxu0 0.0
    %1483 = vmatprep.subr.mxu0 0.0
    %1484 = vmatpush1.msra.mxu0 0.0
    %1485 = vmatprep.subr.mxu0 0.0
    %1486 = vmatpush1.msra.mxu0 0.0
    %1487 = vmatprep.subr.mxu0 0.0
    %1488 = vmatpush1.msra.mxu0 0.0
    %1489 = vmatprep.subr.mxu0 0.0
    %1490 = vmatpush1.msra.mxu0 0.0
    %1491 = vmatprep.subr.mxu0 0.0
    %1492 = vmatpush1.msra.mxu0 0.0
    %1493 = vmatprep.subr.mxu0 0.0
    %1494 = vmatpush1.msra.mxu0 0.0
    %1495 = vmatprep.subr.mxu0 0.0
    %1496 = vmatpush1.msra.mxu0 0.0
    %1497 = vmatprep.subr.mxu0 0.0
    %1498 = vmatpush1.msra.mxu0 0.0
    %1499 = vmatprep.subr.mxu0 0.0
    %1500 = vmatpush1.msra.mxu0 0.0
    %1501 = vmatprep.subr.mxu0 0.0
    %1502 = vmatpush1.msra.mxu0 0.0
    %1503 = vmatprep.subr.mxu0 0.0
    %1504 = vmatpush1.msra.mxu0 0.0
    %1505 = vmatprep.subr.mxu0 0.0
    %1506 = vmatpush1.msra.mxu0 0.0
    %1507 = vmatprep.subr.mxu0 0.0
    %1508 = vmatpush1.msra.mxu0 0.0
    %1509 = vmatprep.subr.mxu0 0.0
    %1510 = vmatpush1.msra.mxu0 0.0
    %1511 = vmatprep.subr.mxu0 0.0
    %1512 = vmatpush1.msra.mxu0 0.0
    %1513 = vmatprep.subr.mxu0 0.0
    %1514 = vmatpush1.msra.mxu0 0.0
    %1515 = vmatprep.subr.mxu0 0.0
    %1516 = vmatpush1.msra.mxu0 0.0
    %1517 = vmatprep.subr.mxu0 0.0
    %1518 = vmatpush1.msra.mxu0 0.0
    %1519 = vmatprep.subr.mxu0 0.0
    %1520 = vmatpush1.msra.mxu0 0.0
    %1521 = vmatprep.subr.mxu0 0.0
    %1522 = vmatpush1.msra.mxu0 0.0
    %1523 = vmatprep.subr.mxu0 0.0
    %1524 = vmatpush1.msra.mxu0 0.0
    %1525 = vmatprep.mubr.f32.mxu0 0.0
    %1526 = vmatmul.mubr.f32.gmra.mrb[0].mxu0 %v1459
    %v1527 = vpop.f32.mrb[0].mxu0
    %v1528 = vadd.f32 0.0, %v1527
    %v1529 = vpop.f32.mrb[0].mxu0
    %1530 = vdwg.mxu0
    %v1532 = vsel %vm386, %v1452, 0
    %v1535 = vsel %vm386, %v1528, 0
    %1537 = vmatprep.subr.mxu0 0.0
    %1538 = vmatpush1.msra.mxu0 %v107
    %1539 = vmatprep.subr.mxu0 0.0
    %1540 = vmatpush1.msra.mxu0 0.0
    %1541 = vmatprep.subr.mxu0 0.0
    %1542 = vmatpush1.msra.mxu0 0.0
    %1543 = vmatprep.subr.mxu0 0.0
    %1544 = vmatpush1.msra.mxu0 0.0
    %1545 = vmatprep.subr.mxu0 0.0
    %1546 = vmatpush1.msra.mxu0 0.0
    %1547 = vmatprep.subr.mxu0 0.0
    %1548 = vmatpush1.msra.mxu0 0.0
    %1549 = vmatprep.subr.mxu0 0.0
    %1550 = vmatpush1.msra.mxu0 0.0
    %1551 = vmatprep.subr.mxu0 0.0
    %1552 = vmatpush1.msra.mxu0 0.0
    %1553 = vmatprep.subr.mxu0 0.0
    %1554 = vmatpush1.msra.mxu0 0.0
    %1555 = vmatprep.subr.mxu0 0.0
    %1556 = vmatpush1.msra.mxu0 0.0
    %1557 = vmatprep.subr.mxu0 0.0
    %1558 = vmatpush1.msra.mxu0 0.0
    %1559 = vmatprep.subr.mxu0 0.0
    %1560 = vmatpush1.msra.mxu0 0.0
    %1561 = vmatprep.subr.mxu0 0.0
    %1562 = vmatpush1.msra.mxu0 0.0
    %1563 = vmatprep.subr.mxu0 0.0
    %1564 = vmatpush1.msra.mxu0 0.0
    %1565 = vmatprep.subr.mxu0 0.0
    %1566 = vmatpush1.msra.mxu0 0.0
    %1567 = vmatprep.subr.mxu0 0.0
    %1568 = vmatpush1.msra.mxu0 0.0
    %1569 = vmatprep.subr.mxu0 0.0
    %1570 = vmatpush1.msra.mxu0 0.0
    %1571 = vmatprep.subr.mxu0 0.0
    %1572 = vmatpush1.msra.mxu0 0.0
    %1573 = vmatprep.subr.mxu0 0.0
    %1574 = vmatpush1.msra.mxu0 0.0
    %1575 = vmatprep.subr.mxu0 0.0
    %1576 = vmatpush1.msra.mxu0 0.0
    %1577 = vmatprep.subr.mxu0 0.0
    %1578 = vmatpush1.msra.mxu0 0.0
    %1579 = vmatprep.subr.mxu0 0.0
    %1580 = vmatpush1.msra.mxu0 0.0
    %1581 = vmatprep.subr.mxu0 0.0
    %1582 = vmatpush1.msra.mxu0 0.0
    %1583 = vmatprep.subr.mxu0 0.0
    %1584 = vmatpush1.msra.mxu0 0.0
    %1585 = vmatprep.subr.mxu0 0.0
    %1586 = vmatpush1.msra.mxu0 0.0
    %1587 = vmatprep.subr.mxu0 0.0
    %1588 = vmatpush1.msra.mxu0 0.0
    %1589 = vmatprep.subr.mxu0 0.0
    %1590 = vmatpush1.msra.mxu0 0.0
    %1591 = vmatprep.subr.mxu0 0.0
    %1592 = vmatpush1.msra.mxu0 0.0
    %1593 = vmatprep.subr.mxu0 0.0
    %1594 = vmatpush1.msra.mxu0 0.0
    %1595 = vmatprep.subr.mxu0 0.0
    %1596 = vmatpush1.msra.mxu0 0.0
    %1597 = vmatprep.subr.mxu0 0.0
    %1598 = vmatpush1.msra.mxu0 0.0
    %1599 = vmatprep.subr.mxu0 0.0
    %1600 = vmatpush1.msra.mxu0 0.0
    %1601 = vmatprep.mubr.f32.mxu0 0.0
    %1602 = vmatmul.mubr.f32.gmra.mrb[0].mxu0 %v1532
    %v1603 = vpop.f32.mrb[0].mxu0
    %v1604 = vadd.f32 0.0, %v1603
    %v1605 = vpop.f32.mrb[0].mxu0
    %1606 = vmatprep.mubr.f32.mxu0 0.0
    %1607 = vmatmul.mubr.f32.gmra.mrb[0].mxu0 %v1535
    %v1608 = vpop.f32.mrb[0].mxu0
    %v1609 = vadd.f32 0.0, %v1608
    %v1610 = vpop.f32.mrb[0].mxu0
    %1611 = vdwg.mxu0
    %v1612 = vadd.f32 %v1193, %v1604
    %v1613 = vadd.f32 %v1198, %v1609
    %1614 = vrot.lane.b32.xlu0 %v194, 104
    %v1615 = vpop.permute.xlu0 %1614
    %1616 = vrot.lane.b32.xlu0 %v280, 104
    %v1617 = vpop.permute.xlu0 %1616
    %v1618 = vsel %vm386, %v1615, 0
    %v1620 = vsel %vm386, %v1617, 0
    %1622 = vmatprep.subr.mxu0 0.0
    %1623 = vmatpush1.xpose.msra.mxu0 %v1620
    %1624 = vmatprep.subr.mxu0 0.0
    %1625 = vmatpush1.xpose.msra.mxu0 0.0
    %1626 = vmatprep.subr.mxu0 0.0
    %1627 = vmatpush1.xpose.msra.mxu0 0.0
    %1628 = vmatprep.subr.mxu0 0.0
    %1629 = vmatpush1.xpose.msra.mxu0 0.0
    %1630 = vmatprep.subr.mxu0 0.0
    %1631 = vmatpush1.xpose.msra.mxu0 0.0
    %1632 = vmatprep.subr.mxu0 0.0
    %1633 = vmatpush1.xpose.msra.mxu0 0.0
    %1634 = vmatprep.subr.mxu0 0.0
    %1635 = vmatpush1.xpose.msra.mxu0 0.0
    %1636 = vmatprep.subr.mxu0 0.0
    %1637 = vmatpush1.xpose.msra.mxu0 0.0
    %1638 = vmatprep.subr.mxu0 0.0
    %1639 = vmatpush1.xpose.msra.mxu0 0.0
    %1640 = vmatprep.subr.mxu0 0.0
    %1641 = vmatpush1.xpose.msra.mxu0 0.0
    %1642 = vmatprep.subr.mxu0 0.0
    %1643 = vmatpush1.xpose.msra.mxu0 0.0
    %1644 = vmatprep.subr.mxu0 0.0
    %1645 = vmatpush1.xpose.msra.mxu0 0.0
    %1646 = vmatprep.subr.mxu0 0.0
    %1647 = vmatpush1.xpose.msra.mxu0 0.0
    %1648 = vmatprep.subr.mxu0 0.0
    %1649 = vmatpush1.xpose.msra.mxu0 0.0
    %1650 = vmatprep.subr.mxu0 0.0
    %1651 = vmatpush1.xpose.msra.mxu0 0.0
    %1652 = vmatprep.subr.mxu0 0.0
    %1653 = vmatpush1.xpose.msra.mxu0 0.0
    %1654 = vmatprep.subr.mxu0 0.0
    %1655 = vmatpush1.xpose.msra.mxu0 0.0
    %1656 = vmatprep.subr.mxu0 0.0
    %1657 = vmatpush1.xpose.msra.mxu0 0.0
    %1658 = vmatprep.subr.mxu0 0.0
    %1659 = vmatpush1.xpose.msra.mxu0 0.0
    %1660 = vmatprep.subr.mxu0 0.0
    %1661 = vmatpush1.xpose.msra.mxu0 0.0
    %1662 = vmatprep.subr.mxu0 0.0
    %1663 = vmatpush1.xpose.msra.mxu0 0.0
    %1664 = vmatprep.subr.mxu0 0.0
    %1665 = vmatpush1.xpose.msra.mxu0 0.0
    %1666 = vmatprep.subr.mxu0 0.0
    %1667 = vmatpush1.xpose.msra.mxu0 0.0
    %1668 = vmatprep.subr.mxu0 0.0
    %1669 = vmatpush1.xpose.msra.mxu0 0.0
    %1670 = vmatprep.subr.mxu0 0.0
    %1671 = vmatpush1.xpose.msra.mxu0 0.0
    %1672 = vmatprep.subr.mxu0 0.0
    %1673 = vmatpush1.xpose.msra.mxu0 0.0
    %1674 = vmatprep.subr.mxu0 0.0
    %1675 = vmatpush1.xpose.msra.mxu0 0.0
    %1676 = vmatprep.subr.mxu0 0.0
    %1677 = vmatpush1.xpose.msra.mxu0 0.0
    %1678 = vmatprep.subr.mxu0 0.0
    %1679 = vmatpush1.xpose.msra.mxu0 0.0
    %1680 = vmatprep.subr.mxu0 0.0
    %1681 = vmatpush1.xpose.msra.mxu0 0.0
    %1682 = vmatprep.subr.mxu0 0.0
    %1683 = vmatpush1.xpose.msra.mxu0 0.0
    %1684 = vmatprep.subr.mxu0 0.0
    %1685 = vmatpush1.xpose.msra.mxu0 0.0
    %1686 = vmatprep.mubr.f32.mxu0 0.0
    %1687 = vmatmul.mubr.f32.gmra.mrb[0].mxu0 %v1618
    %v1688 = vpop.f32.mrb[0].mxu0
    %v1689 = vadd.f32 %v379, %v1688
    %v1690 = vpop.f32.mrb[0].mxu0
    %1691 = vdwg.mxu0
    %1692 = vrot.lane.b32.xlu0 %v199, 104
    %v1693 = vpop.permute.xlu0 %1692
    %1694 = vrot.lane.b32.xlu0 %v285, 104
    %v1695 = vpop.permute.xlu0 %1694
    %v1696 = vsel %vm386, %v1693, 0
    %v1698 = vsel %vm386, %v1695, 0
    %1700 = vmatprep.subr.mxu0 0.0
    %1701 = vmatpush1.xpose.msra.mxu0 %v1698
    %1702 = vmatprep.subr.mxu0 0.0
    %1703 = vmatpush1.xpose.msra.mxu0 0.0
    %1704 = vmatprep.subr.mxu0 0.0
    %1705 = vmatpush1.xpose.msra.mxu0 0.0
    %1706 = vmatprep.subr.mxu0 0.0
    %1707 = vmatpush1.xpose.msra.mxu0 0.0
    %1708 = vmatprep.subr.mxu0 0.0
    %1709 = vmatpush1.xpose.msra.mxu0 0.0
    %1710 = vmatprep.subr.mxu0 0.0
    %1711 = vmatpush1.xpose.msra.mxu0 0.0
    %1712 = vmatprep.subr.mxu0 0.0
    %1713 = vmatpush1.xpose.msra.mxu0 0.0
    %1714 = vmatprep.subr.mxu0 0.0
    %1715 = vmatpush1.xpose.msra.mxu0 0.0
    %1716 = vmatprep.subr.mxu0 0.0
    %1717 = vmatpush1.xpose.msra.mxu0 0.0
    %1718 = vmatprep.subr.mxu0 0.0
    %1719 = vmatpush1.xpose.msra.mxu0 0.0
    %1720 = vmatprep.subr.mxu0 0.0
    %1721 = vmatpush1.xpose.msra.mxu0 0.0
    %1722 = vmatprep.subr.mxu0 0.0
    %1723 = vmatpush1.xpose.msra.mxu0 0.0
    %1724 = vmatprep.subr.mxu0 0.0
    %1725 = vmatpush1.xpose.msra.mxu0 0.0
    %1726 = vmatprep.subr.mxu0 0.0
    %1727 = vmatpush1.xpose.msra.mxu0 0.0
    %1728 = vmatprep.subr.mxu0 0.0
    %1729 = vmatpush1.xpose.msra.mxu0 0.0
    %1730 = vmatprep.subr.mxu0 0.0
    %1731 = vmatpush1.xpose.msra.mxu0 0.0
    %1732 = vmatprep.subr.mxu0 0.0
    %1733 = vmatpush1.xpose.msra.mxu0 0.0
    %1734 = vmatprep.subr.mxu0 0.0
    %1735 = vmatpush1.xpose.msra.mxu0 0.0
    %1736 = vmatprep.subr.mxu0 0.0
    %1737 = vmatpush1.xpose.msra.mxu0 0.0
    %1738 = vmatprep.subr.mxu0 0.0
    %1739 = vmatpush1.xpose.msra.mxu0 0.0
    %1740 = vmatprep.subr.mxu0 0.0
    %1741 = vmatpush1.xpose.msra.mxu0 0.0
    %1742 = vmatprep.subr.mxu0 0.0
    %1743 = vmatpush1.xpose.msra.mxu0 0.0
    %1744 = vmatprep.subr.mxu0 0.0
    %1745 = vmatpush1.xpose.msra.mxu0 0.0
    %1746 = vmatprep.subr.mxu0 0.0
    %1747 = vmatpush1.xpose.msra.mxu0 0.0
    %1748 = vmatprep.subr.mxu0 0.0
    %1749 = vmatpush1.xpose.msra.mxu0 0.0
    %1750 = vmatprep.subr.mxu0 0.0
    %1751 = vmatpush1.xpose.msra.mxu0 0.0
    %1752 = vmatprep.subr.mxu0 0.0
    %1753 = vmatpush1.xpose.msra.mxu0 0.0
    %1754 = vmatprep.subr.mxu0 0.0
    %1755 = vmatpush1.xpose.msra.mxu0 0.0
    %1756 = vmatprep.subr.mxu0 0.0
    %1757 = vmatpush1.xpose.msra.mxu0 0.0
    %1758 = vmatprep.subr.mxu0 0.0
    %1759 = vmatpush1.xpose.msra.mxu0 0.0
    %1760 = vmatprep.subr.mxu0 0.0
    %1761 = vmatpush1.xpose.msra.mxu0 0.0
    %1762 = vmatprep.subr.mxu0 0.0
    %1763 = vmatpush1.xpose.msra.mxu0 0.0
    %1764 = vmatprep.mubr.f32.mxu0 0.0
    %1765 = vmatmul.mubr.f32.gmra.mrb[0].mxu0 %v1696
    %v1766 = vpop.f32.mrb[0].mxu0
    %v1767 = vadd.f32 %v383, %v1766
    %v1768 = vpop.f32.mrb[0].mxu0
    %1769 = vdwg.mxu0
    %v1770 = vsel %vm386, %v1689, -inf
    %1771 = vmax.xlane.f32.xlu0 %v1770
    %v1772 = vpop.xlane.xlu0 %1771
    %v1773 = vsel %vm386, %v1767, -inf
    %1774 = vmax.xlane.f32.xlu0 %v1773
    %v1775 = vpop.xlane.xlu0 %1774
    %v1776 = vsub.f32 %v1689, %v1772
    %v1777 = vsub.f32 %v1767, %v1775
    %v1778 = vmul.f32 %v1776, 1.442695
    %v1779 = vpow.pop %v1778
    %v1780 = vmul.f32 %v1777, 1.442695
    %v1781 = vpow.pop %v1780
    %v1782 = vsel %vm386, %v1779, 0.0
    %1783 = vadd.xlane.f32.xlu0 %v1782
    %v1784 = vpop.xlane.xlu0 %1783
    %v1785 = vsel %vm386, %v1781, 0.0
    %1786 = vadd.xlane.f32.xlu0 %v1785
    %v1787 = vpop.xlane.xlu0 %1786
    %v1788 = vrcp.pop %v1784
    %v1789 = vrcp.pop %v1787
    %v1790 = vmul.f32 %v1779, %v1788
    %v1791 = vmul.f32 %v1781, %v1789
    %1792 = vrot.lane.b32.xlu0 %v366, 104
    %v1793 = vpop.permute.xlu0 %1792
    %v1796 = vsel %vm386, %v1790, 0
    %1798 = vmatprep.subr.mxu0 0.0
    %1799 = vmatpush1.msra.mxu0 %v1793
    %1800 = vmatprep.subr.mxu0 0.0
    %1801 = vmatpush1.msra.mxu0 0.0
    %1802 = vmatprep.subr.mxu0 0.0
    %1803 = vmatpush1.msra.mxu0 0.0
    %1804 = vmatprep.subr.mxu0 0.0
    %1805 = vmatpush1.msra.mxu0 0.0
    %1806 = vmatprep.subr.mxu0 0.0
    %1807 = vmatpush1.msra.mxu0 0.0
    %1808 = vmatprep.subr.mxu0 0.0
    %1809 = vmatpush1.msra.mxu0 0.0
    %1810 = vmatprep.subr.mxu0 0.0
    %1811 = vmatpush1.msra.mxu0 0.0
    %1812 = vmatprep.subr.mxu0 0.0
    %1813 = vmatpush1.msra.mxu0 0.0
    %1814 = vmatprep.subr.mxu0 0.0
    %1815 = vmatpush1.msra.mxu0 0.0
    %1816 = vmatprep.subr.mxu0 0.0
    %1817 = vmatpush1.msra.mxu0 0.0
    %1818 = vmatprep.subr.mxu0 0.0
    %1819 = vmatpush1.msra.mxu0 0.0
    %1820 = vmatprep.subr.mxu0 0.0
    %1821 = vmatpush1.msra.mxu0 0.0
    %1822 = vmatprep.subr.mxu0 0.0
    %1823 = vmatpush1.msra.mxu0 0.0
    %1824 = vmatprep.subr.mxu0 0.0
    %1825 = vmatpush1.msra.mxu0 0.0
    %1826 = vmatprep.subr.mxu0 0.0
    %1827 = vmatpush1.msra.mxu0 0.0
    %1828 = vmatprep.subr.mxu0 0.0
    %1829 = vmatpush1.msra.mxu0 0.0
    %1830 = vmatprep.subr.mxu0 0.0
    %1831 = vmatpush1.msra.mxu0 0.0
    %1832 = vmatprep.subr.mxu0 0.0
    %1833 = vmatpush1.msra.mxu0 0.0
    %1834 = vmatprep.subr.mxu0 0.0
    %1835 = vmatpush1.msra.mxu0 0.0
    %1836 = vmatprep.subr.mxu0 0.0
    %1837 = vmatpush1.msra.mxu0 0.0
    %1838 = vmatprep.subr.mxu0 0.0
    %1839 = vmatpush1.msra.mxu0 0.0
    %1840 = vmatprep.subr.mxu0 0.0
    %1841 = vmatpush1.msra.mxu0 0.0
    %1842 = vmatprep.subr.mxu0 0.0
    %1843 = vmatpush1.msra.mxu0 0.0
    %1844 = vmatprep.subr.mxu0 0.0
    %1845 = vmatpush1.msra.mxu0 0.0
    %1846 = vmatprep.subr.mxu0 0.0
    %1847 = vmatpush1.msra.mxu0 0.0
    %1848 = vmatprep.subr.mxu0 0.0
    %1849 = vmatpush1.msra.mxu0 0.0
    %1850 = vmatprep.subr.mxu0 0.0
    %1851 = vmatpush1.msra.mxu0 0.0
    %1852 = vmatprep.subr.mxu0 0.0
    %1853 = vmatpush1.msra.mxu0 0.0
    %1854 = vmatprep.subr.mxu0 0.0
    %1855 = vmatpush1.msra.mxu0 0.0
    %1856 = vmatprep.subr.mxu0 0.0
    %1857 = vmatpush1.msra.mxu0 0.0
    %1858 = vmatprep.subr.mxu0 0.0
    %1859 = vmatpush1.msra.mxu0 0.0
    %1860 = vmatprep.subr.mxu0 0.0
    %1861 = vmatpush1.msra.mxu0 0.0
    %1862 = vmatprep.mubr.f32.mxu0 0.0
    %1863 = vmatmul.mubr.f32.gmra.mrb[0].mxu0 %v1796
    %v1864 = vpop.f32.mrb[0].mxu0
    %v1865 = vadd.f32 0.0, %v1864
    %v1866 = vpop.f32.mrb[0].mxu0
    %1867 = vdwg.mxu0
    %1868 = vrot.lane.b32.xlu0 %v371, 104
    %v1869 = vpop.permute.xlu0 %1868
    %v1872 = vsel %vm386, %v1791, 0
    %1874 = vmatprep.subr.mxu0 0.0
    %1875 = vmatpush1.msra.mxu0 %v1869
    %1876 = vmatprep.subr.mxu0 0.0
    %1877 = vmatpush1.msra.mxu0 0.0
    %1878 = vmatprep.subr.mxu0 0.0
    %1879 = vmatpush1.msra.mxu0 0.0
    %1880 = vmatprep.subr.mxu0 0.0
    %1881 = vmatpush1.msra.mxu0 0.0
    %1882 = vmatprep.subr.mxu0 0.0
    %1883 = vmatpush1.msra.mxu0 0.0
    %1884 = vmatprep.subr.mxu0 0.0
    %1885 = vmatpush1.msra.mxu0 0.0
    %1886 = vmatprep.subr.mxu0 0.0
    %1887 = vmatpush1.msra.mxu0 0.0
    %1888 = vmatprep.subr.mxu0 0.0
    %1889 = vmatpush1.msra.mxu0 0.0
    %1890 = vmatprep.subr.mxu0 0.0
    %1891 = vmatpush1.msra.mxu0 0.0
    %1892 = vmatprep.subr.mxu0 0.0
    %1893 = vmatpush1.msra.mxu0 0.0
    %1894 = vmatprep.subr.mxu0 0.0
    %1895 = vmatpush1.msra.mxu0 0.0
    %1896 = vmatprep.subr.mxu0 0.0
    %1897 = vmatpush1.msra.mxu0 0.0
    %1898 = vmatprep.subr.mxu0 0.0
    %1899 = vmatpush1.msra.mxu0 0.0
    %1900 = vmatprep.subr.mxu0 0.0
    %1901 = vmatpush1.msra.mxu0 0.0
    %1902 = vmatprep.subr.mxu0 0.0
    %1903 = vmatpush1.msra.mxu0 0.0
    %1904 = vmatprep.subr.mxu0 0.0
    %1905 = vmatpush1.msra.mxu0 0.0
    %1906 = vmatprep.subr.mxu0 0.0
    %1907 = vmatpush1.msra.mxu0 0.0
    %1908 = vmatprep.subr.mxu0 0.0
    %1909 = vmatpush1.msra.mxu0 0.0
    %1910 = vmatprep.subr.mxu0 0.0
    %1911 = vmatpush1.msra.mxu0 0.0
    %1912 = vmatprep.subr.mxu0 0.0
    %1913 = vmatpush1.msra.mxu0 0.0
    %1914 = vmatprep.subr.mxu0 0.0
    %1915 = vmatpush1.msra.mxu0 0.0
    %1916 = vmatprep.subr.mxu0 0.0
    %1917 = vmatpush1.msra.mxu0 0.0
    %1918 = vmatprep.subr.mxu0 0.0
    %1919 = vmatpush1.msra.mxu0 0.0
    %1920 = vmatprep.subr.mxu0 0.0
    %1921 = vmatpush1.msra.mxu0 0.0
    %1922 = vmatprep.subr.mxu0 0.0
    %1923 = vmatpush1.msra.mxu0 0.0
    %1924 = vmatprep.subr.mxu0 0.0
    %1925 = vmatpush1.msra.mxu0 0.0
    %1926 = vmatprep.subr.mxu0 0.0
    %1927 = vmatpush1.msra.mxu0 0.0
    %1928 = vmatprep.subr.mxu0 0.0
    %1929 = vmatpush1.msra.mxu0 0.0
    %1930 = vmatprep.subr.mxu0 0.0
    %1931 = vmatpush1.msra.mxu0 0.0
    %1932 = vmatprep.subr.mxu0 0.0
    %1933 = vmatpush1.msra.mxu0 0.0
    %1934 = vmatprep.subr.mxu0 0.0
    %1935 = vmatpush1.msra.mxu0 0.0
    %1936 = vmatprep.subr.mxu0 0.0
    %1937 = vmatpush1.msra.mxu0 0.0
    %1938 = vmatprep.mubr.f32.mxu0 0.0
    %1939 = vmatmul.mubr.f32.gmra.mrb[0].mxu0 %v1872
    %v1940 = vpop.f32.mrb[0].mxu0
    %v1941 = vadd.f32 0.0, %v1940
    %v1942 = vpop.f32.mrb[0].mxu0
    %1943 = vdwg.mxu0
    %v1945 = vsel %vm386, %v1865, 0
    %v1948 = vsel %vm386, %v1941, 0
    %1950 = vmatprep.subr.mxu0 0.0
    %1951 = vmatpush1.msra.mxu0 %v108
    %1952 = vmatprep.subr.mxu0 0.0
    %1953 = vmatpush1.msra.mxu0 0.0
    %1954 = vmatprep.subr.mxu0 0.0
    %1955 = vmatpush1.msra.mxu0 0.0
    %1956 = vmatprep.subr.mxu0 0.0
    %1957 = vmatpush1.msra.mxu0 0.0
    %1958 = vmatprep.subr.mxu0 0.0
    %1959 = vmatpush1.msra.mxu0 0.0
    %1960 = vmatprep.subr.mxu0 0.0
    %1961 = vmatpush1.msra.mxu0 0.0
    %1962 = vmatprep.subr.mxu0 0.0
    %1963 = vmatpush1.msra.mxu0 0.0
    %1964 = vmatprep.subr.mxu0 0.0
    %1965 = vmatpush1.msra.mxu0 0.0
    %1966 = vmatprep.subr.mxu0 0.0
    %1967 = vmatpush1.msra.mxu0 0.0
    %1968 = vmatprep.subr.mxu0 0.0
    %1969 = vmatpush1.msra.mxu0 0.0
    %1970 = vmatprep.subr.mxu0 0.0
    %1971 = vmatpush1.msra.mxu0 0.0
    %1972 = vmatprep.subr.mxu0 0.0
    %1973 = vmatpush1.msra.mxu0 0.0
    %1974 = vmatprep.subr.mxu0 0.0
    %1975 = vmatpush1.msra.mxu0 0.0
    %1976 = vmatprep.subr.mxu0 0.0
    %1977 = vmatpush1.msra.mxu0 0.0
    %1978 = vmatprep.subr.mxu0 0.0
    %1979 = vmatpush1.msra.mxu0 0.0
    %1980 = vmatprep.subr.mxu0 0.0
    %1981 = vmatpush1.msra.mxu0 0.0
    %1982 = vmatprep.subr.mxu0 0.0
    %1983 = vmatpush1.msra.mxu0 0.0
    %1984 = vmatprep.subr.mxu0 0.0
    %1985 = vmatpush1.msra.mxu0 0.0
    %1986 = vmatprep.subr.mxu0 0.0
    %1987 = vmatpush1.msra.mxu0 0.0
    %1988 = vmatprep.subr.mxu0 0.0
    %1989 = vmatpush1.msra.mxu0 0.0
    %1990 = vmatprep.subr.mxu0 0.0
    %1991 = vmatpush1.msra.mxu0 0.0
    %1992 = vmatprep.subr.mxu0 0.0
    %1993 = vmatpush1.msra.mxu0 0.0
    %1994 = vmatprep.subr.mxu0 0.0
    %1995 = vmatpush1.msra.mxu0 0.0
    %1996 = vmatprep.subr.mxu0 0.0
    %1997 = vmatpush1.msra.mxu0 0.0
    %1998 = vmatprep.subr.mxu0 0.0
    %1999 = vmatpush1.msra.mxu0 0.0
    %2000 = vmatprep.subr.mxu0 0.0
    %2001 = vmatpush1.msra.mxu0 0.0
    %2002 = vmatprep.subr.mxu0 0.0
    %2003 = vmatpush1.msra.mxu0 0.0
    %2004 = vmatprep.subr.mxu0 0.0
    %2005 = vmatpush1.msra.mxu0 0.0
    %2006 = vmatprep.subr.mxu0 0.0
    %2007 = vmatpush1.msra.mxu0 0.0
    %2008 = vmatprep.subr.mxu0 0.0
    %2009 = vmatpush1.msra.mxu0 0.0
    %2010 = vmatprep.subr.mxu0 0.0
    %2011 = vmatpush1.msra.mxu0 0.0
    %2012 = vmatprep.subr.mxu0 0.0
    %2013 = vmatpush1.msra.mxu0 0.0
    %2014 = vmatprep.mubr.f32.mxu0 0.0
    %2015 = vmatmul.mubr.f32.gmra.mrb[0].mxu0 %v1945
    %v2016 = vpop.f32.mrb[0].mxu0
    %v2017 = vadd.f32 0.0, %v2016
    %v2018 = vpop.f32.mrb[0].mxu0
    %2019 = vmatprep.mubr.f32.mxu0 0.0
    %2020 = vmatmul.mubr.f32.gmra.mrb[0].mxu0 %v1948
    %v2021 = vpop.f32.mrb[0].mxu0
    %v2022 = vadd.f32 0.0, %v2021
    %v2023 = vpop.f32.mrb[0].mxu0
    %2024 = vdwg.mxu0
    %v2025 = vadd.f32 %v1612, %v2017
    %v2026 = vadd.f32 %v1613, %v2022
    %v2027 = vld [vmem:[%s9] sm:$0x1]
    %v2029 = vlaneseq
    %v2030 = vshrl.u32 %v2029, 7
    %v2031 = vsub.s32 0, %v2030
    %v2032 = vrot.slane %v2027, %v2031
    %v2034 = vadd.f32 %v2025, %v2032
    %v2035 = vadd.f32 %v2026, %v2032
    %v2036 = vadd.f32 %v101, %v2034
    %v2037 = vadd.f32 %v102, %v2035
    %v2038 = vld [vmem:[%s10] sm:$0x1]
    %v2039 = vld [vmem:[%s11] sm:$0x1]
    %v2040 = vsel %vm120, %v2036, 0.0
    %2041 = vadd.xlane.f32.xlu0 %v2040
    %v2042 = vpop.xlane.xlu0 %2041
    %v2043 = vsel %vm120, %v2037, 0.0
    %2044 = vadd.xlane.f32.xlu0 %v2043
    %v2045 = vpop.xlane.xlu0 %2044
    %v2046 = vrcp.pop 32.0
    %v2047 = vmul.f32 %v2042, %v2046
    %v2048 = vmul.f32 %v2045, %v2046
    %v2049 = vmul.f32 %v2036, %v2036
    %v2050 = vmul.f32 %v2037, %v2037
    %v2051 = vsel %vm120, %v2049, 0.0
    %2052 = vadd.xlane.f32.xlu0 %v2051
    %v2053 = vpop.xlane.xlu0 %2052
    %v2054 = vsel %vm120, %v2050, 0.0
    %2055 = vadd.xlane.f32.xlu0 %v2054
    %v2056 = vpop.xlane.xlu0 %2055
    %v2057 = vmul.f32 %v2053, %v2046
    %v2058 = vmul.f32 %v2056, %v2046
    %v2059 = vmul.f32 %v2047, %v2047
    %v2060 = vmul.f32 %v2048, %v2048
    %v2061 = vsub.f32 %v2057, %v2059
    %v2062 = vsub.f32 %v2058, %v2060
    %v2063 = vsub.f32 %v2036, %v2047
    %v2064 = vsub.f32 %v2037, %v2048
    %v2065 = vadd.f32 %v2061, 1e-05
    %v2066 = vadd.f32 %v2062, 1e-05
    %v2067 = vrsqrt.pop %v2065
    %v2068 = vrsqrt.pop %v2066
    %v2069 = vmul.f32 %v2063, %v2067
    %v2070 = vmul.f32 %v2064, %v2068
    %v2072 = vlaneseq
    %v2073 = vshrl.u32 %v2072, 7
    %v2074 = vsub.s32 0, %v2073
    %v2075 = vrot.slane %v2038, %v2074
    %v2077 = vmul.f32 %v2069, %v2075
    %v2078 = vmul.f32 %v2070, %v2075
    %v2080 = vlaneseq
    %v2081 = vshrl.u32 %v2080, 7
    %v2082 = vsub.s32 0, %v2081
    %v2083 = vrot.slane %v2039, %v2082
    %v2085 = vadd.f32 %v2077, %v2083
    %v2086 = vadd.f32 %v2078, %v2083
    %v2087 = vld [vmem:[#allocation7] sm:$0xff]
    %v2088 = vld [vmem:[#allocation7 + $0x8] sm:$0xff]
    %v2089 = vld [vmem:[#allocation7 + $0x10] sm:$0xff]
    %v2090 = vld [vmem:[#allocation7 + $0x18] sm:$0xff]
    %v2091 = vld [vmem:[%s15] sm:$0x1]
    %v2093 = vlaneseq
    %v2094 = vshrl.u32 %v2093, 7
    %v2095 = vsub.s32 0, %v2094
    %v2096 = vrot.slane %v2091, %v2095
    %v2099 = vsel %vm120, %v2085, 0
    %v2102 = vsel %vm120, %v2086, 0
    %2104 = vmatprep.subr.mxu0 0.0
    %2105 = vmatpush1.msra.mxu0 %v2087
    %2106 = vmatprep.subr.mxu0 0.0
    %2107 = vmatpush1.msra.mxu0 %v2088
    %2108 = vmatprep.subr.mxu0 0.0
    %2109 = vmatpush1.msra.mxu0 %v2089
    %2110 = vmatprep.subr.mxu0 0.0
    %2111 = vmatpush1.msra.mxu0 %v2090
    %2112 = vmatprep.subr.mxu0 0.0
    %2113 = vmatpush1.msra.mxu0 0.0
    %2114 = vmatprep.subr.mxu0 0.0
    %2115 = vmatpush1.msra.mxu0 0.0
    %2116 = vmatprep.subr.mxu0 0.0
    %2117 = vmatpush1.msra.mxu0 0.0
    %2118 = vmatprep.subr.mxu0 0.0
    %2119 = vmatpush1.msra.mxu0 0.0
    %2120 = vmatprep.subr.mxu0 0.0
    %2121 = vmatpush1.msra.mxu0 0.0
    %2122 = vmatprep.subr.mxu0 0.0
    %2123 = vmatpush1.msra.mxu0 0.0
    %2124 = vmatprep.subr.mxu0 0.0
    %2125 = vmatpush1.msra.mxu0 0.0
    %2126 = vmatprep.subr.mxu0 0.0
    %2127 = vmatpush1.msra.mxu0 0.0
    %2128 = vmatprep.subr.mxu0 0.0
    %2129 = vmatpush1.msra.mxu0 0.0
    %2130 = vmatprep.subr.mxu0 0.0
    %2131 = vmatpush1.msra.mxu0 0.0
    %2132 = vmatprep.subr.mxu0 0.0
    %2133 = vmatpush1.msra.mxu0 0.0
    %2134 = vmatprep.subr.mxu0 0.0
    %2135 = vmatpush1.msra.mxu0 0.0
    %2136 = vmatprep.subr.mxu0 0.0
    %2137 = vmatpush1.msra.mxu0 0.0
    %2138 = vmatprep.subr.mxu0 0.0
    %2139 = vmatpush1.msra.mxu0 0.0
    %2140 = vmatprep.subr.mxu0 0.0
    %2141 = vmatpush1.msra.mxu0 0.0
    %2142 = vmatprep.subr.mxu0 0.0
    %2143 = vmatpush1.msra.mxu0 0.0
    %2144 = vmatprep.subr.mxu0 0.0
    %2145 = vmatpush1.msra.mxu0 0.0
    %2146 = vmatprep.subr.mxu0 0.0
    %2147 = vmatpush1.msra.mxu0 0.0
    %2148 = vmatprep.subr.mxu0 0.0
    %2149 = vmatpush1.msra.mxu0 0.0
    %2150 = vmatprep.subr.mxu0 0.0
    %2151 = vmatpush1.msra.mxu0 0.0
    %2152 = vmatprep.subr.mxu0 0.0
    %2153 = vmatpush1.msra.mxu0 0.0
    %2154 = vmatprep.subr.mxu0 0.0
    %2155 = vmatpush1.msra.mxu0 0.0
    %2156 = vmatprep.subr.mxu0 0.0
    %2157 = vmatpush1.msra.mxu0 0.0
    %2158 = vmatprep.subr.mxu0 0.0
    %2159 = vmatpush1.msra.mxu0 0.0
    %2160 = vmatprep.subr.mxu0 0.0
    %2161 = vmatpush1.msra.mxu0 0.0
    %2162 = vmatprep.subr.mxu0 0.0
    %2163 = vmatpush1.msra.mxu0 0.0
    %2164 = vmatprep.subr.mxu0 0.0
    %2165 = vmatpush1.msra.mxu0 0.0
    %2166 = vmatprep.subr.mxu0 0.0
    %2167 = vmatpush1.msra.mxu0 0.0
    %2168 = vmatprep.mubr.f32.mxu0 0.0
    %2169 = vmatmul.mubr.f32.gmra.mrb[0].mxu0 %v2099
    %v2170 = vpop.f32.mrb[0].mxu0
    %v2171 = vadd.f32 %v2096, %v2170
    %v2172 = vpop.f32.mrb[0].mxu0
    %2173 = vmatprep.mubr.f32.mxu0 0.0
    %2174 = vmatmul.mubr.f32.gmra.mrb[0].mxu0 %v2102
    %v2175 = vpop.f32.mrb[0].mxu0
    %v2176 = vadd.f32 %v2096, %v2175
    %v2177 = vpop.f32.mrb[0].mxu0
    %2178 = vdwg.mxu0
    %v2179 = vmax.f32 %v2171, 0.0
    %v2180 = vmax.f32 %v2176, 0.0
    %v2181 = vld [vmem:[%s16] sm:$0xff]
    %v2182 = vld [vmem:[%s16 + $0x8] sm:$0xff]
    %v2183 = vld [vmem:[%s16 + $0x10] sm:$0xff]
    %v2184 = vld [vmem:[%s16 + $0x18] sm:$0xff]
    %v2185 = vld [vmem:[%s16 + $0x20] sm:$0xff]
    %v2186 = vld [vmem:[%s16 + $0x28] sm:$0xff]
    %v2187 = vld [vmem:[%s16 + $0x30] sm:$0xff]
    %v2188 = vld [vmem:[%s16 + $0x38] sm:$0xff]
    %v2189 = vld [vmem:[%s17] sm:$0x1]
    %v2191 = vlaneseq
    %v2192 = vshrl.u32 %v2191, 7
    %v2193 = vsub.s32 0, %v2192
    %v2194 = vrot.slane %v2189, %v2193
    %vm2196 = vcmask 523264
    %v2198 = vsel %vm2196, %v2179, 0
    %v2201 = vsel %vm2196, %v2180, 0
    %2203 = vmatprep.subr.mxu0 0.0
    %2204 = vmatpush1.msra.mxu0 %v2181
    %2205 = vmatprep.subr.mxu0 0.0
    %2206 = vmatpush1.msra.mxu0 %v2182
    %2207 = vmatprep.subr.mxu0 0.0
    %2208 = vmatpush1.msra.mxu0 %v2183
    %2209 = vmatprep.subr.mxu0 0.0
    %2210 = vmatpush1.msra.mxu0 %v2184
    %2211 = vmatprep.subr.mxu0 0.0
    %2212 = vmatpush1.msra.mxu0 %v2185
    %2213 = vmatprep.subr.mxu0 0.0
    %2214 = vmatpush1.msra.mxu0 %v2186
    %2215 = vmatprep.subr.mxu0 0.0
    %2216 = vmatpush1.msra.mxu0 %v2187
    %2217 = vmatprep.subr.mxu0 0.0
    %2218 = vmatpush1.msra.mxu0 %v2188
    %2219 = vmatprep.subr.mxu0 0.0
    %2220 = vmatpush1.msra.mxu0 0.0
    %2221 = vmatprep.subr.mxu0 0.0
    %2222 = vmatpush1.msra.mxu0 0.0
    %2223 = vmatprep.subr.mxu0 0.0
    %2224 = vmatpush1.msra.mxu0 0.0
    %2225 = vmatprep.subr.mxu0 0.0
    %2226 = vmatpush1.msra.mxu0 0.0
    %2227 = vmatprep.subr.mxu0 0.0
    %2228 = vmatpush1.msra.mxu0 0.0
    %2229 = vmatprep.subr.mxu0 0.0
    %2230 = vmatpush1.msra.mxu0 0.0
    %2231 = vmatprep.subr.mxu0 0.0
    %2232 = vmatpush1.msra.mxu0 0.0
    %2233 = vmatprep.subr.mxu0 0.0
    %2234 = vmatpush1.msra.mxu0 0.0
    %2235 = vmatprep.subr.mxu0 0.0
    %2236 = vmatpush1.msra.mxu0 0.0
    %2237 = vmatprep.subr.mxu0 0.0
    %2238 = vmatpush1.msra.mxu0 0.0
    %2239 = vmatprep.subr.mxu0 0.0
    %2240 = vmatpush1.msra.mxu0 0.0
    %2241 = vmatprep.subr.mxu0 0.0
    %2242 = vmatpush1.msra.mxu0 0.0
    %2243 = vmatprep.subr.mxu0 0.0
    %2244 = vmatpush1.msra.mxu0 0.0
    %2245 = vmatprep.subr.mxu0 0.0
    %2246 = vmatpush1.msra.mxu0 0.0
    %2247 = vmatprep.subr.mxu0 0.0
    %2248 = vmatpush1.msra.mxu0 0.0
    %2249 = vmatprep.subr.mxu0 0.0
    %2250 = vmatpush1.msra.mxu0 0.0
    %2251 = vmatprep.subr.mxu0 0.0
    %2252 = vmatpush1.msra.mxu0 0.0
    %2253 = vmatprep.subr.mxu0 0.0
    %2254 = vmatpush1.msra.mxu0 0.0
    %2255 = vmatprep.subr.mxu0 0.0
    %2256 = vmatpush1.msra.mxu0 0.0
    %2257 = vmatprep.subr.mxu0 0.0
    %2258 = vmatpush1.msra.mxu0 0.0
    %2259 = vmatprep.subr.mxu0 0.0
    %2260 = vmatpush1.msra.mxu0 0.0
    %2261 = vmatprep.subr.mxu0 0.0
    %2262 = vmatpush1.msra.mxu0 0.0
    %2263 = vmatprep.subr.mxu0 0.0
    %2264 = vmatpush1.msra.mxu0 0.0
    %2265 = vmatprep.subr.mxu0 0.0
    %2266 = vmatpush1.msra.mxu0 0.0
    %2267 = vmatprep.mubr.f32.mxu0 0.0
    %2268 = vmatmul.mubr.f32.gmra.mrb[0].mxu0 %v2198
    %v2269 = vpop.f32.mrb[0].mxu0
    %v2270 = vadd.f32 %v2194, %v2269
    %v2271 = vpop.f32.mrb[0].mxu0
    %2272 = vmatprep.mubr.f32.mxu0 0.0
    %2273 = vmatmul.mubr.f32.gmra.mrb[0].mxu0 %v2201
    %v2274 = vpop.f32.mrb[0].mxu0
    %v2275 = vadd.f32 %v2194, %v2274
    %v2276 = vpop.f32.mrb[0].mxu0
    %2277 = vdwg.mxu0
    %v2278 = vadd.f32 %v2085, %v2270
    %v2279 = vadd.f32 %v2086, %v2275
    %v2280 = vld [vmem:[%s12] sm:$0x1]
    %v2281 = vld [vmem:[%s13] sm:$0x1]
    %v2282 = vsel %vm120, %v2278, 0.0
    %2283 = vadd.xlane.f32.xlu0 %v2282
    %v2284 = vpop.xlane.xlu0 %2283
    %v2285 = vsel %vm120, %v2279, 0.0
    %2286 = vadd.xlane.f32.xlu0 %v2285
    %v2287 = vpop.xlane.xlu0 %2286
    %v2288 = vmul.f32 %v2284, %v2046
    %v2289 = vmul.f32 %v2287, %v2046
    %v2290 = vmul.f32 %v2278, %v2278
    %v2291 = vmul.f32 %v2279, %v2279
    %v2292 = vsel %vm120, %v2290, 0.0
    %2293 = vadd.xlane.f32.xlu0 %v2292
    %v2294 = vpop.xlane.xlu0 %2293
    %v2295 = vsel %vm120, %v2291, 0.0
    %2296 = vadd.xlane.f32.xlu0 %v2295
    %v2297 = vpop.xlane.xlu0 %2296
    %v2298 = vmul.f32 %v2294, %v2046
    %v2299 = vmul.f32 %v2297, %v2046
    %v2300 = vmul.f32 %v2288, %v2288
    %v2301 = vmul.f32 %v2289, %v2289
    %v2302 = vsub.f32 %v2298, %v2300
    %v2303 = vsub.f32 %v2299, %v2301
    %v2304 = vsub.f32 %v2278, %v2288
    %v2305 = vsub.f32 %v2279, %v2289
    %v2306 = vadd.f32 %v2302, 1e-05
    %v2307 = vadd.f32 %v2303, 1e-05
    %v2308 = vrsqrt.pop %v2306
    %v2309 = vrsqrt.pop %v2307
    %v2310 = vmul.f32 %v2304, %v2308
    %v2311 = vmul.f32 %v2305, %v2309
    %v2313 = vlaneseq
    %v2314 = vshrl.u32 %v2313, 7
    %v2315 = vsub.s32 0, %v2314
    %v2316 = vrot.slane %v2280, %v2315
    %v2318 = vmul.f32 %v2310, %v2316
    %v2319 = vmul.f32 %v2311, %v2316
    %v2321 = vlaneseq
    %v2322 = vshrl.u32 %v2321, 7
    %v2323 = vsub.s32 0, %v2322
    %v2324 = vrot.slane %v2281, %v2323
    %v2326 = vadd.f32 %v2318, %v2324
    %v2327 = vadd.f32 %v2319, %v2324
    %s2328 = scalar_lea.vmem [#allocation5], 32
    %v2329 = vld [vmem:[%s2328] sm:$0xff]
    %v2330 = vld [vmem:[%s2328 + $0x8] sm:$0xff]
    %v2331 = vld [vmem:[%s2328 + $0x10] sm:$0xff]
    %v2332 = vld [vmem:[%s2328 + $0x18] sm:$0xff]
    %s2333 = scalar_lea.vmem %s2, 32
    %v2334 = vld [vmem:[%s2333] sm:$0xff]
    %v2335 = vld [vmem:[%s2333 + $0x8] sm:$0xff]
    %v2336 = vld [vmem:[%s2333 + $0x10] sm:$0xff]
    %v2337 = vld [vmem:[%s2333 + $0x18] sm:$0xff]
    %s2338 = scalar_lea.vmem %s3, 1
    %v2339 = vld [vmem:[%s2338] sm:$0x1]
    %v2341 = vlaneseq
    %v2342 = vshrl.u32 %v2341, 7
    %v2343 = vsub.s32 0, %v2342
    %v2344 = vrot.slane %v2339, %v2343
    %v2347 = vsel %vm120, %v2326, 0
    %v2350 = vsel %vm120, %v2327, 0
    %2352 = vmatprep.subr.mxu0 0.0
    %2353 = vmatpush1.msra.mxu0 %v2334
    %2354 = vmatprep.subr.mxu0 0.0
    %2355 = vmatpush1.msra.mxu0 %v2335
    %2356 = vmatprep.subr.mxu0 0.0
    %2357 = vmatpush1.msra.mxu0 %v2336
    %2358 = vmatprep.subr.mxu0 0.0
    %2359 = vmatpush1.msra.mxu0 %v2337
    %2360 = vmatprep.subr.mxu0 0.0
    %2361 = vmatpush1.msra.mxu0 0.0
    %2362 = vmatprep.subr.mxu0 0.0
    %2363 = vmatpush1.msra.mxu0 0.0
    %2364 = vmatprep.subr.mxu0 0.0
    %2365 = vmatpush1.msra.mxu0 0.0
    %2366 = vmatprep.subr.mxu0 0.0
    %2367 = vmatpush1.msra.mxu0 0.0
    %2368 = vmatprep.subr.mxu0 0.0
    %2369 = vmatpush1.msra.mxu0 0.0
    %2370 = vmatprep.subr.mxu0 0.0
    %2371 = vmatpush1.msra.mxu0 0.0
    %2372 = vmatprep.subr.mxu0 0.0
    %2373 = vmatpush1.msra.mxu0 0.0
    %2374 = vmatprep.subr.mxu0 0.0
    %2375 = vmatpush1.msra.mxu0 0.0
    %2376 = vmatprep.subr.mxu0 0.0
    %2377 = vmatpush1.msra.mxu0 0.0
    %2378 = vmatprep.subr.mxu0 0.0
    %2379 = vmatpush1.msra.mxu0 0.0
    %2380 = vmatprep.subr.mxu0 0.0
    %2381 = vmatpush1.msra.mxu0 0.0
    %2382 = vmatprep.subr.mxu0 0.0
    %2383 = vmatpush1.msra.mxu0 0.0
    %2384 = vmatprep.subr.mxu0 0.0
    %2385 = vmatpush1.msra.mxu0 0.0
    %2386 = vmatprep.subr.mxu0 0.0
    %2387 = vmatpush1.msra.mxu0 0.0
    %2388 = vmatprep.subr.mxu0 0.0
    %2389 = vmatpush1.msra.mxu0 0.0
    %2390 = vmatprep.subr.mxu0 0.0
    %2391 = vmatpush1.msra.mxu0 0.0
    %2392 = vmatprep.subr.mxu0 0.0
    %2393 = vmatpush1.msra.mxu0 0.0
    %2394 = vmatprep.subr.mxu0 0.0
    %2395 = vmatpush1.msra.mxu0 0.0
    %2396 = vmatprep.subr.mxu0 0.0
    %2397 = vmatpush1.msra.mxu0 0.0
    %2398 = vmatprep.subr.mxu0 0.0
    %2399 = vmatpush1.msra.mxu0 0.0
    %2400 = vmatprep.subr.mxu0 0.0
    %2401 = vmatpush1.msra.mxu0 0.0
    %2402 = vmatprep.subr.mxu0 0.0
    %2403 = vmatpush1.msra.mxu0 0.0
    %2404 = vmatprep.subr.mxu0 0.0
    %2405 = vmatpush1.msra.mxu0 0.0
    %2406 = vmatprep.subr.mxu0 0.0
    %2407 = vmatpush1.msra.mxu0 0.0
    %2408 = vmatprep.subr.mxu0 0.0
    %2409 = vmatpush1.msra.mxu0 0.0
    %2410 = vmatprep.subr.mxu0 0.0
    %2411 = vmatpush1.msra.mxu0 0.0
    %2412 = vmatprep.subr.mxu0 0.0
    %2413 = vmatpush1.msra.mxu0 0.0
    %2414 = vmatprep.subr.mxu0 0.0
    %2415 = vmatpush1.msra.mxu0 0.0
    %2416 = vmatprep.mubr.f32.mxu0 0.0
    %2417 = vmatmul.mubr.f32.gmra.mrb[0].mxu0 %v2347
    %v2418 = vpop.f32.mrb[0].mxu0
    %v2419 = vadd.f32 %v2344, %v2418
    %v2420 = vpop.f32.mrb[0].mxu0
    %2421 = vmatprep.mubr.f32.mxu0 0.0
    %2422 = vmatmul.mubr.f32.gmra.mrb[0].mxu0 %v2350
    %v2423 = vpop.f32.mrb[0].mxu0
    %v2424 = vadd.f32 %v2344, %v2423
    %v2425 = vpop.f32.mrb[0].mxu0
    %2426 = vdwg.mxu0
    %s2427 = scalar_lea.vmem %s4, 32
    %v2428 = vld [vmem:[%s2427] sm:$0xff]
    %v2429 = vld [vmem:[%s2427 + $0x8] sm:$0xff]
    %v2430 = vld [vmem:[%s2427 + $0x10] sm:$0xff]
    %v2431 = vld [vmem:[%s2427 + $0x18] sm:$0xff]
    %s2432 = scalar_lea.vmem %s5, 1
    %v2433 = vld [vmem:[%s2432] sm:$0x1]
    %v2435 = vlaneseq
    %v2436 = vshrl.u32 %v2435, 7
    %v2437 = vsub.s32 0, %v2436
    %v2438 = vrot.slane %v2433, %v2437
    %2440 = vmatprep.subr.mxu0 0.0
    %2441 = vmatpush1.msra.mxu0 %v2428
    %2442 = vmatprep.subr.mxu0 0.0
    %2443 = vmatpush1.msra.mxu0 %v2429
    %2444 = vmatprep.subr.mxu0 0.0
    %2445 = vmatpush1.msra.mxu0 %v2430
    %2446 = vmatprep.subr.mxu0 0.0
    %2447 = vmatpush1.msra.mxu0 %v2431
    %2448 = vmatprep.subr.mxu0 0.0
    %2449 = vmatpush1.msra.mxu0 0.0
    %2450 = vmatprep.subr.mxu0 0.0
    %2451 = vmatpush1.msra.mxu0 0.0
    %2452 = vmatprep.subr.mxu0 0.0
    %2453 = vmatpush1.msra.mxu0 0.0
    %2454 = vmatprep.subr.mxu0 0.0
    %2455 = vmatpush1.msra.mxu0 0.0
    %2456 = vmatprep.subr.mxu0 0.0
    %2457 = vmatpush1.msra.mxu0 0.0
    %2458 = vmatprep.subr.mxu0 0.0
    %2459 = vmatpush1.msra.mxu0 0.0
    %2460 = vmatprep.subr.mxu0 0.0
    %2461 = vmatpush1.msra.mxu0 0.0
    %2462 = vmatprep.subr.mxu0 0.0
    %2463 = vmatpush1.msra.mxu0 0.0
    %2464 = vmatprep.subr.mxu0 0.0
    %2465 = vmatpush1.msra.mxu0 0.0
    %2466 = vmatprep.subr.mxu0 0.0
    %2467 = vmatpush1.msra.mxu0 0.0
    %2468 = vmatprep.subr.mxu0 0.0
    %2469 = vmatpush1.msra.mxu0 0.0
    %2470 = vmatprep.subr.mxu0 0.0
    %2471 = vmatpush1.msra.mxu0 0.0
    %2472 = vmatprep.subr.mxu0 0.0
    %2473 = vmatpush1.msra.mxu0 0.0
    %2474 = vmatprep.subr.mxu0 0.0
    %2475 = vmatpush1.msra.mxu0 0.0
    %2476 = vmatprep.subr.mxu0 0.0
    %2477 = vmatpush1.msra.mxu0 0.0
    %2478 = vmatprep.subr.mxu0 0.0
    %2479 = vmatpush1.msra.mxu0 0.0
    %2480 = vmatprep.subr.mxu0 0.0
    %2481 = vmatpush1.msra.mxu0 0.0
    %2482 = vmatprep.subr.mxu0 0.0
    %2483 = vmatpush1.msra.mxu0 0.0
    %2484 = vmatprep.subr.mxu0 0.0
    %2485 = vmatpush1.msra.mxu0 0.0
    %2486 = vmatprep.subr.mxu0 0.0
    %2487 = vmatpush1.msra.mxu0 0.0
    %2488 = vmatprep.subr.mxu0 0.0
    %2489 = vmatpush1.msra.mxu0 0.0
    %2490 = vmatprep.subr.mxu0 0.0
    %2491 = vmatpush1.msra.mxu0 0.0
    %2492 = vmatprep.subr.mxu0 0.0
    %2493 = vmatpush1.msra.mxu0 0.0
    %2494 = vmatprep.subr.mxu0 0.0
    %2495 = vmatpush1.msra.mxu0 0.0
    %2496 = vmatprep.subr.mxu0 0.0
    %2497 = vmatpush1.msra.mxu0 0.0
    %2498 = vmatprep.subr.mxu0 0.0
    %2499 = vmatpush1.msra.mxu0 0.0
    %2500 = vmatprep.subr.mxu0 0.0
    %2501 = vmatpush1.msra.mxu0 0.0
    %2502 = vmatprep.subr.mxu0 0.0
    %2503 = vmatpush1.msra.mxu0 0.0
    %2504 = vmatprep.mubr.f32.mxu0 0.0
    %2505 = vmatmul.mubr.f32.gmra.mrb[0].mxu0 %v2347
    %v2506 = vpop.f32.mrb[0].mxu0
    %v2507 = vadd.f32 %v2438, %v2506
    %v2508 = vpop.f32.mrb[0].mxu0
    %2509 = vmatprep.mubr.f32.mxu0 0.0
    %2510 = vmatmul.mubr.f32.gmra.mrb[0].mxu0 %v2350
    %v2511 = vpop.f32.mrb[0].mxu0
    %v2512 = vadd.f32 %v2438, %v2511
    %v2513 = vpop.f32.mrb[0].mxu0
    %2514 = vdwg.mxu0
    %s2515 = scalar_lea.vmem %s6, 32
    %v2516 = vld [vmem:[%s2515] sm:$0xff]
    %v2517 = vld [vmem:[%s2515 + $0x8] sm:$0xff]
    %v2518 = vld [vmem:[%s2515 + $0x10] sm:$0xff]
    %v2519 = vld [vmem:[%s2515 + $0x18] sm:$0xff]
    %s2520 = scalar_lea.vmem %s7, 1
    %v2521 = vld [vmem:[%s2520] sm:$0x1]
    %v2523 = vlaneseq
    %v2524 = vshrl.u32 %v2523, 7
    %v2525 = vsub.s32 0, %v2524
    %v2526 = vrot.slane %v2521, %v2525
    %2528 = vmatprep.subr.mxu0 0.0
    %2529 = vmatpush1.msra.mxu0 %v2516
    %2530 = vmatprep.subr.mxu0 0.0
    %2531 = vmatpush1.msra.mxu0 %v2517
    %2532 = vmatprep.subr.mxu0 0.0
    %2533 = vmatpush1.msra.mxu0 %v2518
    %2534 = vmatprep.subr.mxu0 0.0
    %2535 = vmatpush1.msra.mxu0 %v2519
    %2536 = vmatprep.subr.mxu0 0.0
    %2537 = vmatpush1.msra.mxu0 0.0
    %2538 = vmatprep.subr.mxu0 0.0
    %2539 = vmatpush1.msra.mxu0 0.0
    %2540 = vmatprep.subr.mxu0 0.0
    %2541 = vmatpush1.msra.mxu0 0.0
    %2542 = vmatprep.subr.mxu0 0.0
    %2543 = vmatpush1.msra.mxu0 0.0
    %2544 = vmatprep.subr.mxu0 0.0
    %2545 = vmatpush1.msra.mxu0 0.0
    %2546 = vmatprep.subr.mxu0 0.0
    %2547 = vmatpush1.msra.mxu0 0.0
    %2548 = vmatprep.subr.mxu0 0.0
    %2549 = vmatpush1.msra.mxu0 0.0
    %2550 = vmatprep.subr.mxu0 0.0
    %2551 = vmatpush1.msra.mxu0 0.0
    %2552 = vmatprep.subr.mxu0 0.0
    %2553 = vmatpush1.msra.mxu0 0.0
    %2554 = vmatprep.subr.mxu0 0.0
    %2555 = vmatpush1.msra.mxu0 0.0
    %2556 = vmatprep.subr.mxu0 0.0
    %2557 = vmatpush1.msra.mxu0 0.0
    %2558 = vmatprep.subr.mxu0 0.0
    %2559 = vmatpush1.msra.mxu0 0.0
    %2560 = vmatprep.subr.mxu0 0.0
    %2561 = vmatpush1.msra.mxu0 0.0
    %2562 = vmatprep.subr.mxu0 0.0
    %2563 = vmatpush1.msra.mxu0 0.0
    %2564 = vmatprep.subr.mxu0 0.0
    %2565 = vmatpush1.msra.mxu0 0.0
    %2566 = vmatprep.subr.mxu0 0.0
    %2567 = vmatpush1.msra.mxu0 0.0
    %2568 = vmatprep.subr.mxu0 0.0
    %2569 = vmatpush1.msra.mxu0 0.0
    %2570 = vmatprep.subr.mxu0 0.0
    %2571 = vmatpush1.msra.mxu0 0.0
    %2572 = vmatprep.subr.mxu0 0.0
    %2573 = vmatpush1.msra.mxu0 0.0
    %2574 = vmatprep.subr.mxu0 0.0
    %2575 = vmatpush1.msra.mxu0 0.0
    %2576 = vmatprep.subr.mxu0 0.0
    %2577 = vmatpush1.msra.mxu0 0.0
    %2578 = vmatprep.subr.mxu0 0.0
    %2579 = vmatpush1.msra.mxu0 0.0
    %2580 = vmatprep.subr.mxu0 0.0
    %2581 = vmatpush1.msra.mxu0 0.0
    %2582 = vmatprep.subr.mxu0 0.0
    %2583 = vmatpush1.msra.mxu0 0.0
    %2584 = vmatprep.subr.mxu0 0.0
    %2585 = vmatpush1.msra.mxu0 0.0
    %2586 = vmatprep.subr.mxu0 0.0
    %2587 = vmatpush1.msra.mxu0 0.0
    %2588 = vmatprep.subr.mxu0 0.0
    %2589 = vmatpush1.msra.mxu0 0.0
    %2590 = vmatprep.subr.mxu0 0.0
    %2591 = vmatpush1.msra.mxu0 0.0
    %2592 = vmatprep.mubr.f32.mxu0 0.0
    %2593 = vmatmul.mubr.f32.gmra.mrb[0].mxu0 %v2347
    %v2594 = vpop.f32.mrb[0].mxu0
    %v2595 = vadd.f32 %v2526, %v2594
    %v2596 = vpop.f32.mrb[0].mxu0
    %2597 = vmatprep.mubr.f32.mxu0 0.0
    %2598 = vmatmul.mubr.f32.gmra.mrb[0].mxu0 %v2350
    %v2599 = vpop.f32.mrb[0].mxu0
    %v2600 = vadd.f32 %v2526, %v2599
    %v2601 = vpop.f32.mrb[0].mxu0
    %2602 = vdwg.mxu0
    %v2604 = vsel %vm386, %v2419, 0
    %v2607 = vsel %vm386, %v2507, 0
    %2609 = vmatprep.subr.mxu0 0.0
    %2610 = vmatpush1.xpose.msra.mxu0 %v2607
    %2611 = vmatprep.subr.mxu0 0.0
    %2612 = vmatpush1.xpose.msra.mxu0 0.0
    %2613 = vmatprep.subr.mxu0 0.0
    %2614 = vmatpush1.xpose.msra.mxu0 0.0
    %2615 = vmatprep.subr.mxu0 0.0
    %2616 = vmatpush1.xpose.msra.mxu0 0.0
    %2617 = vmatprep.subr.mxu0 0.0
    %2618 = vmatpush1.xpose.msra.mxu0 0.0
    %2619 = vmatprep.subr.mxu0 0.0
    %2620 = vmatpush1.xpose.msra.mxu0 0.0
    %2621 = vmatprep.subr.mxu0 0.0
    %2622 = vmatpush1.xpose.msra.mxu0 0.0
    %2623 = vmatprep.subr.mxu0 0.0
    %2624 = vmatpush1.xpose.msra.mxu0 0.0
    %2625 = vmatprep.subr.mxu0 0.0
    %2626 = vmatpush1.xpose.msra.mxu0 0.0
    %2627 = vmatprep.subr.mxu0 0.0
    %2628 = vmatpush1.xpose.msra.mxu0 0.0
    %2629 = vmatprep.subr.mxu0 0.0
    %2630 = vmatpush1.xpose.msra.mxu0 0.0
    %2631 = vmatprep.subr.mxu0 0.0
    %2632 = vmatpush1.xpose.msra.mxu0 0.0
    %2633 = vmatprep.subr.mxu0 0.0
    %2634 = vmatpush1.xpose.msra.mxu0 0.0
    %2635 = vmatprep.subr.mxu0 0.0
    %2636 = vmatpush1.xpose.msra.mxu0 0.0
    %2637 = vmatprep.subr.mxu0 0.0
    %2638 = vmatpush1.xpose.msra.mxu0 0.0
    %2639 = vmatprep.subr.mxu0 0.0
    %2640 = vmatpush1.xpose.msra.mxu0 0.0
    %2641 = vmatprep.subr.mxu0 0.0
    %2642 = vmatpush1.xpose.msra.mxu0 0.0
    %2643 = vmatprep.subr.mxu0 0.0
    %2644 = vmatpush1.xpose.msra.mxu0 0.0
    %2645 = vmatprep.subr.mxu0 0.0
    %2646 = vmatpush1.xpose.msra.mxu0 0.0
    %2647 = vmatprep.subr.mxu0 0.0
    %2648 = vmatpush1.xpose.msra.mxu0 0.0
    %2649 = vmatprep.subr.mxu0 0.0
    %2650 = vmatpush1.xpose.msra.mxu0 0.0
    %2651 = vmatprep.subr.mxu0 0.0
    %2652 = vmatpush1.xpose.msra.mxu0 0.0
    %2653 = vmatprep.subr.mxu0 0.0
    %2654 = vmatpush1.xpose.msra.mxu0 0.0
    %2655 = vmatprep.subr.mxu0 0.0
    %2656 = vmatpush1.xpose.msra.mxu0 0.0
    %2657 = vmatprep.subr.mxu0 0.0
    %2658 = vmatpush1.xpose.msra.mxu0 0.0
    %2659 = vmatprep.subr.mxu0 0.0
    %2660 = vmatpush1.xpose.msra.mxu0 0.0
    %2661 = vmatprep.subr.mxu0 0.0
    %2662 = vmatpush1.xpose.msra.mxu0 0.0
    %2663 = vmatprep.subr.mxu0 0.0
    %2664 = vmatpush1.xpose.msra.mxu0 0.0
    %2665 = vmatprep.subr.mxu0 0.0
    %2666 = vmatpush1.xpose.msra.mxu0 0.0
    %2667 = vmatprep.subr.mxu0 0.0
    %2668 = vmatpush1.xpose.msra.mxu0 0.0
    %2669 = vmatprep.subr.mxu0 0.0
    %2670 = vmatpush1.xpose.msra.mxu0 0.0
    %2671 = vmatprep.subr.mxu0 0.0
    %2672 = vmatpush1.xpose.msra.mxu0 0.0
    %2673 = vmatprep.mubr.f32.mxu0 0.0
    %2674 = vmatmul.mubr.f32.gmra.mrb[0].mxu0 %v2604
    %v2675 = vpop.f32.mrb[0].mxu0
    %v2676 = vadd.f32 %v379, %v2675
    %v2677 = vpop.f32.mrb[0].mxu0
    %2678 = vdwg.mxu0
    %v2680 = vsel %vm386, %v2424, 0
    %v2683 = vsel %vm386, %v2512, 0
    %2685 = vmatprep.subr.mxu0 0.0
    %2686 = vmatpush1.xpose.msra.mxu0 %v2683
    %2687 = vmatprep.subr.mxu0 0.0
    %2688 = vmatpush1.xpose.msra.mxu0 0.0
    %2689 = vmatprep.subr.mxu0 0.0
    %2690 = vmatpush1.xpose.msra.mxu0 0.0
    %2691 = vmatprep.subr.mxu0 0.0
    %2692 = vmatpush1.xpose.msra.mxu0 0.0
    %2693 = vmatprep.subr.mxu0 0.0
    %2694 = vmatpush1.xpose.msra.mxu0 0.0
    %2695 = vmatprep.subr.mxu0 0.0
    %2696 = vmatpush1.xpose.msra.mxu0 0.0
    %2697 = vmatprep.subr.mxu0 0.0
    %2698 = vmatpush1.xpose.msra.mxu0 0.0
    %2699 = vmatprep.subr.mxu0 0.0
    %2700 = vmatpush1.xpose.msra.mxu0 0.0
    %2701 = vmatprep.subr.mxu0 0.0
    %2702 = vmatpush1.xpose.msra.mxu0 0.0
    %2703 = vmatprep.subr.mxu0 0.0
    %2704 = vmatpush1.xpose.msra.mxu0 0.0
    %2705 = vmatprep.subr.mxu0 0.0
    %2706 = vmatpush1.xpose.msra.mxu0 0.0
    %2707 = vmatprep.subr.mxu0 0.0
    %2708 = vmatpush1.xpose.msra.mxu0 0.0
    %2709 = vmatprep.subr.mxu0 0.0
    %2710 = vmatpush1.xpose.msra.mxu0 0.0
    %2711 = vmatprep.subr.mxu0 0.0
    %2712 = vmatpush1.xpose.msra.mxu0 0.0
    %2713 = vmatprep.subr.mxu0 0.0
    %2714 = vmatpush1.xpose.msra.mxu0 0.0
    %2715 = vmatprep.subr.mxu0 0.0
    %2716 = vmatpush1.xpose.msra.mxu0 0.0
    %2717 = vmatprep.subr.mxu0 0.0
    %2718 = vmatpush1.xpose.msra.mxu0 0.0
    %2719 = vmatprep.subr.mxu0 0.0
    %2720 = vmatpush1.xpose.msra.mxu0 0.0
    %2721 = vmatprep.subr.mxu0 0.0
    %2722 = vmatpush1.xpose.msra.mxu0 0.0
    %2723 = vmatprep.subr.mxu0 0.0
    %2724 = vmatpush1.xpose.msra.mxu0 0.0
    %2725 = vmatprep.subr.mxu0 0.0
    %2726 = vmatpush1.xpose.msra.mxu0 0.0
    %2727 = vmatprep.subr.mxu0 0.0
    %2728 = vmatpush1.xpose.msra.mxu0 0.0
    %2729 = vmatprep.subr.mxu0 0.0
    %2730 = vmatpush1.xpose.msra.mxu0 0.0
    %2731 = vmatprep.subr.mxu0 0.0
    %2732 = vmatpush1.xpose.msra.mxu0 0.0
    %2733 = vmatprep.subr.mxu0 0.0
    %2734 = vmatpush1.xpose.msra.mxu0 0.0
    %2735 = vmatprep.subr.mxu0 0.0
    %2736 = vmatpush1.xpose.msra.mxu0 0.0
    %2737 = vmatprep.subr.mxu0 0.0
    %2738 = vmatpush1.xpose.msra.mxu0 0.0
    %2739 = vmatprep.subr.mxu0 0.0
    %2740 = vmatpush1.xpose.msra.mxu0 0.0
    %2741 = vmatprep.subr.mxu0 0.0
    %2742 = vmatpush1.xpose.msra.mxu0 0.0
    %2743 = vmatprep.subr.mxu0 0.0
    %2744 = vmatpush1.xpose.msra.mxu0 0.0
    %2745 = vmatprep.subr.mxu0 0.0
    %2746 = vmatpush1.xpose.msra.mxu0 0.0
    %2747 = vmatprep.subr.mxu0 0.0
    %2748 = vmatpush1.xpose.msra.mxu0 0.0
    %2749 = vmatprep.mubr.f32.mxu0 0.0
    %2750 = vmatmul.mubr.f32.gmra.mrb[0].mxu0 %v2680
    %v2751 = vpop.f32.mrb[0].mxu0
    %v2752 = vadd.f32 %v383, %v2751
    %v2753 = vpop.f32.mrb[0].mxu0
    %2754 = vdwg.mxu0
    %v2755 = vsel %vm386, %v2676, -inf
    %2756 = vmax.xlane.f32.xlu0 %v2755
    %v2757 = vpop.xlane.xlu0 %2756
    %v2758 = vsel %vm386, %v2752, -inf
    %2759 = vmax.xlane.f32.xlu0 %v2758
    %v2760 = vpop.xlane.xlu0 %2759
    %v2761 = vsub.f32 %v2676, %v2757
    %v2762 = vsub.f32 %v2752, %v2760
    %v2763 = vmul.f32 %v2761, 1.442695
    %v2764 = vpow.pop %v2763
    %v2765 = vmul.f32 %v2762, 1.442695
    %v2766 = vpow.pop %v2765
    %v2767 = vsel %vm386, %v2764, 0.0
    %2768 = vadd.xlane.f32.xlu0 %v2767
    %v2769 = vpop.xlane.xlu0 %2768
    %v2770 = vsel %vm386, %v2766, 0.0
    %2771 = vadd.xlane.f32.xlu0 %v2770
    %v2772 = vpop.xlane.xlu0 %2771
    %v2773 = vrcp.pop %v2769
    %v2774 = vrcp.pop %v2772
    %v2775 = vmul.f32 %v2764, %v2773
    %v2776 = vmul.f32 %v2766, %v2774
    %v2778 = vsel %vm386, %v2775, 0
    %2780 = vmatprep.subr.mxu0 0.0
    %2781 = vmatpush1.msra.mxu0 %v2595
    %2782 = vmatprep.subr.mxu0 0.0
    %2783 = vmatpush1.msra.mxu0 0.0
    %2784 = vmatprep.subr.mxu0 0.0
    %2785 = vmatpush1.msra.mxu0 0.0
    %2786 = vmatprep.subr.mxu0 0.0
    %2787 = vmatpush1.msra.mxu0 0.0
    %2788 = vmatprep.subr.mxu0 0.0
    %2789 = vmatpush1.msra.mxu0 0.0
    %2790 = vmatprep.subr.mxu0 0.0
    %2791 = vmatpush1.msra.mxu0 0.0
    %2792 = vmatprep.subr.mxu0 0.0
    %2793 = vmatpush1.msra.mxu0 0.0
    %2794 = vmatprep.subr.mxu0 0.0
    %2795 = vmatpush1.msra.mxu0 0.0
    %2796 = vmatprep.subr.mxu0 0.0
    %2797 = vmatpush1.msra.mxu0 0.0
    %2798 = vmatprep.subr.mxu0 0.0
    %2799 = vmatpush1.msra.mxu0 0.0
    %2800 = vmatprep.subr.mxu0 0.0
    %2801 = vmatpush1.msra.mxu0 0.0
    %2802 = vmatprep.subr.mxu0 0.0
    %2803 = vmatpush1.msra.mxu0 0.0
    %2804 = vmatprep.subr.mxu0 0.0
    %2805 = vmatpush1.msra.mxu0 0.0
    %2806 = vmatprep.subr.mxu0 0.0
    %2807 = vmatpush1.msra.mxu0 0.0
    %2808 = vmatprep.subr.mxu0 0.0
    %2809 = vmatpush1.msra.mxu0 0.0
    %2810 = vmatprep.subr.mxu0 0.0
    %2811 = vmatpush1.msra.mxu0 0.0
    %2812 = vmatprep.subr.mxu0 0.0
    %2813 = vmatpush1.msra.mxu0 0.0
    %2814 = vmatprep.subr.mxu0 0.0
    %2815 = vmatpush1.msra.mxu0 0.0
    %2816 = vmatprep.subr.mxu0 0.0
    %2817 = vmatpush1.msra.mxu0 0.0
    %2818 = vmatprep.subr.mxu0 0.0
    %2819 = vmatpush1.msra.mxu0 0.0
    %2820 = vmatprep.subr.mxu0 0.0
    %2821 = vmatpush1.msra.mxu0 0.0
    %2822 = vmatprep.subr.mxu0 0.0
    %2823 = vmatpush1.msra.mxu0 0.0
    %2824 = vmatprep.subr.mxu0 0.0
    %2825 = vmatpush1.msra.mxu0 0.0
    %2826 = vmatprep.subr.mxu0 0.0
    %2827 = vmatpush1.msra.mxu0 0.0
    %2828 = vmatprep.subr.mxu0 0.0
    %2829 = vmatpush1.msra.mxu0 0.0
    %2830 = vmatprep.subr.mxu0 0.0
    %2831 = vmatpush1.msra.mxu0 0.0
    %2832 = vmatprep.subr.mxu0 0.0
    %2833 = vmatpush1.msra.mxu0 0.0
    %2834 = vmatprep.subr.mxu0 0.0
    %2835 = vmatpush1.msra.mxu0 0.0
    %2836 = vmatprep.subr.mxu0 0.0
    %2837 = vmatpush1.msra.mxu0 0.0
    %2838 = vmatprep.subr.mxu0 0.0
    %2839 = vmatpush1.msra.mxu0 0.0
    %2840 = vmatprep.subr.mxu0 0.0
    %2841 = vmatpush1.msra.mxu0 0.0
    %2842 = vmatprep.subr.mxu0 0.0
    %2843 = vmatpush1.msra.mxu0 0.0
    %2844 = vmatprep.mubr.f32.mxu0 0.0
    %2845 = vmatmul.mubr.f32.gmra.mrb[0].mxu0 %v2778
    %v2846 = vpop.f32.mrb[0].mxu0
    %v2847 = vadd.f32 0.0, %v2846
    %v2848 = vpop.f32.mrb[0].mxu0
    %2849 = vdwg.mxu0
    %v2851 = vsel %vm386, %v2776, 0
    %2853 = vmatprep.subr.mxu0 0.0
    %2854 = vmatpush1.msra.mxu0 %v2600
    %2855 = vmatprep.subr.mxu0 0.0
    %2856 = vmatpush1.msra.mxu0 0.0
    %2857 = vmatprep.subr.mxu0 0.0
    %2858 = vmatpush1.msra.mxu0 0.0
    %2859 = vmatprep.subr.mxu0 0.0
    %2860 = vmatpush1.msra.mxu0 0.0
    %2861 = vmatprep.subr.mxu0 0.0
    %2862 = vmatpush1.msra.mxu0 0.0
    %2863 = vmatprep.subr.mxu0 0.0
    %2864 = vmatpush1.msra.mxu0 0.0
    %2865 = vmatprep.subr.mxu0 0.0
    %2866 = vmatpush1.msra.mxu0 0.0
    %2867 = vmatprep.subr.mxu0 0.0
    %2868 = vmatpush1.msra.mxu0 0.0
    %2869 = vmatprep.subr.mxu0 0.0
    %2870 = vmatpush1.msra.mxu0 0.0
    %2871 = vmatprep.subr.mxu0 0.0
    %2872 = vmatpush1.msra.mxu0 0.0
    %2873 = vmatprep.subr.mxu0 0.0
    %2874 = vmatpush1.msra.mxu0 0.0
    %2875 = vmatprep.subr.mxu0 0.0
    %2876 = vmatpush1.msra.mxu0 0.0
    %2877 = vmatprep.subr.mxu0 0.0
    %2878 = vmatpush1.msra.mxu0 0.0
    %2879 = vmatprep.subr.mxu0 0.0
    %2880 = vmatpush1.msra.mxu0 0.0
    %2881 = vmatprep.subr.mxu0 0.0
    %2882 = vmatpush1.msra.mxu0 0.0
    %2883 = vmatprep.subr.mxu0 0.0
    %2884 = vmatpush1.msra.mxu0 0.0
    %2885 = vmatprep.subr.mxu0 0.0
    %2886 = vmatpush1.msra.mxu0 0.0
    %2887 = vmatprep.subr.mxu0 0.0
    %2888 = vmatpush1.msra.mxu0 0.0
    %2889 = vmatprep.subr.mxu0 0.0
    %2890 = vmatpush1.msra.mxu0 0.0
    %2891 = vmatprep.subr.mxu0 0.0
    %2892 = vmatpush1.msra.mxu0 0.0
    %2893 = vmatprep.subr.mxu0 0.0
    %2894 = vmatpush1.msra.mxu0 0.0
    %2895 = vmatprep.subr.mxu0 0.0
    %2896 = vmatpush1.msra.mxu0 0.0
    %2897 = vmatprep.subr.mxu0 0.0
    %2898 = vmatpush1.msra.mxu0 0.0
    %2899 = vmatprep.subr.mxu0 0.0
    %2900 = vmatpush1.msra.mxu0 0.0
    %2901 = vmatprep.subr.mxu0 0.0
    %2902 = vmatpush1.msra.mxu0 0.0
    %2903 = vmatprep.subr.mxu0 0.0
    %2904 = vmatpush1.msra.mxu0 0.0
    %2905 = vmatprep.subr.mxu0 0.0
    %2906 = vmatpush1.msra.mxu0 0.0
    %2907 = vmatprep.subr.mxu0 0.0
    %2908 = vmatpush1.msra.mxu0 0.0
    %2909 = vmatprep.subr.mxu0 0.0
    %2910 = vmatpush1.msra.mxu0 0.0
    %2911 = vmatprep.subr.mxu0 0.0
    %2912 = vmatpush1.msra.mxu0 0.0
    %2913 = vmatprep.subr.mxu0 0.0
    %2914 = vmatpush1.msra.mxu0 0.0
    %2915 = vmatprep.subr.mxu0 0.0
    %2916 = vmatpush1.msra.mxu0 0.0
    %2917 = vmatprep.mubr.f32.mxu0 0.0
    %2918 = vmatmul.mubr.f32.gmra.mrb[0].mxu0 %v2851
    %v2919 = vpop.f32.mrb[0].mxu0
    %v2920 = vadd.f32 0.0, %v2919
    %v2921 = vpop.f32.mrb[0].mxu0
    %2922 = vdwg.mxu0
    %2923 = vrot.lane.b32.xlu0 %v2419, 120
    %v2924 = vpop.permute.xlu0 %2923
    %2925 = vrot.lane.b32.xlu0 %v2507, 120
    %v2926 = vpop.permute.xlu0 %2925
    %v2927 = vsel %vm386, %v2924, 0
    %v2929 = vsel %vm386, %v2926, 0
    %2931 = vmatprep.subr.mxu0 0.0
    %2932 = vmatpush1.xpose.msra.mxu0 %v2929
    %2933 = vmatprep.subr.mxu0 0.0
    %2934 = vmatpush1.xpose.msra.mxu0 0.0
    %2935 = vmatprep.subr.mxu0 0.0
    %2936 = vmatpush1.xpose.msra.mxu0 0.0
    %2937 = vmatprep.subr.mxu0 0.0
    %2938 = vmatpush1.xpose.msra.mxu0 0.0
    %2939 = vmatprep.subr.mxu0 0.0
    %2940 = vmatpush1.xpose.msra.mxu0 0.0
    %2941 = vmatprep.subr.mxu0 0.0
    %2942 = vmatpush1.xpose.msra.mxu0 0.0
    %2943 = vmatprep.subr.mxu0 0.0
    %2944 = vmatpush1.xpose.msra.mxu0 0.0
    %2945 = vmatprep.subr.mxu0 0.0
    %2946 = vmatpush1.xpose.msra.mxu0 0.0
    %2947 = vmatprep.subr.mxu0 0.0
    %2948 = vmatpush1.xpose.msra.mxu0 0.0
    %2949 = vmatprep.subr.mxu0 0.0
    %2950 = vmatpush1.xpose.msra.mxu0 0.0
    %2951 = vmatprep.subr.mxu0 0.0
    %2952 = vmatpush1.xpose.msra.mxu0 0.0
    %2953 = vmatprep.subr.mxu0 0.0
    %2954 = vmatpush1.xpose.msra.mxu0 0.0
    %2955 = vmatprep.subr.mxu0 0.0
    %2956 = vmatpush1.xpose.msra.mxu0 0.0
    %2957 = vmatprep.subr.mxu0 0.0
    %2958 = vmatpush1.xpose.msra.mxu0 0.0
    %2959 = vmatprep.subr.mxu0 0.0
    %2960 = vmatpush1.xpose.msra.mxu0 0.0
    %2961 = vmatprep.subr.mxu0 0.0
    %2962 = vmatpush1.xpose.msra.mxu0 0.0
    %2963 = vmatprep.subr.mxu0 0.0
    %2964 = vmatpush1.xpose.msra.mxu0 0.0
    %2965 = vmatprep.subr.mxu0 0.0
    %2966 = vmatpush1.xpose.msra.mxu0 0.0
    %2967 = vmatprep.subr.mxu0 0.0
    %2968 = vmatpush1.xpose.msra.mxu0 0.0
    %2969 = vmatprep.subr.mxu0 0.0
    %2970 = vmatpush1.xpose.msra.mxu0 0.0
    %2971 = vmatprep.subr.mxu0 0.0
    %2972 = vmatpush1.xpose.msra.mxu0 0.0
    %2973 = vmatprep.subr.mxu0 0.0
    %2974 = vmatpush1.xpose.msra.mxu0 0.0
    %2975 = vmatprep.subr.mxu0 0.0
    %2976 = vmatpush1.xpose.msra.mxu0 0.0
    %2977 = vmatprep.subr.mxu0 0.0
    %2978 = vmatpush1.xpose.msra.mxu0 0.0
    %2979 = vmatprep.subr.mxu0 0.0
    %2980 = vmatpush1.xpose.msra.mxu0 0.0
    %2981 = vmatprep.subr.mxu0 0.0
    %2982 = vmatpush1.xpose.msra.mxu0 0.0
    %2983 = vmatprep.subr.mxu0 0.0
    %2984 = vmatpush1.xpose.msra.mxu0 0.0
    %2985 = vmatprep.subr.mxu0 0.0
    %2986 = vmatpush1.xpose.msra.mxu0 0.0
    %2987 = vmatprep.subr.mxu0 0.0
    %2988 = vmatpush1.xpose.msra.mxu0 0.0
    %2989 = vmatprep.subr.mxu0 0.0
    %2990 = vmatpush1.xpose.msra.mxu0 0.0
    %2991 = vmatprep.subr.mxu0 0.0
    %2992 = vmatpush1.xpose.msra.mxu0 0.0
    %2993 = vmatprep.subr.mxu0 0.0
    %2994 = vmatpush1.xpose.msra.mxu0 0.0
    %2995 = vmatprep.mubr.f32.mxu0 0.0
    %2996 = vmatmul.mubr.f32.gmra.mrb[0].mxu0 %v2927
    %v2997 = vpop.f32.mrb[0].mxu0
    %v2998 = vadd.f32 %v379, %v2997
    %v2999 = vpop.f32.mrb[0].mxu0
    %3000 = vdwg.mxu0
    %3001 = vrot.lane.b32.xlu0 %v2424, 120
    %v3002 = vpop.permute.xlu0 %3001
    %3003 = vrot.lane.b32.xlu0 %v2512, 120
    %v3004 = vpop.permute.xlu0 %3003
    %v3005 = vsel %vm386, %v3002, 0
    %v3007 = vsel %vm386, %v3004, 0
    %3009 = vmatprep.subr.mxu0 0.0
    %3010 = vmatpush1.xpose.msra.mxu0 %v3007
    %3011 = vmatprep.subr.mxu0 0.0
    %3012 = vmatpush1.xpose.msra.mxu0 0.0
    %3013 = vmatprep.subr.mxu0 0.0
    %3014 = vmatpush1.xpose.msra.mxu0 0.0
    %3015 = vmatprep.subr.mxu0 0.0
    %3016 = vmatpush1.xpose.msra.mxu0 0.0
    %3017 = vmatprep.subr.mxu0 0.0
    %3018 = vmatpush1.xpose.msra.mxu0 0.0
    %3019 = vmatprep.subr.mxu0 0.0
    %3020 = vmatpush1.xpose.msra.mxu0 0.0
    %3021 = vmatprep.subr.mxu0 0.0
    %3022 = vmatpush1.xpose.msra.mxu0 0.0
    %3023 = vmatprep.subr.mxu0 0.0
    %3024 = vmatpush1.xpose.msra.mxu0 0.0
    %3025 = vmatprep.subr.mxu0 0.0
    %3026 = vmatpush1.xpose.msra.mxu0 0.0
    %3027 = vmatprep.subr.mxu0 0.0
    %3028 = vmatpush1.xpose.msra.mxu0 0.0
    %3029 = vmatprep.subr.mxu0 0.0
    %3030 = vmatpush1.xpose.msra.mxu0 0.0
    %3031 = vmatprep.subr.mxu0 0.0
    %3032 = vmatpush1.xpose.msra.mxu0 0.0
    %3033 = vmatprep.subr.mxu0 0.0
    %3034 = vmatpush1.xpose.msra.mxu0 0.0
    %3035 = vmatprep.subr.mxu0 0.0
    %3036 = vmatpush1.xpose.msra.mxu0 0.0
    %3037 = vmatprep.subr.mxu0 0.0
    %3038 = vmatpush1.xpose.msra.mxu0 0.0
    %3039 = vmatprep.subr.mxu0 0.0
    %3040 = vmatpush1.xpose.msra.mxu0 0.0
    %3041 = vmatprep.subr.mxu0 0.0
    %3042 = vmatpush1.xpose.msra.mxu0 0.0
    %3043 = vmatprep.subr.mxu0 0.0
    %3044 = vmatpush1.xpose.msra.mxu0 0.0
    %3045 = vmatprep.subr.mxu0 0.0
    %3046 = vmatpush1.xpose.msra.mxu0 0.0
    %3047 = vmatprep.subr.mxu0 0.0
    %3048 = vmatpush1.xpose.msra.mxu0 0.0
    %3049 = vmatprep.subr.mxu0 0.0
    %3050 = vmatpush1.xpose.msra.mxu0 0.0
    %3051 = vmatprep.subr.mxu0 0.0
    %3052 = vmatpush1.xpose.msra.mxu0 0.0
    %3053 = vmatprep.subr.mxu0 0.0
    %3054 = vmatpush1.xpose.msra.mxu0 0.0
    %3055 = vmatprep.subr.mxu0 0.0
    %3056 = vmatpush1.xpose.msra.mxu0 0.0
    %3057 = vmatprep.subr.mxu0 0.0
    %3058 = vmatpush1.xpose.msra.mxu0 0.0
    %3059 = vmatprep.subr.mxu0 0.0
    %3060 = vmatpush1.xpose.msra.mxu0 0.0
    %3061 = vmatprep.subr.mxu0 0.0
    %3062 = vmatpush1.xpose.msra.mxu0 0.0
    %3063 = vmatprep.subr.mxu0 0.0
    %3064 = vmatpush1.xpose.msra.mxu0 0.0
    %3065 = vmatprep.subr.mxu0 0.0
    %3066 = vmatpush1.xpose.msra.mxu0 0.0
    %3067 = vmatprep.subr.mxu0 0.0
    %3068 = vmatpush1.xpose.msra.mxu0 0.0
    %3069 = vmatprep.subr.mxu0 0.0
    %3070 = vmatpush1.xpose.msra.mxu0 0.0
    %3071 = vmatprep.subr.mxu0 0.0
    %3072 = vmatpush1.xpose.msra.mxu0 0.0
    %3073 = vmatprep.mubr.f32.mxu0 0.0
    %3074 = vmatmul.mubr.f32.gmra.mrb[0].mxu0 %v3005
    %v3075 = vpop.f32.mrb[0].mxu0
    %v3076 = vadd.f32 %v383, %v3075
    %v3077 = vpop.f32.mrb[0].mxu0
    %3078 = vdwg.mxu0
    %v3079 = vsel %vm386, %v2998, -inf
    %3080 = vmax.xlane.f32.xlu0 %v3079
    %v3081 = vpop.xlane.xlu0 %3080
    %v3082 = vsel %vm386, %v3076, -inf
    %3083 = vmax.xlane.f32.xlu0 %v3082
    %v3084 = vpop.xlane.xlu0 %3083
    %v3085 = vsub.f32 %v2998, %v3081
    %v3086 = vsub.f32 %v3076, %v3084
    %v3087 = vmul.f32 %v3085, 1.442695
    %v3088 = vpow.pop %v3087
    %v3089 = vmul.f32 %v3086, 1.442695
    %v3090 = vpow.pop %v3089
    %v3091 = vsel %vm386, %v3088, 0.0
    %3092 = vadd.xlane.f32.xlu0 %v3091
    %v3093 = vpop.xlane.xlu0 %3092
    %v3094 = vsel %vm386, %v3090, 0.0
    %3095 = vadd.xlane.f32.xlu0 %v3094
    %v3096 = vpop.xlane.xlu0 %3095
    %v3097 = vrcp.pop %v3093
    %v3098 = vrcp.pop %v3096
    %v3099 = vmul.f32 %v3088, %v3097
    %v3100 = vmul.f32 %v3090, %v3098
    %3102 = vrot.lane.b32.xlu0 %v2595, 120
    %v3103 = vpop.permute.xlu0 %3102
    %v3106 = vsel %vm386, %v3099, 0
    %3108 = vmatprep.subr.mxu0 0.0
    %3109 = vmatpush1.msra.mxu0 %v3103
    %3110 = vmatprep.subr.mxu0 0.0
    %3111 = vmatpush1.msra.mxu0 0.0
    %3112 = vmatprep.subr.mxu0 0.0
    %3113 = vmatpush1.msra.mxu0 0.0
    %3114 = vmatprep.subr.mxu0 0.0
    %3115 = vmatpush1.msra.mxu0 0.0
    %3116 = vmatprep.subr.mxu0 0.0
    %3117 = vmatpush1.msra.mxu0 0.0
    %3118 = vmatprep.subr.mxu0 0.0
    %3119 = vmatpush1.msra.mxu0 0.0
    %3120 = vmatprep.subr.mxu0 0.0
    %3121 = vmatpush1.msra.mxu0 0.0
    %3122 = vmatprep.subr.mxu0 0.0
    %3123 = vmatpush1.msra.mxu0 0.0
    %3124 = vmatprep.subr.mxu0 0.0
    %3125 = vmatpush1.msra.mxu0 0.0
    %3126 = vmatprep.subr.mxu0 0.0
    %3127 = vmatpush1.msra.mxu0 0.0
    %3128 = vmatprep.subr.mxu0 0.0
    %3129 = vmatpush1.msra.mxu0 0.0
    %3130 = vmatprep.subr.mxu0 0.0
    %3131 = vmatpush1.msra.mxu0 0.0
    %3132 = vmatprep.subr.mxu0 0.0
    %3133 = vmatpush1.msra.mxu0 0.0
    %3134 = vmatprep.subr.mxu0 0.0
    %3135 = vmatpush1.msra.mxu0 0.0
    %3136 = vmatprep.subr.mxu0 0.0
    %3137 = vmatpush1.msra.mxu0 0.0
    %3138 = vmatprep.subr.mxu0 0.0
    %3139 = vmatpush1.msra.mxu0 0.0
    %3140 = vmatprep.subr.mxu0 0.0
    %3141 = vmatpush1.msra.mxu0 0.0
    %3142 = vmatprep.subr.mxu0 0.0
    %3143 = vmatpush1.msra.mxu0 0.0
    %3144 = vmatprep.subr.mxu0 0.0
    %3145 = vmatpush1.msra.mxu0 0.0
    %3146 = vmatprep.subr.mxu0 0.0
    %3147 = vmatpush1.msra.mxu0 0.0
    %3148 = vmatprep.subr.mxu0 0.0
    %3149 = vmatpush1.msra.mxu0 0.0
    %3150 = vmatprep.subr.mxu0 0.0
    %3151 = vmatpush1.msra.mxu0 0.0
    %3152 = vmatprep.subr.mxu0 0.0
    %3153 = vmatpush1.msra.mxu0 0.0
    %3154 = vmatprep.subr.mxu0 0.0
    %3155 = vmatpush1.msra.mxu0 0.0
    %3156 = vmatprep.subr.mxu0 0.0
    %3157 = vmatpush1.msra.mxu0 0.0
    %3158 = vmatprep.subr.mxu0 0.0
    %3159 = vmatpush1.msra.mxu0 0.0
    %3160 = vmatprep.subr.mxu0 0.0
    %3161 = vmatpush1.msra.mxu0 0.0
    %3162 = vmatprep.subr.mxu0 0.0
    %3163 = vmatpush1.msra.mxu0 0.0
    %3164 = vmatprep.subr.mxu0 0.0
    %3165 = vmatpush1.msra.mxu0 0.0
    %3166 = vmatprep.subr.mxu0 0.0
    %3167 = vmatpush1.msra.mxu0 0.0
    %3168 = vmatprep.subr.mxu0 0.0
    %3169 = vmatpush1.msra.mxu0 0.0
    %3170 = vmatprep.subr.mxu0 0.0
    %3171 = vmatpush1.msra.mxu0 0.0
    %3172 = vmatprep.mubr.f32.mxu0 0.0
    %3173 = vmatmul.mubr.f32.gmra.mrb[0].mxu0 %v3106
    %v3174 = vpop.f32.mrb[0].mxu0
    %v3175 = vadd.f32 0.0, %v3174
    %v3176 = vpop.f32.mrb[0].mxu0
    %3177 = vdwg.mxu0
    %3179 = vrot.lane.b32.xlu0 %v2600, 120
    %v3180 = vpop.permute.xlu0 %3179
    %v3183 = vsel %vm386, %v3100, 0
    %3185 = vmatprep.subr.mxu0 0.0
    %3186 = vmatpush1.msra.mxu0 %v3180
    %3187 = vmatprep.subr.mxu0 0.0
    %3188 = vmatpush1.msra.mxu0 0.0
    %3189 = vmatprep.subr.mxu0 0.0
    %3190 = vmatpush1.msra.mxu0 0.0
    %3191 = vmatprep.subr.mxu0 0.0
    %3192 = vmatpush1.msra.mxu0 0.0
    %3193 = vmatprep.subr.mxu0 0.0
    %3194 = vmatpush1.msra.mxu0 0.0
    %3195 = vmatprep.subr.mxu0 0.0
    %3196 = vmatpush1.msra.mxu0 0.0
    %3197 = vmatprep.subr.mxu0 0.0
    %3198 = vmatpush1.msra.mxu0 0.0
    %3199 = vmatprep.subr.mxu0 0.0
    %3200 = vmatpush1.msra.mxu0 0.0
    %3201 = vmatprep.subr.mxu0 0.0
    %3202 = vmatpush1.msra.mxu0 0.0
    %3203 = vmatprep.subr.mxu0 0.0
    %3204 = vmatpush1.msra.mxu0 0.0
    %3205 = vmatprep.subr.mxu0 0.0
    %3206 = vmatpush1.msra.mxu0 0.0
    %3207 = vmatprep.subr.mxu0 0.0
    %3208 = vmatpush1.msra.mxu0 0.0
    %3209 = vmatprep.subr.mxu0 0.0
    %3210 = vmatpush1.msra.mxu0 0.0
    %3211 = vmatprep.subr.mxu0 0.0
    %3212 = vmatpush1.msra.mxu0 0.0
    %3213 = vmatprep.subr.mxu0 0.0
    %3214 = vmatpush1.msra.mxu0 0.0
    %3215 = vmatprep.subr.mxu0 0.0
    %3216 = vmatpush1.msra.mxu0 0.0
    %3217 = vmatprep.subr.mxu0 0.0
    %3218 = vmatpush1.msra.mxu0 0.0
    %3219 = vmatprep.subr.mxu0 0.0
    %3220 = vmatpush1.msra.mxu0 0.0
    %3221 = vmatprep.subr.mxu0 0.0
    %3222 = vmatpush1.msra.mxu0 0.0
    %3223 = vmatprep.subr.mxu0 0.0
    %3224 = vmatpush1.msra.mxu0 0.0
    %3225 = vmatprep.subr.mxu0 0.0
    %3226 = vmatpush1.msra.mxu0 0.0
    %3227 = vmatprep.subr.mxu0 0.0
    %3228 = vmatpush1.msra.mxu0 0.0
    %3229 = vmatprep.subr.mxu0 0.0
    %3230 = vmatpush1.msra.mxu0 0.0
    %3231 = vmatprep.subr.mxu0 0.0
    %3232 = vmatpush1.msra.mxu0 0.0
    %3233 = vmatprep.subr.mxu0 0.0
    %3234 = vmatpush1.msra.mxu0 0.0
    %3235 = vmatprep.subr.mxu0 0.0
    %3236 = vmatpush1.msra.mxu0 0.0
    %3237 = vmatprep.subr.mxu0 0.0
    %3238 = vmatpush1.msra.mxu0 0.0
    %3239 = vmatprep.subr.mxu0 0.0
    %3240 = vmatpush1.msra.mxu0 0.0
    %3241 = vmatprep.subr.mxu0 0.0
    %3242 = vmatpush1.msra.mxu0 0.0
    %3243 = vmatprep.subr.mxu0 0.0
    %3244 = vmatpush1.msra.mxu0 0.0
    %3245 = vmatprep.subr.mxu0 0.0
    %3246 = vmatpush1.msra.mxu0 0.0
    %3247 = vmatprep.subr.mxu0 0.0
    %3248 = vmatpush1.msra.mxu0 0.0
    %3249 = vmatprep.mubr.f32.mxu0 0.0
    %3250 = vmatmul.mubr.f32.gmra.mrb[0].mxu0 %v3183
    %v3251 = vpop.f32.mrb[0].mxu0
    %v3252 = vadd.f32 0.0, %v3251
    %v3253 = vpop.f32.mrb[0].mxu0
    %3254 = vdwg.mxu0
    %v3256 = vsel %vm386, %v3175, 0
    %v3259 = vsel %vm386, %v3252, 0
    %3261 = vmatprep.subr.mxu0 0.0
    %3262 = vmatpush1.msra.mxu0 %v2330
    %3263 = vmatprep.subr.mxu0 0.0
    %3264 = vmatpush1.msra.mxu0 0.0
    %3265 = vmatprep.subr.mxu0 0.0
    %3266 = vmatpush1.msra.mxu0 0.0
    %3267 = vmatprep.subr.mxu0 0.0
    %3268 = vmatpush1.msra.mxu0 0.0
    %3269 = vmatprep.subr.mxu0 0.0
    %3270 = vmatpush1.msra.mxu0 0.0
    %3271 = vmatprep.subr.mxu0 0.0
    %3272 = vmatpush1.msra.mxu0 0.0
    %3273 = vmatprep.subr.mxu0 0.0
    %3274 = vmatpush1.msra.mxu0 0.0
    %3275 = vmatprep.subr.mxu0 0.0
    %3276 = vmatpush1.msra.mxu0 0.0
    %3277 = vmatprep.subr.mxu0 0.0
    %3278 = vmatpush1.msra.mxu0 0.0
    %3279 = vmatprep.subr.mxu0 0.0
    %3280 = vmatpush1.msra.mxu0 0.0
    %3281 = vmatprep.subr.mxu0 0.0
    %3282 = vmatpush1.msra.mxu0 0.0
    %3283 = vmatprep.subr.mxu0 0.0
    %3284 = vmatpush1.msra.mxu0 0.0
    %3285 = vmatprep.subr.mxu0 0.0
    %3286 = vmatpush1.msra.mxu0 0.0
    %3287 = vmatprep.subr.mxu0 0.0
    %3288 = vmatpush1.msra.mxu0 0.0
    %3289 = vmatprep.subr.mxu0 0.0
    %3290 = vmatpush1.msra.mxu0 0.0
    %3291 = vmatprep.subr.mxu0 0.0
    %3292 = vmatpush1.msra.mxu0 0.0
    %3293 = vmatprep.subr.mxu0 0.0
    %3294 = vmatpush1.msra.mxu0 0.0
    %3295 = vmatprep.subr.mxu0 0.0
    %3296 = vmatpush1.msra.mxu0 0.0
    %3297 = vmatprep.subr.mxu0 0.0
    %3298 = vmatpush1.msra.mxu0 0.0
    %3299 = vmatprep.subr.mxu0 0.0
    %3300 = vmatpush1.msra.mxu0 0.0
    %3301 = vmatprep.subr.mxu0 0.0
    %3302 = vmatpush1.msra.mxu0 0.0
    %3303 = vmatprep.subr.mxu0 0.0
    %3304 = vmatpush1.msra.mxu0 0.0
    %3305 = vmatprep.subr.mxu0 0.0
    %3306 = vmatpush1.msra.mxu0 0.0
    %3307 = vmatprep.subr.mxu0 0.0
    %3308 = vmatpush1.msra.mxu0 0.0
    %3309 = vmatprep.subr.mxu0 0.0
    %3310 = vmatpush1.msra.mxu0 0.0
    %3311 = vmatprep.subr.mxu0 0.0
    %3312 = vmatpush1.msra.mxu0 0.0
    %3313 = vmatprep.subr.mxu0 0.0
    %3314 = vmatpush1.msra.mxu0 0.0
    %3315 = vmatprep.subr.mxu0 0.0
    %3316 = vmatpush1.msra.mxu0 0.0
    %3317 = vmatprep.subr.mxu0 0.0
    %3318 = vmatpush1.msra.mxu0 0.0
    %3319 = vmatprep.subr.mxu0 0.0
    %3320 = vmatpush1.msra.mxu0 0.0
    %3321 = vmatprep.subr.mxu0 0.0
    %3322 = vmatpush1.msra.mxu0 0.0
    %3323 = vmatprep.subr.mxu0 0.0
    %3324 = vmatpush1.msra.mxu0 0.0
    %3325 = vmatprep.mubr.f32.mxu0 0.0
    %3326 = vmatmul.mubr.f32.gmra.mrb[0].mxu0 %v3256
    %v3327 = vpop.f32.mrb[0].mxu0
    %v3328 = vadd.f32 0.0, %v3327
    %v3329 = vpop.f32.mrb[0].mxu0
    %3330 = vmatprep.mubr.f32.mxu0 0.0
    %3331 = vmatmul.mubr.f32.gmra.mrb[0].mxu0 %v3259
    %v3332 = vpop.f32.mrb[0].mxu0
    %v3333 = vadd.f32 0.0, %v3332
    %v3334 = vpop.f32.mrb[0].mxu0
    %3335 = vdwg.mxu0
    %v3337 = vsel %vm386, %v2847, 0
    %v3340 = vsel %vm386, %v2920, 0
    %3342 = vmatprep.subr.mxu0 0.0
    %3343 = vmatpush1.msra.mxu0 %v2329
    %3344 = vmatprep.subr.mxu0 0.0
    %3345 = vmatpush1.msra.mxu0 0.0
    %3346 = vmatprep.subr.mxu0 0.0
    %3347 = vmatpush1.msra.mxu0 0.0
    %3348 = vmatprep.subr.mxu0 0.0
    %3349 = vmatpush1.msra.mxu0 0.0
    %3350 = vmatprep.subr.mxu0 0.0
    %3351 = vmatpush1.msra.mxu0 0.0
    %3352 = vmatprep.subr.mxu0 0.0
    %3353 = vmatpush1.msra.mxu0 0.0
    %3354 = vmatprep.subr.mxu0 0.0
    %3355 = vmatpush1.msra.mxu0 0.0
    %3356 = vmatprep.subr.mxu0 0.0
    %3357 = vmatpush1.msra.mxu0 0.0
    %3358 = vmatprep.subr.mxu0 0.0
    %3359 = vmatpush1.msra.mxu0 0.0
    %3360 = vmatprep.subr.mxu0 0.0
    %3361 = vmatpush1.msra.mxu0 0.0
    %3362 = vmatprep.subr.mxu0 0.0
    %3363 = vmatpush1.msra.mxu0 0.0
    %3364 = vmatprep.subr.mxu0 0.0
    %3365 = vmatpush1.msra.mxu0 0.0
    %3366 = vmatprep.subr.mxu0 0.0
    %3367 = vmatpush1.msra.mxu0 0.0
    %3368 = vmatprep.subr.mxu0 0.0
    %3369 = vmatpush1.msra.mxu0 0.0
    %3370 = vmatprep.subr.mxu0 0.0
    %3371 = vmatpush1.msra.mxu0 0.0
    %3372 = vmatprep.subr.mxu0 0.0
    %3373 = vmatpush1.msra.mxu0 0.0
    %3374 = vmatprep.subr.mxu0 0.0
    %3375 = vmatpush1.msra.mxu0 0.0
    %3376 = vmatprep.subr.mxu0 0.0
    %3377 = vmatpush1.msra.mxu0 0.0
    %3378 = vmatprep.subr.mxu0 0.0
    %3379 = vmatpush1.msra.mxu0 0.0
    %3380 = vmatprep.subr.mxu0 0.0
    %3381 = vmatpush1.msra.mxu0 0.0
    %3382 = vmatprep.subr.mxu0 0.0
    %3383 = vmatpush1.msra.mxu0 0.0
    %3384 = vmatprep.subr.mxu0 0.0
    %3385 = vmatpush1.msra.mxu0 0.0
    %3386 = vmatprep.subr.mxu0 0.0
    %3387 = vmatpush1.msra.mxu0 0.0
    %3388 = vmatprep.subr.mxu0 0.0
    %3389 = vmatpush1.msra.mxu0 0.0
    %3390 = vmatprep.subr.mxu0 0.0
    %3391 = vmatpush1.msra.mxu0 0.0
    %3392 = vmatprep.subr.mxu0 0.0
    %3393 = vmatpush1.msra.mxu0 0.0
    %3394 = vmatprep.subr.mxu0 0.0
    %3395 = vmatpush1.msra.mxu0 0.0
    %3396 = vmatprep.subr.mxu0 0.0
    %3397 = vmatpush1.msra.mxu0 0.0
    %3398 = vmatprep.subr.mxu0 0.0
    %3399 = vmatpush1.msra.mxu0 0.0
    %3400 = vmatprep.subr.mxu0 0.0
    %3401 = vmatpush1.msra.mxu0 0.0
    %3402 = vmatprep.subr.mxu0 0.0
    %3403 = vmatpush1.msra.mxu0 0.0
    %3404 = vmatprep.subr.mxu0 0.0
    %3405 = vmatpush1.msra.mxu0 0.0
    %3406 = vmatprep.mubr.f32.mxu0 0.0
    %3407 = vmatmul.mubr.f32.gmra.mrb[0].mxu0 %v3337
    %v3408 = vpop.f32.mrb[0].mxu0
    %v3409 = vadd.f32 %v3328, %v3408
    %v3410 = vpop.f32.mrb[0].mxu0
    %3411 = vmatprep.mubr.f32.mxu0 0.0
    %3412 = vmatmul.mubr.f32.gmra.mrb[0].mxu0 %v3340
    %v3413 = vpop.f32.mrb[0].mxu0
    %v3414 = vadd.f32 %v3333, %v3413
    %v3415 = vpop.f32.mrb[0].mxu0
    %3416 = vdwg.mxu0
    %3417 = vrot.lane.b32.xlu0 %v2419, 112
    %v3418 = vpop.permute.xlu0 %3417
    %3419 = vrot.lane.b32.xlu0 %v2507, 112
    %v3420 = vpop.permute.xlu0 %3419
    %v3421 = vsel %vm386, %v3418, 0
    %v3423 = vsel %vm386, %v3420, 0
    %3425 = vmatprep.subr.mxu0 0.0
    %3426 = vmatpush1.xpose.msra.mxu0 %v3423
    %3427 = vmatprep.subr.mxu0 0.0
    %3428 = vmatpush1.xpose.msra.mxu0 0.0
    %3429 = vmatprep.subr.mxu0 0.0
    %3430 = vmatpush1.xpose.msra.mxu0 0.0
    %3431 = vmatprep.subr.mxu0 0.0
    %3432 = vmatpush1.xpose.msra.mxu0 0.0
    %3433 = vmatprep.subr.mxu0 0.0
    %3434 = vmatpush1.xpose.msra.mxu0 0.0
    %3435 = vmatprep.subr.mxu0 0.0
    %3436 = vmatpush1.xpose.msra.mxu0 0.0
    %3437 = vmatprep.subr.mxu0 0.0
    %3438 = vmatpush1.xpose.msra.mxu0 0.0
    %3439 = vmatprep.subr.mxu0 0.0
    %3440 = vmatpush1.xpose.msra.mxu0 0.0
    %3441 = vmatprep.subr.mxu0 0.0
    %3442 = vmatpush1.xpose.msra.mxu0 0.0
    %3443 = vmatprep.subr.mxu0 0.0
    %3444 = vmatpush1.xpose.msra.mxu0 0.0
    %3445 = vmatprep.subr.mxu0 0.0
    %3446 = vmatpush1.xpose.msra.mxu0 0.0
    %3447 = vmatprep.subr.mxu0 0.0
    %3448 = vmatpush1.xpose.msra.mxu0 0.0
    %3449 = vmatprep.subr.mxu0 0.0
    %3450 = vmatpush1.xpose.msra.mxu0 0.0
    %3451 = vmatprep.subr.mxu0 0.0
    %3452 = vmatpush1.xpose.msra.mxu0 0.0
    %3453 = vmatprep.subr.mxu0 0.0
    %3454 = vmatpush1.xpose.msra.mxu0 0.0
    %3455 = vmatprep.subr.mxu0 0.0
    %3456 = vmatpush1.xpose.msra.mxu0 0.0
    %3457 = vmatprep.subr.mxu0 0.0
    %3458 = vmatpush1.xpose.msra.mxu0 0.0
    %3459 = vmatprep.subr.mxu0 0.0
    %3460 = vmatpush1.xpose.msra.mxu0 0.0
    %3461 = vmatprep.subr.mxu0 0.0
    %3462 = vmatpush1.xpose.msra.mxu0 0.0
    %3463 = vmatprep.subr.mxu0 0.0
    %3464 = vmatpush1.xpose.msra.mxu0 0.0
    %3465 = vmatprep.subr.mxu0 0.0
    %3466 = vmatpush1.xpose.msra.mxu0 0.0
    %3467 = vmatprep.subr.mxu0 0.0
    %3468 = vmatpush1.xpose.msra.mxu0 0.0
    %3469 = vmatprep.subr.mxu0 0.0
    %3470 = vmatpush1.xpose.msra.mxu0 0.0
    %3471 = vmatprep.subr.mxu0 0.0
    %3472 = vmatpush1.xpose.msra.mxu0 0.0
    %3473 = vmatprep.subr.mxu0 0.0
    %3474 = vmatpush1.xpose.msra.mxu0 0.0
    %3475 = vmatprep.subr.mxu0 0.0
    %3476 = vmatpush1.xpose.msra.mxu0 0.0
    %3477 = vmatprep.subr.mxu0 0.0
    %3478 = vmatpush1.xpose.msra.mxu0 0.0
    %3479 = vmatprep.subr.mxu0 0.0
    %3480 = vmatpush1.xpose.msra.mxu0 0.0
    %3481 = vmatprep.subr.mxu0 0.0
    %3482 = vmatpush1.xpose.msra.mxu0 0.0
    %3483 = vmatprep.subr.mxu0 0.0
    %3484 = vmatpush1.xpose.msra.mxu0 0.0
    %3485 = vmatprep.subr.mxu0 0.0
    %3486 = vmatpush1.xpose.msra.mxu0 0.0
    %3487 = vmatprep.subr.mxu0 0.0
    %3488 = vmatpush1.xpose.msra.mxu0 0.0
    %3489 = vmatprep.mubr.f32.mxu0 0.0
    %3490 = vmatmul.mubr.f32.gmra.mrb[0].mxu0 %v3421
    %v3491 = vpop.f32.mrb[0].mxu0
    %v3492 = vadd.f32 %v379, %v3491
    %v3493 = vpop.f32.mrb[0].mxu0
    %3494 = vdwg.mxu0
    %3495 = vrot.lane.b32.xlu0 %v2424, 112
    %v3496 = vpop.permute.xlu0 %3495
    %3497 = vrot.lane.b32.xlu0 %v2512, 112
    %v3498 = vpop.permute.xlu0 %3497
    %v3499 = vsel %vm386, %v3496, 0
    %v3501 = vsel %vm386, %v3498, 0
    %3503 = vmatprep.subr.mxu0 0.0
    %3504 = vmatpush1.xpose.msra.mxu0 %v3501
    %3505 = vmatprep.subr.mxu0 0.0
    %3506 = vmatpush1.xpose.msra.mxu0 0.0
    %3507 = vmatprep.subr.mxu0 0.0
    %3508 = vmatpush1.xpose.msra.mxu0 0.0
    %3509 = vmatprep.subr.mxu0 0.0
    %3510 = vmatpush1.xpose.msra.mxu0 0.0
    %3511 = vmatprep.subr.mxu0 0.0
    %3512 = vmatpush1.xpose.msra.mxu0 0.0
    %3513 = vmatprep.subr.mxu0 0.0
    %3514 = vmatpush1.xpose.msra.mxu0 0.0
    %3515 = vmatprep.subr.mxu0 0.0
    %3516 = vmatpush1.xpose.msra.mxu0 0.0
    %3517 = vmatprep.subr.mxu0 0.0
    %3518 = vmatpush1.xpose.msra.mxu0 0.0
    %3519 = vmatprep.subr.mxu0 0.0
    %3520 = vmatpush1.xpose.msra.mxu0 0.0
    %3521 = vmatprep.subr.mxu0 0.0
    %3522 = vmatpush1.xpose.msra.mxu0 0.0
    %3523 = vmatprep.subr.mxu0 0.0
    %3524 = vmatpush1.xpose.msra.mxu0 0.0
    %3525 = vmatprep.subr.mxu0 0.0
    %3526 = vmatpush1.xpose.msra.mxu0 0.0
    %3527 = vmatprep.subr.mxu0 0.0
    %3528 = vmatpush1.xpose.msra.mxu0 0.0
    %3529 = vmatprep.subr.mxu0 0.0
    %3530 = vmatpush1.xpose.msra.mxu0 0.0
    %3531 = vmatprep.subr.mxu0 0.0
    %3532 = vmatpush1.xpose.msra.mxu0 0.0
    %3533 = vmatprep.subr.mxu0 0.0
    %3534 = vmatpush1.xpose.msra.mxu0 0.0
    %3535 = vmatprep.subr.mxu0 0.0
    %3536 = vmatpush1.xpose.msra.mxu0 0.0
    %3537 = vmatprep.subr.mxu0 0.0
    %3538 = vmatpush1.xpose.msra.mxu0 0.0
    %3539 = vmatprep.subr.mxu0 0.0
    %3540 = vmatpush1.xpose.msra.mxu0 0.0
    %3541 = vmatprep.subr.mxu0 0.0
    %3542 = vmatpush1.xpose.msra.mxu0 0.0
    %3543 = vmatprep.subr.mxu0 0.0
    %3544 = vmatpush1.xpose.msra.mxu0 0.0
    %3545 = vmatprep.subr.mxu0 0.0
    %3546 = vmatpush1.xpose.msra.mxu0 0.0
    %3547 = vmatprep.subr.mxu0 0.0
    %3548 = vmatpush1.xpose.msra.mxu0 0.0
    %3549 = vmatprep.subr.mxu0 0.0
    %3550 = vmatpush1.xpose.msra.mxu0 0.0
    %3551 = vmatprep.subr.mxu0 0.0
    %3552 = vmatpush1.xpose.msra.mxu0 0.0
    %3553 = vmatprep.subr.mxu0 0.0
    %3554 = vmatpush1.xpose.msra.mxu0 0.0
    %3555 = vmatprep.subr.mxu0 0.0
    %3556 = vmatpush1.xpose.msra.mxu0 0.0
    %3557 = vmatprep.subr.mxu0 0.0
    %3558 = vmatpush1.xpose.msra.mxu0 0.0
    %3559 = vmatprep.subr.mxu0 0.0
    %3560 = vmatpush1.xpose.msra.mxu0 0.0
    %3561 = vmatprep.subr.mxu0 0.0
    %3562 = vmatpush1.xpose.msra.mxu0 0.0
    %3563 = vmatprep.subr.mxu0 0.0
    %3564 = vmatpush1.xpose.msra.mxu0 0.0
    %3565 = vmatprep.subr.mxu0 0.0
    %3566 = vmatpush1.xpose.msra.mxu0 0.0
    %3567 = vmatprep.mubr.f32.mxu0 0.0
    %3568 = vmatmul.mubr.f32.gmra.mrb[0].mxu0 %v3499
    %v3569 = vpop.f32.mrb[0].mxu0
    %v3570 = vadd.f32 %v383, %v3569
    %v3571 = vpop.f32.mrb[0].mxu0
    %3572 = vdwg.mxu0
    %v3573 = vsel %vm386, %v3492, -inf
    %3574 = vmax.xlane.f32.xlu0 %v3573
    %v3575 = vpop.xlane.xlu0 %3574
    %v3576 = vsel %vm386, %v3570, -inf
    %3577 = vmax.xlane.f32.xlu0 %v3576
    %v3578 = vpop.xlane.xlu0 %3577
    %v3579 = vsub.f32 %v3492, %v3575
    %v3580 = vsub.f32 %v3570, %v3578
    %v3581 = vmul.f32 %v3579, 1.442695
    %v3582 = vpow.pop %v3581
    %v3583 = vmul.f32 %v3580, 1.442695
    %v3584 = vpow.pop %v3583
    %v3585 = vsel %vm386, %v3582, 0.0
    %3586 = vadd.xlane.f32.xlu0 %v3585
    %v3587 = vpop.xlane.xlu0 %3586
    %v3588 = vsel %vm386, %v3584, 0.0
    %3589 = vadd.xlane.f32.xlu0 %v3588
    %v3590 = vpop.xlane.xlu0 %3589
    %v3591 = vrcp.pop %v3587
    %v3592 = vrcp.pop %v3590
    %v3593 = vmul.f32 %v3582, %v3591
    %v3594 = vmul.f32 %v3584, %v3592
    %3595 = vrot.lane.b32.xlu0 %v2595, 112
    %v3596 = vpop.permute.xlu0 %3595
    %v3599 = vsel %vm386, %v3593, 0
    %3601 = vmatprep.subr.mxu0 0.0
    %3602 = vmatpush1.msra.mxu0 %v3596
    %3603 = vmatprep.subr.mxu0 0.0
    %3604 = vmatpush1.msra.mxu0 0.0
    %3605 = vmatprep.subr.mxu0 0.0
    %3606 = vmatpush1.msra.mxu0 0.0
    %3607 = vmatprep.subr.mxu0 0.0
    %3608 = vmatpush1.msra.mxu0 0.0
    %3609 = vmatprep.subr.mxu0 0.0
    %3610 = vmatpush1.msra.mxu0 0.0
    %3611 = vmatprep.subr.mxu0 0.0
    %3612 = vmatpush1.msra.mxu0 0.0
    %3613 = vmatprep.subr.mxu0 0.0
    %3614 = vmatpush1.msra.mxu0 0.0
    %3615 = vmatprep.subr.mxu0 0.0
    %3616 = vmatpush1.msra.mxu0 0.0
    %3617 = vmatprep.subr.mxu0 0.0
    %3618 = vmatpush1.msra.mxu0 0.0
    %3619 = vmatprep.subr.mxu0 0.0
    %3620 = vmatpush1.msra.mxu0 0.0
    %3621 = vmatprep.subr.mxu0 0.0
    %3622 = vmatpush1.msra.mxu0 0.0
    %3623 = vmatprep.subr.mxu0 0.0
    %3624 = vmatpush1.msra.mxu0 0.0
    %3625 = vmatprep.subr.mxu0 0.0
    %3626 = vmatpush1.msra.mxu0 0.0
    %3627 = vmatprep.subr.mxu0 0.0
    %3628 = vmatpush1.msra.mxu0 0.0
    %3629 = vmatprep.subr.mxu0 0.0
    %3630 = vmatpush1.msra.mxu0 0.0
    %3631 = vmatprep.subr.mxu0 0.0
    %3632 = vmatpush1.msra.mxu0 0.0
    %3633 = vmatprep.subr.mxu0 0.0
    %3634 = vmatpush1.msra.mxu0 0.0
    %3635 = vmatprep.subr.mxu0 0.0
    %3636 = vmatpush1.msra.mxu0 0.0
    %3637 = vmatprep.subr.mxu0 0.0
    %3638 = vmatpush1.msra.mxu0 0.0
    %3639 = vmatprep.subr.mxu0 0.0
    %3640 = vmatpush1.msra.mxu0 0.0
    %3641 = vmatprep.subr.mxu0 0.0
    %3642 = vmatpush1.msra.mxu0 0.0
    %3643 = vmatprep.subr.mxu0 0.0
    %3644 = vmatpush1.msra.mxu0 0.0
    %3645 = vmatprep.subr.mxu0 0.0
    %3646 = vmatpush1.msra.mxu0 0.0
    %3647 = vmatprep.subr.mxu0 0.0
    %3648 = vmatpush1.msra.mxu0 0.0
    %3649 = vmatprep.subr.mxu0 0.0
    %3650 = vmatpush1.msra.mxu0 0.0
    %3651 = vmatprep.subr.mxu0 0.0
    %3652 = vmatpush1.msra.mxu0 0.0
    %3653 = vmatprep.subr.mxu0 0.0
    %3654 = vmatpush1.msra.mxu0 0.0
    %3655 = vmatprep.subr.mxu0 0.0
    %3656 = vmatpush1.msra.mxu0 0.0
    %3657 = vmatprep.subr.mxu0 0.0
    %3658 = vmatpush1.msra.mxu0 0.0
    %3659 = vmatprep.subr.mxu0 0.0
    %3660 = vmatpush1.msra.mxu0 0.0
    %3661 = vmatprep.subr.mxu0 0.0
    %3662 = vmatpush1.msra.mxu0 0.0
    %3663 = vmatprep.subr.mxu0 0.0
    %3664 = vmatpush1.msra.mxu0 0.0
    %3665 = vmatprep.mubr.f32.mxu0 0.0
    %3666 = vmatmul.mubr.f32.gmra.mrb[0].mxu0 %v3599
    %v3667 = vpop.f32.mrb[0].mxu0
    %v3668 = vadd.f32 0.0, %v3667
    %v3669 = vpop.f32.mrb[0].mxu0
    %3670 = vdwg.mxu0
    %3671 = vrot.lane.b32.xlu0 %v2600, 112
    %v3672 = vpop.permute.xlu0 %3671
    %v3675 = vsel %vm386, %v3594, 0
    %3677 = vmatprep.subr.mxu0 0.0
    %3678 = vmatpush1.msra.mxu0 %v3672
    %3679 = vmatprep.subr.mxu0 0.0
    %3680 = vmatpush1.msra.mxu0 0.0
    %3681 = vmatprep.subr.mxu0 0.0
    %3682 = vmatpush1.msra.mxu0 0.0
    %3683 = vmatprep.subr.mxu0 0.0
    %3684 = vmatpush1.msra.mxu0 0.0
    %3685 = vmatprep.subr.mxu0 0.0
    %3686 = vmatpush1.msra.mxu0 0.0
    %3687 = vmatprep.subr.mxu0 0.0
    %3688 = vmatpush1.msra.mxu0 0.0
    %3689 = vmatprep.subr.mxu0 0.0
    %3690 = vmatpush1.msra.mxu0 0.0
    %3691 = vmatprep.subr.mxu0 0.0
    %3692 = vmatpush1.msra.mxu0 0.0
    %3693 = vmatprep.subr.mxu0 0.0
    %3694 = vmatpush1.msra.mxu0 0.0
    %3695 = vmatprep.subr.mxu0 0.0
    %3696 = vmatpush1.msra.mxu0 0.0
    %3697 = vmatprep.subr.mxu0 0.0
    %3698 = vmatpush1.msra.mxu0 0.0
    %3699 = vmatprep.subr.mxu0 0.0
    %3700 = vmatpush1.msra.mxu0 0.0
    %3701 = vmatprep.subr.mxu0 0.0
    %3702 = vmatpush1.msra.mxu0 0.0
    %3703 = vmatprep.subr.mxu0 0.0
    %3704 = vmatpush1.msra.mxu0 0.0
    %3705 = vmatprep.subr.mxu0 0.0
    %3706 = vmatpush1.msra.mxu0 0.0
    %3707 = vmatprep.subr.mxu0 0.0
    %3708 = vmatpush1.msra.mxu0 0.0
    %3709 = vmatprep.subr.mxu0 0.0
    %3710 = vmatpush1.msra.mxu0 0.0
    %3711 = vmatprep.subr.mxu0 0.0
    %3712 = vmatpush1.msra.mxu0 0.0
    %3713 = vmatprep.subr.mxu0 0.0
    %3714 = vmatpush1.msra.mxu0 0.0
    %3715 = vmatprep.subr.mxu0 0.0
    %3716 = vmatpush1.msra.mxu0 0.0
    %3717 = vmatprep.subr.mxu0 0.0
    %3718 = vmatpush1.msra.mxu0 0.0
    %3719 = vmatprep.subr.mxu0 0.0
    %3720 = vmatpush1.msra.mxu0 0.0
    %3721 = vmatprep.subr.mxu0 0.0
    %3722 = vmatpush1.msra.mxu0 0.0
    %3723 = vmatprep.subr.mxu0 0.0
    %3724 = vmatpush1.msra.mxu0 0.0
    %3725 = vmatprep.subr.mxu0 0.0
    %3726 = vmatpush1.msra.mxu0 0.0
    %3727 = vmatprep.subr.mxu0 0.0
    %3728 = vmatpush1.msra.mxu0 0.0
    %3729 = vmatprep.subr.mxu0 0.0
    %3730 = vmatpush1.msra.mxu0 0.0
    %3731 = vmatprep.subr.mxu0 0.0
    %3732 = vmatpush1.msra.mxu0 0.0
    %3733 = vmatprep.subr.mxu0 0.0
    %3734 = vmatpush1.msra.mxu0 0.0
    %3735 = vmatprep.subr.mxu0 0.0
    %3736 = vmatpush1.msra.mxu0 0.0
    %3737 = vmatprep.subr.mxu0 0.0
    %3738 = vmatpush1.msra.mxu0 0.0
    %3739 = vmatprep.subr.mxu0 0.0
    %3740 = vmatpush1.msra.mxu0 0.0
    %3741 = vmatprep.mubr.f32.mxu0 0.0
    %3742 = vmatmul.mubr.f32.gmra.mrb[0].mxu0 %v3675
    %v3743 = vpop.f32.mrb[0].mxu0
    %v3744 = vadd.f32 0.0, %v3743
    %v3745 = vpop.f32.mrb[0].mxu0
    %3746 = vdwg.mxu0
    %v3748 = vsel %vm386, %v3668, 0
    %v3751 = vsel %vm386, %v3744, 0
    %3753 = vmatprep.subr.mxu0 0.0
    %3754 = vmatpush1.msra.mxu0 %v2331
    %3755 = vmatprep.subr.mxu0 0.0
    %3756 = vmatpush1.msra.mxu0 0.0
    %3757 = vmatprep.subr.mxu0 0.0
    %3758 = vmatpush1.msra.mxu0 0.0
    %3759 = vmatprep.subr.mxu0 0.0
    %3760 = vmatpush1.msra.mxu0 0.0
    %3761 = vmatprep.subr.mxu0 0.0
    %3762 = vmatpush1.msra.mxu0 0.0
    %3763 = vmatprep.subr.mxu0 0.0
    %3764 = vmatpush1.msra.mxu0 0.0
    %3765 = vmatprep.subr.mxu0 0.0
    %3766 = vmatpush1.msra.mxu0 0.0
    %3767 = vmatprep.subr.mxu0 0.0
    %3768 = vmatpush1.msra.mxu0 0.0
    %3769 = vmatprep.subr.mxu0 0.0
    %3770 = vmatpush1.msra.mxu0 0.0
    %3771 = vmatprep.subr.mxu0 0.0
    %3772 = vmatpush1.msra.mxu0 0.0
    %3773 = vmatprep.subr.mxu0 0.0
    %3774 = vmatpush1.msra.mxu0 0.0
    %3775 = vmatprep.subr.mxu0 0.0
    %3776 = vmatpush1.msra.mxu0 0.0
    %3777 = vmatprep.subr.mxu0 0.0
    %3778 = vmatpush1.msra.mxu0 0.0
    %3779 = vmatprep.subr.mxu0 0.0
    %3780 = vmatpush1.msra.mxu0 0.0
    %3781 = vmatprep.subr.mxu0 0.0
    %3782 = vmatpush1.msra.mxu0 0.0
    %3783 = vmatprep.subr.mxu0 0.0
    %3784 = vmatpush1.msra.mxu0 0.0
    %3785 = vmatprep.subr.mxu0 0.0
    %3786 = vmatpush1.msra.mxu0 0.0
    %3787 = vmatprep.subr.mxu0 0.0
    %3788 = vmatpush1.msra.mxu0 0.0
    %3789 = vmatprep.subr.mxu0 0.0
    %3790 = vmatpush1.msra.mxu0 0.0
    %3791 = vmatprep.subr.mxu0 0.0
    %3792 = vmatpush1.msra.mxu0 0.0
    %3793 = vmatprep.subr.mxu0 0.0
    %3794 = vmatpush1.msra.mxu0 0.0
    %3795 = vmatprep.subr.mxu0 0.0
    %3796 = vmatpush1.msra.mxu0 0.0
    %3797 = vmatprep.subr.mxu0 0.0
    %3798 = vmatpush1.msra.mxu0 0.0
    %3799 = vmatprep.subr.mxu0 0.0
    %3800 = vmatpush1.msra.mxu0 0.0
    %3801 = vmatprep.subr.mxu0 0.0
    %3802 = vmatpush1.msra.mxu0 0.0
    %3803 = vmatprep.subr.mxu0 0.0
    %3804 = vmatpush1.msra.mxu0 0.0
    %3805 = vmatprep.subr.mxu0 0.0
    %3806 = vmatpush1.msra.mxu0 0.0
    %3807 = vmatprep.subr.mxu0 0.0
    %3808 = vmatpush1.msra.mxu0 0.0
    %3809 = vmatprep.subr.mxu0 0.0
    %3810 = vmatpush1.msra.mxu0 0.0
    %3811 = vmatprep.subr.mxu0 0.0
    %3812 = vmatpush1.msra.mxu0 0.0
    %3813 = vmatprep.subr.mxu0 0.0
    %3814 = vmatpush1.msra.mxu0 0.0
    %3815 = vmatprep.subr.mxu0 0.0
    %3816 = vmatpush1.msra.mxu0 0.0
    %3817 = vmatprep.mubr.f32.mxu0 0.0
    %3818 = vmatmul.mubr.f32.gmra.mrb[0].mxu0 %v3748
    %v3819 = vpop.f32.mrb[0].mxu0
    %v3820 = vadd.f32 0.0, %v3819
    %v3821 = vpop.f32.mrb[0].mxu0
    %3822 = vmatprep.mubr.f32.mxu0 0.0
    %3823 = vmatmul.mubr.f32.gmra.mrb[0].mxu0 %v3751
    %v3824 = vpop.f32.mrb[0].mxu0
    %v3825 = vadd.f32 0.0, %v3824
    %v3826 = vpop.f32.mrb[0].mxu0
    %3827 = vdwg.mxu0
    %v3828 = vadd.f32 %v3409, %v3820
    %v3829 = vadd.f32 %v3414, %v3825
    %3830 = vrot.lane.b32.xlu0 %v2419, 104
    %v3831 = vpop.permute.xlu0 %3830
    %3832 = vrot.lane.b32.xlu0 %v2507, 104
    %v3833 = vpop.permute.xlu0 %3832
    %v3834 = vsel %vm386, %v3831, 0
    %v3836 = vsel %vm386, %v3833, 0
    %3838 = vmatprep.subr.mxu0 0.0
    %3839 = vmatpush1.xpose.msra.mxu0 %v3836
    %3840 = vmatprep.subr.mxu0 0.0
    %3841 = vmatpush1.xpose.msra.mxu0 0.0
    %3842 = vmatprep.subr.mxu0 0.0
    %3843 = vmatpush1.xpose.msra.mxu0 0.0
    %3844 = vmatprep.subr.mxu0 0.0
    %3845 = vmatpush1.xpose.msra.mxu0 0.0
    %3846 = vmatprep.subr.mxu0 0.0
    %3847 = vmatpush1.xpose.msra.mxu0 0.0
    %3848 = vmatprep.subr.mxu0 0.0
    %3849 = vmatpush1.xpose.msra.mxu0 0.0
    %3850 = vmatprep.subr.mxu0 0.0
    %3851 = vmatpush1.xpose.msra.mxu0 0.0
    %3852 = vmatprep.subr.mxu0 0.0
    %3853 = vmatpush1.xpose.msra.mxu0 0.0
    %3854 = vmatprep.subr.mxu0 0.0
    %3855 = vmatpush1.xpose.msra.mxu0 0.0
    %3856 = vmatprep.subr.mxu0 0.0
    %3857 = vmatpush1.xpose.msra.mxu0 0.0
    %3858 = vmatprep.subr.mxu0 0.0
    %3859 = vmatpush1.xpose.msra.mxu0 0.0
    %3860 = vmatprep.subr.mxu0 0.0
    %3861 = vmatpush1.xpose.msra.mxu0 0.0
    %3862 = vmatprep.subr.mxu0 0.0
    %3863 = vmatpush1.xpose.msra.mxu0 0.0
    %3864 = vmatprep.subr.mxu0 0.0
    %3865 = vmatpush1.xpose.msra.mxu0 0.0
    %3866 = vmatprep.subr.mxu0 0.0
    %3867 = vmatpush1.xpose.msra.mxu0 0.0
    %3868 = vmatprep.subr.mxu0 0.0
    %3869 = vmatpush1.xpose.msra.mxu0 0.0
    %3870 = vmatprep.subr.mxu0 0.0
    %3871 = vmatpush1.xpose.msra.mxu0 0.0
    %3872 = vmatprep.subr.mxu0 0.0
    %3873 = vmatpush1.xpose.msra.mxu0 0.0
    %3874 = vmatprep.subr.mxu0 0.0
    %3875 = vmatpush1.xpose.msra.mxu0 0.0
    %3876 = vmatprep.subr.mxu0 0.0
    %3877 = vmatpush1.xpose.msra.mxu0 0.0
    %3878 = vmatprep.subr.mxu0 0.0
    %3879 = vmatpush1.xpose.msra.mxu0 0.0
    %3880 = vmatprep.subr.mxu0 0.0
    %3881 = vmatpush1.xpose.msra.mxu0 0.0
    %3882 = vmatprep.subr.mxu0 0.0
    %3883 = vmatpush1.xpose.msra.mxu0 0.0
    %3884 = vmatprep.subr.mxu0 0.0
    %3885 = vmatpush1.xpose.msra.mxu0 0.0
    %3886 = vmatprep.subr.mxu0 0.0
    %3887 = vmatpush1.xpose.msra.mxu0 0.0
    %3888 = vmatprep.subr.mxu0 0.0
    %3889 = vmatpush1.xpose.msra.mxu0 0.0
    %3890 = vmatprep.subr.mxu0 0.0
    %3891 = vmatpush1.xpose.msra.mxu0 0.0
    %3892 = vmatprep.subr.mxu0 0.0
    %3893 = vmatpush1.xpose.msra.mxu0 0.0
    %3894 = vmatprep.subr.mxu0 0.0
    %3895 = vmatpush1.xpose.msra.mxu0 0.0
    %3896 = vmatprep.subr.mxu0 0.0
    %3897 = vmatpush1.xpose.msra.mxu0 0.0
    %3898 = vmatprep.subr.mxu0 0.0
    %3899 = vmatpush1.xpose.msra.mxu0 0.0
    %3900 = vmatprep.subr.mxu0 0.0
    %3901 = vmatpush1.xpose.msra.mxu0 0.0
    %3902 = vmatprep.mubr.f32.mxu0 0.0
    %3903 = vmatmul.mubr.f32.gmra.mrb[0].mxu0 %v3834
    %v3904 = vpop.f32.mrb[0].mxu0
    %v3905 = vadd.f32 %v379, %v3904
    %v3906 = vpop.f32.mrb[0].mxu0
    %3907 = vdwg.mxu0
    %3908 = vrot.lane.b32.xlu0 %v2424, 104
    %v3909 = vpop.permute.xlu0 %3908
    %3910 = vrot.lane.b32.xlu0 %v2512, 104
    %v3911 = vpop.permute.xlu0 %3910
    %v3912 = vsel %vm386, %v3909, 0
    %v3914 = vsel %vm386, %v3911, 0
    %3916 = vmatprep.subr.mxu0 0.0
    %3917 = vmatpush1.xpose.msra.mxu0 %v3914
    %3918 = vmatprep.subr.mxu0 0.0
    %3919 = vmatpush1.xpose.msra.mxu0 0.0
    %3920 = vmatprep.subr.mxu0 0.0
    %3921 = vmatpush1.xpose.msra.mxu0 0.0
    %3922 = vmatprep.subr.mxu0 0.0
    %3923 = vmatpush1.xpose.msra.mxu0 0.0
    %3924 = vmatprep.subr.mxu0 0.0
    %3925 = vmatpush1.xpose.msra.mxu0 0.0
    %3926 = vmatprep.subr.mxu0 0.0
    %3927 = vmatpush1.xpose.msra.mxu0 0.0
    %3928 = vmatprep.subr.mxu0 0.0
    %3929 = vmatpush1.xpose.msra.mxu0 0.0
    %3930 = vmatprep.subr.mxu0 0.0
    %3931 = vmatpush1.xpose.msra.mxu0 0.0
    %3932 = vmatprep.subr.mxu0 0.0
    %3933 = vmatpush1.xpose.msra.mxu0 0.0
    %3934 = vmatprep.subr.mxu0 0.0
    %3935 = vmatpush1.xpose.msra.mxu0 0.0
    %3936 = vmatprep.subr.mxu0 0.0
    %3937 = vmatpush1.xpose.msra.mxu0 0.0
    %3938 = vmatprep.subr.mxu0 0.0
    %3939 = vmatpush1.xpose.msra.mxu0 0.0
    %3940 = vmatprep.subr.mxu0 0.0
    %3941 = vmatpush1.xpose.msra.mxu0 0.0
    %3942 = vmatprep.subr.mxu0 0.0
    %3943 = vmatpush1.xpose.msra.mxu0 0.0
    %3944 = vmatprep.subr.mxu0 0.0
    %3945 = vmatpush1.xpose.msra.mxu0 0.0
    %3946 = vmatprep.subr.mxu0 0.0
    %3947 = vmatpush1.xpose.msra.mxu0 0.0
    %3948 = vmatprep.subr.mxu0 0.0
    %3949 = vmatpush1.xpose.msra.mxu0 0.0
    %3950 = vmatprep.subr.mxu0 0.0
    %3951 = vmatpush1.xpose.msra.mxu0 0.0
    %3952 = vmatprep.subr.mxu0 0.0
    %3953 = vmatpush1.xpose.msra.mxu0 0.0
    %3954 = vmatprep.subr.mxu0 0.0
    %3955 = vmatpush1.xpose.msra.mxu0 0.0
    %3956 = vmatprep.subr.mxu0 0.0
    %3957 = vmatpush1.xpose.msra.mxu0 0.0
    %3958 = vmatprep.subr.mxu0 0.0
    %3959 = vmatpush1.xpose.msra.mxu0 0.0
    %3960 = vmatprep.subr.mxu0 0.0
    %3961 = vmatpush1.xpose.msra.mxu0 0.0
    %3962 = vmatprep.subr.mxu0 0.0
    %3963 = vmatpush1.xpose.msra.mxu0 0.0
    %3964 = vmatprep.subr.mxu0 0.0
    %3965 = vmatpush1.xpose.msra.mxu0 0.0
    %3966 = vmatprep.subr.mxu0 0.0
    %3967 = vmatpush1.xpose.msra.mxu0 0.0
    %3968 = vmatprep.subr.mxu0 0.0
    %3969 = vmatpush1.xpose.msra.mxu0 0.0
    %3970 = vmatprep.subr.mxu0 0.0
    %3971 = vmatpush1.xpose.msra.mxu0 0.0
    %3972 = vmatprep.subr.mxu0 0.0
    %3973 = vmatpush1.xpose.msra.mxu0 0.0
    %3974 = vmatprep.subr.mxu0 0.0
    %3975 = vmatpush1.xpose.msra.mxu0 0.0
    %3976 = vmatprep.subr.mxu0 0.0
    %3977 = vmatpush1.xpose.msra.mxu0 0.0
    %3978 = vmatprep.subr.mxu0 0.0
    %3979 = vmatpush1.xpose.msra.mxu0 0.0
    %3980 = vmatprep.mubr.f32.mxu0 0.0
    %3981 = vmatmul.mubr.f32.gmra.mrb[0].mxu0 %v3912
    %v3982 = vpop.f32.mrb[0].mxu0
    %v3983 = vadd.f32 %v383, %v3982
    %v3984 = vpop.f32.mrb[0].mxu0
    %3985 = vdwg.mxu0
    %v3986 = vsel %vm386, %v3905, -inf
    %3987 = vmax.xlane.f32.xlu0 %v3986
    %v3988 = vpop.xlane.xlu0 %3987
    %v3989 = vsel %vm386, %v3983, -inf
    %3990 = vmax.xlane.f32.xlu0 %v3989
    %v3991 = vpop.xlane.xlu0 %3990
    %v3992 = vsub.f32 %v3905, %v3988
    %v3993 = vsub.f32 %v3983, %v3991
    %v3994 = vmul.f32 %v3992, 1.442695
    %v3995 = vpow.pop %v3994
    %v3996 = vmul.f32 %v3993, 1.442695
    %v3997 = vpow.pop %v3996
    %v3998 = vsel %vm386, %v3995, 0.0
    %3999 = vadd.xlane.f32.xlu0 %v3998
    %v4000 = vpop.xlane.xlu0 %3999
    %v4001 = vsel %vm386, %v3997, 0.0
    %4002 = vadd.xlane.f32.xlu0 %v4001
    %v4003 = vpop.xlane.xlu0 %4002
    %v4004 = vrcp.pop %v4000
    %v4005 = vrcp.pop %v4003
    %v4006 = vmul.f32 %v3995, %v4004
    %v4007 = vmul.f32 %v3997, %v4005
    %4008 = vrot.lane.b32.xlu0 %v2595, 104
    %v4009 = vpop.permute.xlu0 %4008
    %v4012 = vsel %vm386, %v4006, 0
    %4014 = vmatprep.subr.mxu0 0.0
    %4015 = vmatpush1.msra.mxu0 %v4009
    %4016 = vmatprep.subr.mxu0 0.0
    %4017 = vmatpush1.msra.mxu0 0.0
    %4018 = vmatprep.subr.mxu0 0.0
    %4019 = vmatpush1.msra.mxu0 0.0
    %4020 = vmatprep.subr.mxu0 0.0
    %4021 = vmatpush1.msra.mxu0 0.0
    %4022 = vmatprep.subr.mxu0 0.0
    %4023 = vmatpush1.msra.mxu0 0.0
    %4024 = vmatprep.subr.mxu0 0.0
    %4025 = vmatpush1.msra.mxu0 0.0
    %4026 = vmatprep.subr.mxu0 0.0
    %4027 = vmatpush1.msra.mxu0 0.0
    %4028 = vmatprep.subr.mxu0 0.0
    %4029 = vmatpush1.msra.mxu0 0.0
    %4030 = vmatprep.subr.mxu0 0.0
    %4031 = vmatpush1.msra.mxu0 0.0
    %4032 = vmatprep.subr.mxu0 0.0
    %4033 = vmatpush1.msra.mxu0 0.0
    %4034 = vmatprep.subr.mxu0 0.0
    %4035 = vmatpush1.msra.mxu0 0.0
    %4036 = vmatprep.subr.mxu0 0.0
    %4037 = vmatpush1.msra.mxu0 0.0
    %4038 = vmatprep.subr.mxu0 0.0
    %4039 = vmatpush1.msra.mxu0 0.0
    %4040 = vmatprep.subr.mxu0 0.0
    %4041 = vmatpush1.msra.mxu0 0.0
    %4042 = vmatprep.subr.mxu0 0.0
    %4043 = vmatpush1.msra.mxu0 0.0
    %4044 = vmatprep.subr.mxu0 0.0
    %4045 = vmatpush1.msra.mxu0 0.0
    %4046 = vmatprep.subr.mxu0 0.0
    %4047 = vmatpush1.msra.mxu0 0.0
    %4048 = vmatprep.subr.mxu0 0.0
    %4049 = vmatpush1.msra.mxu0 0.0
    %4050 = vmatprep.subr.mxu0 0.0
    %4051 = vmatpush1.msra.mxu0 0.0
    %4052 = vmatprep.subr.mxu0 0.0
    %4053 = vmatpush1.msra.mxu0 0.0
    %4054 = vmatprep.subr.mxu0 0.0
    %4055 = vmatpush1.msra.mxu0 0.0
    %4056 = vmatprep.subr.mxu0 0.0
    %4057 = vmatpush1.msra.mxu0 0.0
    %4058 = vmatprep.subr.mxu0 0.0
    %4059 = vmatpush1.msra.mxu0 0.0
    %4060 = vmatprep.subr.mxu0 0.0
    %4061 = vmatpush1.msra.mxu0 0.0
    %4062 = vmatprep.subr.mxu0 0.0
    %4063 = vmatpush1.msra.mxu0 0.0
    %4064 = vmatprep.subr.mxu0 0.0
    %4065 = vmatpush1.msra.mxu0 0.0
    %4066 = vmatprep.subr.mxu0 0.0
    %4067 = vmatpush1.msra.mxu0 0.0
    %4068 = vmatprep.subr.mxu0 0.0
    %4069 = vmatpush1.msra.mxu0 0.0
    %4070 = vmatprep.subr.mxu0 0.0
    %4071 = vmatpush1.msra.mxu0 0.0
    %4072 = vmatprep.subr.mxu0 0.0
    %4073 = vmatpush1.msra.mxu0 0.0
    %4074 = vmatprep.subr.mxu0 0.0
    %4075 = vmatpush1.msra.mxu0 0.0
    %4076 = vmatprep.subr.mxu0 0.0
    %4077 = vmatpush1.msra.mxu0 0.0
    %4078 = vmatprep.mubr.f32.mxu0 0.0
    %4079 = vmatmul.mubr.f32.gmra.mrb[0].mxu0 %v4012
    %v4080 = vpop.f32.mrb[0].mxu0
    %v4081 = vadd.f32 0.0, %v4080
    %v4082 = vpop.f32.mrb[0].mxu0
    %4083 = vdwg.mxu0
    %4084 = vrot.lane.b32.xlu0 %v2600, 104
    %v4085 = vpop.permute.xlu0 %4084
    %v4088 = vsel %vm386, %v4007, 0
    %4090 = vmatprep.subr.mxu0 0.0
    %4091 = vmatpush1.msra.mxu0 %v4085
    %4092 = vmatprep.subr.mxu0 0.0
    %4093 = vmatpush1.msra.mxu0 0.0
    %4094 = vmatprep.subr.mxu0 0.0
    %4095 = vmatpush1.msra.mxu0 0.0
    %4096 = vmatprep.subr.mxu0 0.0
    %4097 = vmatpush1.msra.mxu0 0.0
    %4098 = vmatprep.subr.mxu0 0.0
    %4099 = vmatpush1.msra.mxu0 0.0
    %4100 = vmatprep.subr.mxu0 0.0
    %4101 = vmatpush1.msra.mxu0 0.0
    %4102 = vmatprep.subr.mxu0 0.0
    %4103 = vmatpush1.msra.mxu0 0.0
    %4104 = vmatprep.subr.mxu0 0.0
    %4105 = vmatpush1.msra.mxu0 0.0
    %4106 = vmatprep.subr.mxu0 0.0
    %4107 = vmatpush1.msra.mxu0 0.0
    %4108 = vmatprep.subr.mxu0 0.0
    %4109 = vmatpush1.msra.mxu0 0.0
    %4110 = vmatprep.subr.mxu0 0.0
    %4111 = vmatpush1.msra.mxu0 0.0
    %4112 = vmatprep.subr.mxu0 0.0
    %4113 = vmatpush1.msra.mxu0 0.0
    %4114 = vmatprep.subr.mxu0 0.0
    %4115 = vmatpush1.msra.mxu0 0.0
    %4116 = vmatprep.subr.mxu0 0.0
    %4117 = vmatpush1.msra.mxu0 0.0
    %4118 = vmatprep.subr.mxu0 0.0
    %4119 = vmatpush1.msra.mxu0 0.0
    %4120 = vmatprep.subr.mxu0 0.0
    %4121 = vmatpush1.msra.mxu0 0.0
    %4122 = vmatprep.subr.mxu0 0.0
    %4123 = vmatpush1.msra.mxu0 0.0
    %4124 = vmatprep.subr.mxu0 0.0
    %4125 = vmatpush1.msra.mxu0 0.0
    %4126 = vmatprep.subr.mxu0 0.0
    %4127 = vmatpush1.msra.mxu0 0.0
    %4128 = vmatprep.subr.mxu0 0.0
    %4129 = vmatpush1.msra.mxu0 0.0
    %4130 = vmatprep.subr.mxu0 0.0
    %4131 = vmatpush1.msra.mxu0 0.0
    %4132 = vmatprep.subr.mxu0 0.0
    %4133 = vmatpush1.msra.mxu0 0.0
    %4134 = vmatprep.subr.mxu0 0.0
    %4135 = vmatpush1.msra.mxu0 0.0
    %4136 = vmatprep.subr.mxu0 0.0
    %4137 = vmatpush1.msra.mxu0 0.0
    %4138 = vmatprep.subr.mxu0 0.0
    %4139 = vmatpush1.msra.mxu0 0.0
    %4140 = vmatprep.subr.mxu0 0.0
    %4141 = vmatpush1.msra.mxu0 0.0
    %4142 = vmatprep.subr.mxu0 0.0
    %4143 = vmatpush1.msra.mxu0 0.0
    %4144 = vmatprep.subr.mxu0 0.0
    %4145 = vmatpush1.msra.mxu0 0.0
    %4146 = vmatprep.subr.mxu0 0.0
    %4147 = vmatpush1.msra.mxu0 0.0
    %4148 = vmatprep.subr.mxu0 0.0
    %4149 = vmatpush1.msra.mxu0 0.0
    %4150 = vmatprep.subr.mxu0 0.0
    %4151 = vmatpush1.msra.mxu0 0.0
    %4152 = vmatprep.subr.mxu0 0.0
    %4153 = vmatpush1.msra.mxu0 0.0
    %4154 = vmatprep.mubr.f32.mxu0 0.0
    %4155 = vmatmul.mubr.f32.gmra.mrb[0].mxu0 %v4088
    %v4156 = vpop.f32.mrb[0].mxu0
    %v4157 = vadd.f32 0.0, %v4156
    %v4158 = vpop.f32.mrb[0].mxu0
    %4159 = vdwg.mxu0
    %v4161 = vsel %vm386, %v4081, 0
    %v4164 = vsel %vm386, %v4157, 0
    %4166 = vmatprep.subr.mxu0 0.0
    %4167 = vmatpush1.msra.mxu0 %v2332
    %4168 = vmatprep.subr.mxu0 0.0
    %4169 = vmatpush1.msra.mxu0 0.0
    %4170 = vmatprep.subr.mxu0 0.0
    %4171 = vmatpush1.msra.mxu0 0.0
    %4172 = vmatprep.subr.mxu0 0.0
    %4173 = vmatpush1.msra.mxu0 0.0
    %4174 = vmatprep.subr.mxu0 0.0
    %4175 = vmatpush1.msra.mxu0 0.0
    %4176 = vmatprep.subr.mxu0 0.0
    %4177 = vmatpush1.msra.mxu0 0.0
    %4178 = vmatprep.subr.mxu0 0.0
    %4179 = vmatpush1.msra.mxu0 0.0
    %4180 = vmatprep.subr.mxu0 0.0
    %4181 = vmatpush1.msra.mxu0 0.0
    %4182 = vmatprep.subr.mxu0 0.0
    %4183 = vmatpush1.msra.mxu0 0.0
    %4184 = vmatprep.subr.mxu0 0.0
    %4185 = vmatpush1.msra.mxu0 0.0
    %4186 = vmatprep.subr.mxu0 0.0
    %4187 = vmatpush1.msra.mxu0 0.0
    %4188 = vmatprep.subr.mxu0 0.0
    %4189 = vmatpush1.msra.mxu0 0.0
    %4190 = vmatprep.subr.mxu0 0.0
    %4191 = vmatpush1.msra.mxu0 0.0
    %4192 = vmatprep.subr.mxu0 0.0
    %4193 = vmatpush1.msra.mxu0 0.0
    %4194 = vmatprep.subr.mxu0 0.0
    %4195 = vmatpush1.msra.mxu0 0.0
    %4196 = vmatprep.subr.mxu0 0.0
    %4197 = vmatpush1.msra.mxu0 0.0
    %4198 = vmatprep.subr.mxu0 0.0
    %4199 = vmatpush1.msra.mxu0 0.0
    %4200 = vmatprep.subr.mxu0 0.0
    %4201 = vmatpush1.msra.mxu0 0.0
    %4202 = vmatprep.subr.mxu0 0.0
    %4203 = vmatpush1.msra.mxu0 0.0
    %4204 = vmatprep.subr.mxu0 0.0
    %4205 = vmatpush1.msra.mxu0 0.0
    %4206 = vmatprep.subr.mxu0 0.0
    %4207 = vmatpush1.msra.mxu0 0.0
    %4208 = vmatprep.subr.mxu0 0.0
    %4209 = vmatpush1.msra.mxu0 0.0
    %4210 = vmatprep.subr.mxu0 0.0
    %4211 = vmatpush1.msra.mxu0 0.0
    %4212 = vmatprep.subr.mxu0 0.0
    %4213 = vmatpush1.msra.mxu0 0.0
    %4214 = vmatprep.subr.mxu0 0.0
    %4215 = vmatpush1.msra.mxu0 0.0
    %4216 = vmatprep.subr.mxu0 0.0
    %4217 = vmatpush1.msra.mxu0 0.0
    %4218 = vmatprep.subr.mxu0 0.0
    %4219 = vmatpush1.msra.mxu0 0.0
    %4220 = vmatprep.subr.mxu0 0.0
    %4221 = vmatpush1.msra.mxu0 0.0
    %4222 = vmatprep.subr.mxu0 0.0
    %4223 = vmatpush1.msra.mxu0 0.0
    %4224 = vmatprep.subr.mxu0 0.0
    %4225 = vmatpush1.msra.mxu0 0.0
    %4226 = vmatprep.subr.mxu0 0.0
    %4227 = vmatpush1.msra.mxu0 0.0
    %4228 = vmatprep.subr.mxu0 0.0
    %4229 = vmatpush1.msra.mxu0 0.0
    %4230 = vmatprep.mubr.f32.mxu0 0.0
    %4231 = vmatmul.mubr.f32.gmra.mrb[0].mxu0 %v4161
    %v4232 = vpop.f32.mrb[0].mxu0
    %v4233 = vadd.f32 0.0, %v4232
    %v4234 = vpop.f32.mrb[0].mxu0
    %4235 = vmatprep.mubr.f32.mxu0 0.0
    %4236 = vmatmul.mubr.f32.gmra.mrb[0].mxu0 %v4164
    %v4237 = vpop.f32.mrb[0].mxu0
    %v4238 = vadd.f32 0.0, %v4237
    %v4239 = vpop.f32.mrb[0].mxu0
    %4240 = vdwg.mxu0
    %v4241 = vadd.f32 %v3828, %v4233
    %v4242 = vadd.f32 %v3829, %v4238
    %s4243 = scalar_lea.vmem %s9, 1
    %v4244 = vld [vmem:[%s4243] sm:$0x1]
    %v4246 = vlaneseq
    %v4247 = vshrl.u32 %v4246, 7
    %v4248 = vsub.s32 0, %v4247
    %v4249 = vrot.slane %v4244, %v4248
    %v4251 = vadd.f32 %v4241, %v4249
    %v4252 = vadd.f32 %v4242, %v4249
    %v4253 = vadd.f32 %v2326, %v4251
    %v4254 = vadd.f32 %v2327, %v4252
    %s4255 = scalar_lea.vmem %s10, 1
    %v4256 = vld [vmem:[%s4255] sm:$0x1]
    %s4257 = scalar_lea.vmem %s11, 1
    %v4258 = vld [vmem:[%s4257] sm:$0x1]
    %v4259 = vsel %vm120, %v4253, 0.0
    %4260 = vadd.xlane.f32.xlu0 %v4259
    %v4261 = vpop.xlane.xlu0 %4260
    %v4262 = vsel %vm120, %v4254, 0.0
    %4263 = vadd.xlane.f32.xlu0 %v4262
    %v4264 = vpop.xlane.xlu0 %4263
    %v4265 = vmul.f32 %v4261, %v2046
    %v4266 = vmul.f32 %v4264, %v2046
    %v4267 = vmul.f32 %v4253, %v4253
    %v4268 = vmul.f32 %v4254, %v4254
    %v4269 = vsel %vm120, %v4267, 0.0
    %4270 = vadd.xlane.f32.xlu0 %v4269
    %v4271 = vpop.xlane.xlu0 %4270
    %v4272 = vsel %vm120, %v4268, 0.0
    %4273 = vadd.xlane.f32.xlu0 %v4272
    %v4274 = vpop.xlane.xlu0 %4273
    %v4275 = vmul.f32 %v4271, %v2046
    %v4276 = vmul.f32 %v4274, %v2046
    %v4277 = vmul.f32 %v4265, %v4265
    %v4278 = vmul.f32 %v4266, %v4266
    %v4279 = vsub.f32 %v4275, %v4277
    %v4280 = vsub.f32 %v4276, %v4278
    %v4281 = vsub.f32 %v4253, %v4265
    %v4282 = vsub.f32 %v4254, %v4266
    %v4283 = vadd.f32 %v4279, 1e-05
    %v4284 = vadd.f32 %v4280, 1e-05
    %v4285 = vrsqrt.pop %v4283
    %v4286 = vrsqrt.pop %v4284
    %v4287 = vmul.f32 %v4281, %v4285
    %v4288 = vmul.f32 %v4282, %v4286
    %v4290 = vlaneseq
    %v4291 = vshrl.u32 %v4290, 7
    %v4292 = vsub.s32 0, %v4291
    %v4293 = vrot.slane %v4256, %v4292
    %v4295 = vmul.f32 %v4287, %v4293
    %v4296 = vmul.f32 %v4288, %v4293
    %v4298 = vlaneseq
    %v4299 = vshrl.u32 %v4298, 7
    %v4300 = vsub.s32 0, %v4299
    %v4301 = vrot.slane %v4258, %v4300
    %v4303 = vadd.f32 %v4295, %v4301
    %v4304 = vadd.f32 %v4296, %v4301
    %s4305 = scalar_lea.vmem [#allocation7], 32
    %v4306 = vld [vmem:[%s4305] sm:$0xff]
    %v4307 = vld [vmem:[%s4305 + $0x8] sm:$0xff]
    %v4308 = vld [vmem:[%s4305 + $0x10] sm:$0xff]
    %v4309 = vld [vmem:[%s4305 + $0x18] sm:$0xff]
    %s4310 = scalar_lea.vmem %s15, 1
    %v4311 = vld [vmem:[%s4310] sm:$0x1]
    %v4313 = vlaneseq
    %v4314 = vshrl.u32 %v4313, 7
    %v4315 = vsub.s32 0, %v4314
    %v4316 = vrot.slane %v4311, %v4315
    %v4319 = vsel %vm120, %v4303, 0
    %v4322 = vsel %vm120, %v4304, 0
    %4324 = vmatprep.subr.mxu0 0.0
    %4325 = vmatpush1.msra.mxu0 %v4306
    %4326 = vmatprep.subr.mxu0 0.0
    %4327 = vmatpush1.msra.mxu0 %v4307
    %4328 = vmatprep.subr.mxu0 0.0
    %4329 = vmatpush1.msra.mxu0 %v4308
    %4330 = vmatprep.subr.mxu0 0.0
    %4331 = vmatpush1.msra.mxu0 %v4309
    %4332 = vmatprep.subr.mxu0 0.0
    %4333 = vmatpush1.msra.mxu0 0.0
    %4334 = vmatprep.subr.mxu0 0.0
    %4335 = vmatpush1.msra.mxu0 0.0
    %4336 = vmatprep.subr.mxu0 0.0
    %4337 = vmatpush1.msra.mxu0 0.0
    %4338 = vmatprep.subr.mxu0 0.0
    %4339 = vmatpush1.msra.mxu0 0.0
    %4340 = vmatprep.subr.mxu0 0.0
    %4341 = vmatpush1.msra.mxu0 0.0
    %4342 = vmatprep.subr.mxu0 0.0
    %4343 = vmatpush1.msra.mxu0 0.0
    %4344 = vmatprep.subr.mxu0 0.0
    %4345 = vmatpush1.msra.mxu0 0.0
    %4346 = vmatprep.subr.mxu0 0.0
    %4347 = vmatpush1.msra.mxu0 0.0
    %4348 = vmatprep.subr.mxu0 0.0
    %4349 = vmatpush1.msra.mxu0 0.0
    %4350 = vmatprep.subr.mxu0 0.0
    %4351 = vmatpush1.msra.mxu0 0.0
    %4352 = vmatprep.subr.mxu0 0.0
    %4353 = vmatpush1.msra.mxu0 0.0
    %4354 = vmatprep.subr.mxu0 0.0
    %4355 = vmatpush1.msra.mxu0 0.0
    %4356 = vmatprep.subr.mxu0 0.0
    %4357 = vmatpush1.msra.mxu0 0.0
    %4358 = vmatprep.subr.mxu0 0.0
    %4359 = vmatpush1.msra.mxu0 0.0
    %4360 = vmatprep.subr.mxu0 0.0
    %4361 = vmatpush1.msra.mxu0 0.0
    %4362 = vmatprep.subr.mxu0 0.0
    %4363 = vmatpush1.msra.mxu0 0.0
    %4364 = vmatprep.subr.mxu0 0.0
    %4365 = vmatpush1.msra.mxu0 0.0
    %4366 = vmatprep.subr.mxu0 0.0
    %4367 = vmatpush1.msra.mxu0 0.0
    %4368 = vmatprep.subr.mxu0 0.0
    %4369 = vmatpush1.msra.mxu0 0.0
    %4370 = vmatprep.subr.mxu0 0.0
    %4371 = vmatpush1.msra.mxu0 0.0
    %4372 = vmatprep.subr.mxu0 0.0
    %4373 = vmatpush1.msra.mxu0 0.0
    %4374 = vmatprep.subr.mxu0 0.0
    %4375 = vmatpush1.msra.mxu0 0.0
    %4376 = vmatprep.subr.mxu0 0.0
    %4377 = vmatpush1.msra.mxu0 0.0
    %4378 = vmatprep.subr.mxu0 0.0
    %4379 = vmatpush1.msra.mxu0 0.0
    %4380 = vmatprep.subr.mxu0 0.0
    %4381 = vmatpush1.msra.mxu0 0.0
    %4382 = vmatprep.subr.mxu0 0.0
    %4383 = vmatpush1.msra.mxu0 0.0
    %4384 = vmatprep.subr.mxu0 0.0
    %4385 = vmatpush1.msra.mxu0 0.0
    %4386 = vmatprep.subr.mxu0 0.0
    %4387 = vmatpush1.msra.mxu0 0.0
    %4388 = vmatprep.mubr.f32.mxu0 0.0
    %4389 = vmatmul.mubr.f32.gmra.mrb[0].mxu0 %v4319
    %v4390 = vpop.f32.mrb[0].mxu0
    %v4391 = vadd.f32 %v4316, %v4390
    %v4392 = vpop.f32.mrb[0].mxu0
    %4393 = vmatprep.mubr.f32.mxu0 0.0
    %4394 = vmatmul.mubr.f32.gmra.mrb[0].mxu0 %v4322
    %v4395 = vpop.f32.mrb[0].mxu0
    %v4396 = vadd.f32 %v4316, %v4395
    %v4397 = vpop.f32.mrb[0].mxu0
    %4398 = vdwg.mxu0
    %v4399 = vmax.f32 %v4391, 0.0
    %v4400 = vmax.f32 %v4396, 0.0
    %s4401 = scalar_lea.vmem %s16, 64
    %v4402 = vld [vmem:[%s4401] sm:$0xff]
    %v4403 = vld [vmem:[%s4401 + $0x8] sm:$0xff]
    %v4404 = vld [vmem:[%s4401 + $0x10] sm:$0xff]
    %v4405 = vld [vmem:[%s4401 + $0x18] sm:$0xff]
    %v4406 = vld [vmem:[%s4401 + $0x20] sm:$0xff]
    %v4407 = vld [vmem:[%s4401 + $0x28] sm:$0xff]
    %v4408 = vld [vmem:[%s4401 + $0x30] sm:$0xff]
    %v4409 = vld [vmem:[%s4401 + $0x38] sm:$0xff]
    %s4410 = scalar_lea.vmem %s17, 1
    %v4411 = vld [vmem:[%s4410] sm:$0x1]
    %v4413 = vlaneseq
    %v4414 = vshrl.u32 %v4413, 7
    %v4415 = vsub.s32 0, %v4414
    %v4416 = vrot.slane %v4411, %v4415
    %v4419 = vsel %vm2196, %v4399, 0
    %v4422 = vsel %vm2196, %v4400, 0
    %4424 = vmatprep.subr.mxu0 0.0
    %4425 = vmatpush1.msra.mxu0 %v4402
    %4426 = vmatprep.subr.mxu0 0.0
    %4427 = vmatpush1.msra.mxu0 %v4403
    %4428 = vmatprep.subr.mxu0 0.0
    %4429 = vmatpush1.msra.mxu0 %v4404
    %4430 = vmatprep.subr.mxu0 0.0
    %4431 = vmatpush1.msra.mxu0 %v4405
    %4432 = vmatprep.subr.mxu0 0.0
    %4433 = vmatpush1.msra.mxu0 %v4406
    %4434 = vmatprep.subr.mxu0 0.0
    %4435 = vmatpush1.msra.mxu0 %v4407
    %4436 = vmatprep.subr.mxu0 0.0
    %4437 = vmatpush1.msra.mxu0 %v4408
    %4438 = vmatprep.subr.mxu0 0.0
    %4439 = vmatpush1.msra.mxu0 %v4409
    %4440 = vmatprep.subr.mxu0 0.0
    %4441 = vmatpush1.msra.mxu0 0.0
    %4442 = vmatprep.subr.mxu0 0.0
    %4443 = vmatpush1.msra.mxu0 0.0
    %4444 = vmatprep.subr.mxu0 0.0
    %4445 = vmatpush1.msra.mxu0 0.0
    %4446 = vmatprep.subr.mxu0 0.0
    %4447 = vmatpush1.msra.mxu0 0.0
    %4448 = vmatprep.subr.mxu0 0.0
    %4449 = vmatpush1.msra.mxu0 0.0
    %4450 = vmatprep.subr.mxu0 0.0
    %4451 = vmatpush1.msra.mxu0 0.0
    %4452 = vmatprep.subr.mxu0 0.0
    %4453 = vmatpush1.msra.mxu0 0.0
    %4454 = vmatprep.subr.mxu0 0.0
    %4455 = vmatpush1.msra.mxu0 0.0
    %4456 = vmatprep.subr.mxu0 0.0
    %4457 = vmatpush1.msra.mxu0 0.0
    %4458 = vmatprep.subr.mxu0 0.0
    %4459 = vmatpush1.msra.mxu0 0.0
    %4460 = vmatprep.subr.mxu0 0.0
    %4461 = vmatpush1.msra.mxu0 0.0
    %4462 = vmatprep.subr.mxu0 0.0
    %4463 = vmatpush1.msra.mxu0 0.0
    %4464 = vmatprep.subr.mxu0 0.0
    %4465 = vmatpush1.msra.mxu0 0.0
    %4466 = vmatprep.subr.mxu0 0.0
    %4467 = vmatpush1.msra.mxu0 0.0
    %4468 = vmatprep.subr.mxu0 0.0
    %4469 = vmatpush1.msra.mxu0 0.0
    %4470 = vmatprep.subr.mxu0 0.0
    %4471 = vmatpush1.msra.mxu0 0.0
    %4472 = vmatprep.subr.mxu0 0.0
    %4473 = vmatpush1.msra.mxu0 0.0
    %4474 = vmatprep.subr.mxu0 0.0
    %4475 = vmatpush1.msra.mxu0 0.0
    %4476 = vmatprep.subr.mxu0 0.0
    %4477 = vmatpush1.msra.mxu0 0.0
    %4478 = vmatprep.subr.mxu0 0.0
    %4479 = vmatpush1.msra.mxu0 0.0
    %4480 = vmatprep.subr.mxu0 0.0
    %4481 = vmatpush1.msra.mxu0 0.0
    %4482 = vmatprep.subr.mxu0 0.0
    %4483 = vmatpush1.msra.mxu0 0.0
    %4484 = vmatprep.subr.mxu0 0.0
    %4485 = vmatpush1.msra.mxu0 0.0
    %4486 = vmatprep.subr.mxu0 0.0
    %4487 = vmatpush1.msra.mxu0 0.0
    %4488 = vmatprep.mubr.f32.mxu0 0.0
    %4489 = vmatmul.mubr.f32.gmra.mrb[0].mxu0 %v4419
    %v4490 = vpop.f32.mrb[0].mxu0
    %v4491 = vadd.f32 %v4416, %v4490
    %v4492 = vpop.f32.mrb[0].mxu0
    %4493 = vmatprep.mubr.f32.mxu0 0.0
    %4494 = vmatmul.mubr.f32.gmra.mrb[0].mxu0 %v4422
    %v4495 = vpop.f32.mrb[0].mxu0
    %v4496 = vadd.f32 %v4416, %v4495
    %v4497 = vpop.f32.mrb[0].mxu0
    %4498 = vdwg.mxu0
    %v4499 = vadd.f32 %v4303, %v4491
    %v4500 = vadd.f32 %v4304, %v4496
    %s4501 = scalar_lea.vmem %s12, 1
    %v4502 = vld [vmem:[%s4501] sm:$0x1]
    %s4503 = scalar_lea.vmem %s13, 1
    %v4504 = vld [vmem:[%s4503] sm:$0x1]
    %v4505 = vsel %vm120, %v4499, 0.0
    %4506 = vadd.xlane.f32.xlu0 %v4505
    %v4507 = vpop.xlane.xlu0 %4506
    %v4508 = vsel %vm120, %v4500, 0.0
    %4509 = vadd.xlane.f32.xlu0 %v4508
    %v4510 = vpop.xlane.xlu0 %4509
    %v4511 = vmul.f32 %v4507, %v2046
    %v4512 = vmul.f32 %v4510, %v2046
    %v4513 = vmul.f32 %v4499, %v4499
    %v4514 = vmul.f32 %v4500, %v4500
    %v4515 = vsel %vm120, %v4513, 0.0
    %4516 = vadd.xlane.f32.xlu0 %v4515
    %v4517 = vpop.xlane.xlu0 %4516
    %v4518 = vsel %vm120, %v4514, 0.0
    %4519 = vadd.xlane.f32.xlu0 %v4518
    %v4520 = vpop.xlane.xlu0 %4519
    %v4521 = vmul.f32 %v4517, %v2046
    %v4522 = vmul.f32 %v4520, %v2046
    %v4523 = vmul.f32 %v4511, %v4511
    %v4524 = vmul.f32 %v4512, %v4512
    %v4525 = vsub.f32 %v4521, %v4523
    %v4526 = vsub.f32 %v4522, %v4524
    %v4527 = vsub.f32 %v4499, %v4511
    %v4528 = vsub.f32 %v4500, %v4512
    %v4529 = vadd.f32 %v4525, 1e-05
    %v4530 = vadd.f32 %v4526, 1e-05
    %v4531 = vrsqrt.pop %v4529
    %v4532 = vrsqrt.pop %v4530
    %v4533 = vmul.f32 %v4527, %v4531
    %v4534 = vmul.f32 %v4528, %v4532
    %v4536 = vlaneseq
    %v4537 = vshrl.u32 %v4536, 7
    %v4538 = vsub.s32 0, %v4537
    %v4539 = vrot.slane %v4502, %v4538
    %v4541 = vmul.f32 %v4533, %v4539
    %v4542 = vmul.f32 %v4534, %v4539
    %v4544 = vlaneseq
    %v4545 = vshrl.u32 %v4544, 7
    %v4546 = vsub.s32 0, %v4545
    %v4547 = vrot.slane %v4504, %v4546
    %v4549 = vadd.f32 %v4541, %v4547
    %v4550 = vadd.f32 %v4542, %v4547
    %v4553 = vrot.slane %v4550, 7
    %vm4554 = vcmask 1041409
    %v4555 = vsel %vm4554, %v4553, %v4549
    %vm4557 = vcmask 254976
    %4558 = vst.msk [vmem:[#allocation8] sm:$0x3] %vm4557, %v4555
    // Predicated region
    $region86: #{tpu_custom_call.1} parent=1 // pred_check
      _
    $region87: #{tpu_custom_call.1} parent=1 // pred_check_branch
      %4560 = sbr.rel (0) target = $region89
    $region88: #{tpu_custom_call.1} parent=1 // pred_region
      %s4562 = ssub.s32 32, 32
      %4563 = vsyncadd [#allocation4], %s4562
      %s4565 = sshll.u32 [#allocation8], 4
      %s4566 = int_to_ptr.vmem [resolvable:$true] %s4565
      %4568 = dma.vmem_to_hbm [thread:$0]  %s4566, 32, %s18, [#allocation4]
    $region89: #{tpu_custom_call.1} parent=1 // pred_fallthru
      _
    // Predicated region
    $region90: #{tpu_custom_call.1} parent=1 // pred_check
      _
    $region91: #{tpu_custom_call.1} parent=1 // pred_check_branch
      %4570 = sbr.rel (0) target = $region93
    $region92: #{tpu_custom_call.1} parent=1 // pred_region
      %4571 = dma.done [#allocation4], 32
    $region93: #{tpu_custom_call.1} parent=1 // pred_fallthru
      _
    %4572 = vsyncpa [#allocation3], 1
    %4573 = vsyncpa [#allocation6], 1
    %4574 = vsyncpa [#allocation4], 1

</llo_original>
